<compile_context>
chip_gen: v6e
topology: v6e:2x2x1
jax: 0.10.0
libtpu: 0.0.40
codegen_flags: <defaults>
</compile_context>

<pallas_src>
import math

import jax
import jax.numpy as jnp
from jax import lax
from jax.experimental import pallas as pl
from jax.experimental.pallas import tpu as pltpu

EPS = 1e-6


def _build_kernel(S, D, tq, compute_dtype, approx_recip):
    tk = tq                              # square tiles -> only the diagonal tile is masked
    scale = 1.0 / math.sqrt(S)           # reference scales by sqrt(seq_len), not sqrt(D)
    inv_dm1 = 1.0 / (D - 1)
    cd = compute_dtype
    neg_inf = float("-inf")

    def layernorm(h, g, b):
        # torch.Tensor.std is unbiased (ddof=1); eps is added to std, not var.
        mean = jnp.mean(h, axis=-1, keepdims=True)
        var = jnp.sum((h - mean) ** 2, axis=-1, keepdims=True) * inv_dm1
        return g * (h - mean) / (jnp.sqrt(var) + EPS) + b     # exact divide (review)

    def kernel(x_ref, wqkv_ref, bqkv_ref, wo_ref, bo_ref,
               g1_ref, b1_ref, g2_ref, b2_ref,
               wm1_ref, bm1_ref, wm2_ref, bm2_ref,
               o_ref, kc_ref, vc_ref, m_sc, l_sc, acc_sc):
        qi = pl.program_id(1)

        # ---- query tile: LN1 + fused QKV projection (scale folded into Q) ----
        x_q = x_ref[...]                                   # (tq, D) f32
        h_q = layernorm(x_q, g1_ref[...], b1_ref[...])
        qkv = jnp.dot(h_q.astype(cd), wqkv_ref[...],       # one (tq,D)x(D,3D) MXU call
                      preferred_element_type=jnp.float32) + bqkv_ref[...]
        q_cd = (qkv[:, :D] * scale).astype(cd)
        k_new = qkv[:, D:2 * D].astype(cd)
        v_new = qkv[:, 2 * D:].astype(cd)

        # ---- append the new diagonal tile to the persistent K/V caches ----
        q_start = pl.multiple_of(qi * tq, tq)
        kc_ref[pl.ds(q_start, tq), :] = k_new
        vc_ref[pl.ds(q_start, tq), :] = v_new

        # ---- online-softmax state ----
        m_sc[...] = jnp.full((tq, 1), neg_inf, jnp.float32)
        l_sc[...] = jnp.zeros((tq, 1), jnp.float32)
        acc_sc[...] = jnp.zeros((tq, D), jnp.float32)

        def flash_update(k_t, v_t, mask=None):
            # transpose-free Q @ K^T: contract the feature dim of both operands.
            # TODO(synk): if the Mosaic dump ever shows a vxpose here, store the
            # K cache pre-transposed as (D, S) instead.
            s = lax.dot_general(q_cd, k_t,
                                dimension_numbers=(((1,), (1,)), ((), ())),
                                preferred_element_type=jnp.float32)
            if mask is not None:
                s = jnp.where(mask, neg_inf, s)
            m_prev = m_sc[...]
            m_new = jnp.maximum(m_prev, jnp.max(s, axis=-1, keepdims=True))
            alpha = jnp.exp(m_prev - m_new)
            p = jnp.exp(s - m_new)
            l_sc[...] = alpha * l_sc[...] + jnp.sum(p, axis=-1, keepdims=True)
            acc_sc[...] = alpha * acc_sc[...] + jnp.dot(
                p.astype(cd), v_t, preferred_element_type=jnp.float32)
            m_sc[...] = m_new

        # ---- unmasked prefix: KV tiles strictly below the diagonal, from cache ----
        @pl.loop(0, qi)
        def _(j):
            k_start = pl.multiple_of(j * tk, tk)
            flash_update(kc_ref[pl.ds(k_start, tk), :],
                         vc_ref[pl.ds(k_start, tk), :])

        # ---- diagonal tile: only place the causal mask is evaluated ----
        row = lax.broadcasted_iota(jnp.int32, (tq, tk), 0)
        col = lax.broadcasted_iota(jnp.int32, (tq, tk), 1)
        flash_update(k_new, v_new, mask=col > row)

        # ---- finalize attention, output projection, residual ----
        if approx_recip:
            attn = acc_sc[...] * pl.reciprocal(l_sc[...], approx=True)
        else:
            attn = acc_sc[...] / l_sc[...]
        attn_o = jnp.dot(attn.astype(cd), wo_ref[...],
                         preferred_element_type=jnp.float32) + bo_ref[...]
        h1 = attn_o + x_q

        # ---- LN2 + MLP + residual ----
        h2 = layernorm(h1, g2_ref[...], b2_ref[...])
        h2 = jnp.dot(h2.astype(cd), wm1_ref[...],
                     preferred_element_type=jnp.float32) + bm1_ref[...]
        h2 = jnp.maximum(h2, 0.0)
        h2 = jnp.dot(h2.astype(cd), wm2_ref[...],
                     preferred_element_type=jnp.float32) + bm2_ref[...]

        o_ref[...] = (h1 + h2).astype(o_ref.dtype)

    return kernel


def _pick_tile(S):
    # 256 fills the v6e/v7x MXU; on v5e (4x128 MXU, 16 MiB default scoped VMEM)
    # pass tq=128 explicitly.
    for cand in (256, 128, 64, 32, 16, 8):
        if S % cand == 0:
            return cand
    return S


def _vmem_bytes(S, D, tq, cd, weight_buffers):
    f32b = 4
    cdb = jnp.dtype(cd).itemsize
    io = 2 * (2 * tq * D * f32b)                       # x + out, double-buffered
    weights = weight_buffers * 6 * D * D * cdb         # wqkv (3D^2) + wo + w1 + w2
    vecs = weight_buffers * 10 * D * f32b              # biases + LN params
    scratch = 2 * S * D * cdb + 2 * tq * f32b + tq * D * f32b  # KV caches + flash state
    return io + weights + vecs + scratch


def transformer_layer(x, params, *, compute_dtype=jnp.bfloat16,
                      approx_recip=True, tq=None):
    B, S, D = x.shape
    if tq is None:
        tq = _pick_tile(S)
    assert S % tq == 0, "query tile must divide sequence length"
    num_q = S // tq
    cd = compute_dtype

    def as_row(v):
        return v.reshape(1, -1).astype(jnp.float32)

    # MXU weight slabs in compute dtype (halves DMA/VMEM for bf16); biases and
    # LN params stay f32.
    wqkv = jnp.concatenate([params["wq"], params["wk"], params["wv"]],
                           axis=1).astype(cd)                               # (D, 3D)
    wo = params["wo"].astype(cd)
    wm1 = params["w1"].astype(cd)
    wm2 = params["w2"].astype(cd)
    bqkv = as_row(jnp.concatenate([params["bq"], params["bk"], params["bv"]], axis=0))
    bo = as_row(params["bo"])
    bm1 = as_row(params["b1"])
    bm2 = as_row(params["b2"])
    g1, b1 = as_row(params["ln1_g"]), as_row(params["ln1_b"])
    g2, b2 = as_row(params["ln2_g"]), as_row(params["ln2_b"])

    kernel = _build_kernel(S, D, tq, cd, approx_recip)

    def run(weight_buffers):
        def wspec(shape):
            def index_map(b, qi):
                return (0,) * len(shape)
            if weight_buffers == 1:
                # Grid-invariant block: single buffer (never re-fetched) halves
                # the weight VMEM footprint.
                return pl.BlockSpec(shape, index_map, pipeline_mode=pl.Buffered(1))
            return pl.BlockSpec(shape, index_map)

        grid_spec = pltpu.PrefetchScalarGridSpec(
            num_scalar_prefetch=0,
            grid=(B, num_q),
            in_specs=[
                pl.BlockSpec((pl.Squeezed(), tq, D), lambda b, qi: (b, qi, 0)),  # x tile
                wspec((D, 3 * D)), wspec((1, 3 * D)),    # wqkv (fused), bqkv
                wspec((D, D)), wspec((1, D)),            # wo, bo
                wspec((1, D)), wspec((1, D)),            # ln1 gamma, beta
                wspec((1, D)), wspec((1, D)),            # ln2 gamma, beta
                wspec((D, D)), wspec((1, D)),            # mlp w1, b1
                wspec((D, D)), wspec((1, D)),            # mlp w2, b2
            ],
            out_specs=pl.BlockSpec((pl.Squeezed(), tq, D), lambda b, qi: (b, qi, 0)),
            scratch_shapes=[
                pltpu.VMEM((S, D), cd),             # K cache (persists across qi steps)
                pltpu.VMEM((S, D), cd),             # V cache
                pltpu.VMEM((tq, 1), jnp.float32),   # running max
                pltpu.VMEM((tq, 1), jnp.float32),   # running sum
                pltpu.VMEM((tq, D), jnp.float32),   # output accumulator
            ],
        )

        est = _vmem_bytes(S, D, tq, cd, weight_buffers)
        # >= default scoped limit everywhere, <= v7x physical (64 MiB).
        vmem_limit = int(min(max(32 << 20, 2 * est + (4 << 20)), 64 << 20))

        return pl.pallas_call(
            kernel,
            out_shape=jax.ShapeDtypeStruct((B, S, D), jnp.float32),
            grid_spec=grid_spec,
            compiler_params=pltpu.CompilerParams(
                # batch parallel (megacore); qi sequential (KV-cache dependence).
                dimension_semantics=("parallel", "arbitrary"),
                vmem_limit_bytes=vmem_limit),
        )(x, wqkv, bqkv, wo, bo, g1, b1, g2, b2, wm1, bm1, wm2, bm2)

    try:
        return run(1)
    except Exception:
        # pipeline_mode=pl.Buffered(1) not accepted by this JAX/Mosaic build for
        # top-level pallas_call blocks; fall back to default double buffering.
        return run(2)


def init_params(key, D):
    scale = jnp.sqrt(jnp.float32(2.0 / (D + D)))
    ks = jax.random.split(key, 6)

    def w(k):
        return jax.random.normal(k, (D, D), dtype=jnp.float32) * scale

    zeros = jnp.zeros((D,), jnp.float32)
    ones = jnp.ones((D,), jnp.float32)
    return dict(
        wq=w(ks[0]), bq=zeros, wk=w(ks[1]), bk=zeros,
        wv=w(ks[2]), bv=zeros, wo=w(ks[3]), bo=zeros,
        ln1_g=ones, ln1_b=zeros, ln2_g=ones, ln2_b=zeros,
        w1=w(ks[4]), b1=zeros, w2=w(ks[5]), b2=zeros,
    )


def reference_forward(x, params):
    """Pure-JAX reference mirroring the PyTorch module exactly."""
    B, S, D = x.shape

    def layernorm(h, g, b):
        mean = jnp.mean(h, axis=-1, keepdims=True)
        var = jnp.sum((h - mean) ** 2, axis=-1, keepdims=True) / (D - 1)
        return g * (h - mean) / (jnp.sqrt(var) + EPS) + b

    h = layernorm(x, params["ln1_g"], params["ln1_b"])
    q = h @ params["wq"] + params["bq"]
    k = h @ params["wk"] + params["bk"]
    v = h @ params["wv"] + params["bv"]
    attn = jnp.einsum("bqd,bkd->bqk", q, k) / jnp.sqrt(jnp.float32(S))
    mask = jnp.triu(jnp.ones((S, S), bool), k=1)
    attn = jnp.where(mask, -jnp.inf, attn)
    p = jax.nn.softmax(attn, axis=-1)
    out = (p @ v) @ params["wo"] + params["bo"]
    h1 = out + x

    h2 = layernorm(h1, params["ln2_g"], params["ln2_b"])
    h2 = jnp.maximum(h2 @ params["w1"] + params["b1"], 0.0)
    h2 = h2 @ params["w2"] + params["b2"]
    return h1 + h2


if __name__ == "__main__":
    # S=32 with tq=8 gives 4 query tiles so the persistent KV-cache / prefix-loop
    # path is actually exercised (not just the diagonal tile).
    B, S, D = 2, 32, 32
    key = jax.random.PRNGKey(0)
    kx, kp = jax.random.split(key)
    x = jax.random.normal(kx, (B, S, D), dtype=jnp.float32)
    params = init_params(kp, D)

    ref = reference_forward(x, params)

    # Validation path: f32 MXU operands, exact divides -> tight tolerance.
    out_f32 = jax.block_until_ready(
        transformer_layer(x, params, compute_dtype=jnp.float32,
                          approx_recip=False, tq=8))
    assert out_f32.shape == (B, S, D)
    assert jnp.allclose(out_f32, ref, atol=1e-4, rtol=1e-4), "f32 kernel mismatch vs reference"

    # Same f32 path with the default (single-tile) tiling.
    out_f32_d = jax.block_until_ready(
        transformer_layer(x, params, compute_dtype=jnp.float32, approx_recip=False))
    assert jnp.allclose(out_f32_d, ref, atol=1e-4, rtol=1e-4), "f32 default-tile mismatch"

    # Default fast path: bf16 MXU operands (f32 accumulation) + EUP approx
    # reciprocal restricted to the softmax denominator.
    out_bf16 = jax.block_until_ready(transformer_layer(x, params, tq=8))
    assert out_bf16.shape == (B, S, D)
    assert jnp.allclose(out_bf16, ref, atol=1e-1, rtol=1e-1), "bf16 kernel mismatch vs reference"

    print("KERNEL_OK")
</pallas_src>

<mosaic_0001>
module attributes {stable_mosaic.version = 11 : i64} {
  func.func @kernel(%arg0: i32, %arg1: i32, %arg2: memref<1x8x32xf32, #tpu.memory_space<vmem>>, %arg3: memref<32x96xf32, #tpu.memory_space<vmem>>, %arg4: memref<1x96xf32, #tpu.memory_space<vmem>>, %arg5: memref<32x32xf32, #tpu.memory_space<vmem>>, %arg6: memref<1x32xf32, #tpu.memory_space<vmem>>, %arg7: memref<1x32xf32, #tpu.memory_space<vmem>>, %arg8: memref<1x32xf32, #tpu.memory_space<vmem>>, %arg9: memref<1x32xf32, #tpu.memory_space<vmem>>, %arg10: memref<1x32xf32, #tpu.memory_space<vmem>>, %arg11: memref<32x32xf32, #tpu.memory_space<vmem>>, %arg12: memref<1x32xf32, #tpu.memory_space<vmem>>, %arg13: memref<32x32xf32, #tpu.memory_space<vmem>>, %arg14: memref<1x32xf32, #tpu.memory_space<vmem>>, %arg15: memref<1x8x32xf32, #tpu.memory_space<vmem>>, %arg16: memref<32x32xf32, #tpu.memory_space<vmem>>, %arg17: memref<32x32xf32, #tpu.memory_space<vmem>>, %arg18: memref<8x1xf32, #tpu.memory_space<vmem>>, %arg19: memref<8x1xf32, #tpu.memory_space<vmem>>, %arg20: memref<8x32xf32, #tpu.memory_space<vmem>>) attributes {dimension_semantics = [#tpu.dimension_semantics<parallel>, #tpu.dimension_semantics<arbitrary>], iteration_bounds = array<i64: 2, 4>, scalar_prefetch = 0 : i64, scratch_operands = 5 : i64, tpu.core_type = #tpu.core_type<tc>, window_params = [{transform_indices = @transform_0, window_bounds = array<i64: 1, 8, 32>}, {pipeline_mode = #tpu.pipeline_mode<synchronous>, transform_indices = @transform_1, window_bounds = array<i64: 32, 96>}, {pipeline_mode = #tpu.pipeline_mode<synchronous>, transform_indices = @transform_2, window_bounds = array<i64: 1, 96>}, {pipeline_mode = #tpu.pipeline_mode<synchronous>, transform_indices = @transform_3, window_bounds = array<i64: 32, 32>}, {pipeline_mode = #tpu.pipeline_mode<synchronous>, transform_indices = @transform_4, window_bounds = array<i64: 1, 32>}, {pipeline_mode = #tpu.pipeline_mode<synchronous>, transform_indices = @transform_5, window_bounds = array<i64: 1, 32>}, {pipeline_mode = #tpu.pipeline_mode<synchronous>, transform_indices = @transform_6, window_bounds = array<i64: 1, 32>}, {pipeline_mode = #tpu.pipeline_mode<synchronous>, transform_indices = @transform_7, window_bounds = array<i64: 1, 32>}, {pipeline_mode = #tpu.pipeline_mode<synchronous>, transform_indices = @transform_8, window_bounds = array<i64: 1, 32>}, {pipeline_mode = #tpu.pipeline_mode<synchronous>, transform_indices = @transform_9, window_bounds = array<i64: 32, 32>}, {pipeline_mode = #tpu.pipeline_mode<synchronous>, transform_indices = @transform_10, window_bounds = array<i64: 1, 32>}, {pipeline_mode = #tpu.pipeline_mode<synchronous>, transform_indices = @transform_11, window_bounds = array<i64: 32, 32>}, {pipeline_mode = #tpu.pipeline_mode<synchronous>, transform_indices = @transform_12, window_bounds = array<i64: 1, 32>}, {transform_indices = @transform_13, window_bounds = array<i64: 1, 8, 32>}]} {
    %c0 = arith.constant 0 : index
    %c0_0 = arith.constant 0 : index
    %c0_1 = arith.constant 0 : index
    %0 = vector.load %arg2[%c0, %c0_0, %c0_1] : memref<1x8x32xf32, #tpu.memory_space<vmem>>, vector<1x8x32xf32>
    %1 = vector.shape_cast %0 : vector<1x8x32xf32> to vector<8x32xf32>
    %c0_2 = arith.constant 0 : index
    %c0_3 = arith.constant 0 : index
    %2 = vector.load %arg7[%c0_2, %c0_3] : memref<1x32xf32, #tpu.memory_space<vmem>>, vector<1x32xf32>
    %c0_4 = arith.constant 0 : index
    %c0_5 = arith.constant 0 : index
    %3 = vector.load %arg8[%c0_4, %c0_5] : memref<1x32xf32, #tpu.memory_space<vmem>>, vector<1x32xf32>
    %cst = arith.constant dense<0.000000e+00> : vector<8xf32>
    %4 = vector.multi_reduction <add>, %1, %cst [1] : vector<8x32xf32> to vector<8xf32>
    %5 = vector.shape_cast %4 : vector<8xf32> to vector<8x1xf32>
    %cst_6 = arith.constant 3.200000e+01 : f32
    %6 = vector.broadcast %cst_6 : f32 to vector<8x1xf32>
    %7 = arith.divf %5, %6 : vector<8x1xf32>
    %8 = vector.broadcast %7 : vector<8x1xf32> to vector<8x32xf32>
    %9 = arith.subf %1, %8 : vector<8x32xf32>
    %10 = arith.mulf %9, %9 : vector<8x32xf32>
    %cst_7 = arith.constant dense<0.000000e+00> : vector<8xf32>
    %11 = vector.multi_reduction <add>, %10, %cst_7 [1] : vector<8x32xf32> to vector<8xf32>
    %12 = vector.shape_cast %11 : vector<8xf32> to vector<8x1xf32>
    %cst_8 = arith.constant 0.0322580636 : f32
    %13 = vector.broadcast %cst_8 : f32 to vector<8x1xf32>
    %14 = arith.mulf %12, %13 : vector<8x1xf32>
    %15 = vector.broadcast %7 : vector<8x1xf32> to vector<8x32xf32>
    %16 = arith.subf %1, %15 : vector<8x32xf32>
    %17 = vector.broadcast %2 : vector<1x32xf32> to vector<8x32xf32>
    %18 = arith.mulf %17, %16 : vector<8x32xf32>
    %19 = math.sqrt %14 : vector<8x1xf32>
    %cst_9 = arith.constant 9.99999997E-7 : f32
    %20 = vector.broadcast %cst_9 : f32 to vector<8x1xf32>
    %21 = arith.addf %19, %20 : vector<8x1xf32>
    %22 = vector.broadcast %21 : vector<8x1xf32> to vector<8x32xf32>
    %23 = arith.divf %18, %22 : vector<8x32xf32>
    %24 = vector.broadcast %3 : vector<1x32xf32> to vector<8x32xf32>
    %25 = arith.addf %23, %24 : vector<8x32xf32>
    %c0_10 = arith.constant 0 : index
    %c0_11 = arith.constant 0 : index
    %26 = vector.load %arg3[%c0_10, %c0_11] : memref<32x96xf32, #tpu.memory_space<vmem>>, vector<32x96xf32>
    %cst_12 = arith.constant dense<0.000000e+00> : vector<8x96xf32>
    %27 = tpu.matmul %25, %26, %cst_12 {dimension_numbers = #tpu.dot_dimension_numbers<[1], [0], [0], [1], [0, 0, 1, 1], [], []>} : vector<8x32xf32>, vector<32x96xf32>, vector<8x96xf32> -> vector<8x96xf32>
    %c0_13 = arith.constant 0 : index
    %c0_14 = arith.constant 0 : index
    %28 = vector.load %arg4[%c0_13, %c0_14] : memref<1x96xf32, #tpu.memory_space<vmem>>, vector<1x96xf32>
    %29 = vector.broadcast %28 : vector<1x96xf32> to vector<8x96xf32>
    %30 = arith.addf %27, %29 : vector<8x96xf32>
    %31 = vector.extract_strided_slice %30 {offsets = [0, 0], sizes = [8, 32], strides = [1, 1]} : vector<8x96xf32> to vector<8x32xf32>
    %cst_15 = arith.constant 0.176776692 : f32
    %32 = vector.broadcast %cst_15 : f32 to vector<8x32xf32>
    %33 = arith.mulf %31, %32 : vector<8x32xf32>
    %34 = vector.extract_strided_slice %30 {offsets = [0, 32], sizes = [8, 32], strides = [1, 1]} : vector<8x96xf32> to vector<8x32xf32>
    %35 = vector.extract_strided_slice %30 {offsets = [0, 64], sizes = [8, 32], strides = [1, 1]} : vector<8x96xf32> to vector<8x32xf32>
    %c8_i32 = arith.constant 8 : i32
    %36 = arith.muli %arg1, %c8_i32 : i32
    %37 = tpu.assume_multiple %36, 8 : i32
    %38 = arith.index_cast %37 : i32 to index
    %c0_16 = arith.constant 0 : index
    %39 = vector.load %arg16[%38, %c0_16] : memref<32x32xf32, #tpu.memory_space<vmem>>, vector<8x32xf32>
    tpu.vector_store %arg16[%38, %c0_16], %34 {strides = array<i32>} : memref<32x32xf32, #tpu.memory_space<vmem>>, vector<8x32xf32>,
    %40 = arith.index_cast %37 : i32 to index
    %c0_17 = arith.constant 0 : index
    %41 = vector.load %arg17[%40, %c0_17] : memref<32x32xf32, #tpu.memory_space<vmem>>, vector<8x32xf32>
    tpu.vector_store %arg17[%40, %c0_17], %35 {strides = array<i32>} : memref<32x32xf32, #tpu.memory_space<vmem>>, vector<8x32xf32>,
    %cst_18 = arith.constant 0xFF800000 : f32
    %42 = vector.broadcast %cst_18 : f32 to vector<8x1xf32>
    %c0_19 = arith.constant 0 : index
    %c0_20 = arith.constant 0 : index
    %43 = vector.load %arg18[%c0_19, %c0_20] : memref<8x1xf32, #tpu.memory_space<vmem>>, vector<8x1xf32>
    tpu.vector_store %arg18[%c0_19, %c0_20], %42 {strides = array<i32>} : memref<8x1xf32, #tpu.memory_space<vmem>>, vector<8x1xf32>,
    %cst_21 = arith.constant 0.000000e+00 : f32
    %44 = vector.broadcast %cst_21 : f32 to vector<8x1xf32>
    %c0_22 = arith.constant 0 : index
    %c0_23 = arith.constant 0 : index
    %45 = vector.load %arg19[%c0_22, %c0_23] : memref<8x1xf32, #tpu.memory_space<vmem>>, vector<8x1xf32>
    tpu.vector_store %arg19[%c0_22, %c0_23], %44 {strides = array<i32>} : memref<8x1xf32, #tpu.memory_space<vmem>>, vector<8x1xf32>,
    %cst_24 = arith.constant 0.000000e+00 : f32
    %46 = vector.broadcast %cst_24 : f32 to vector<8x32xf32>
    %c0_25 = arith.constant 0 : index
    %c0_26 = arith.constant 0 : index
    %47 = vector.load %arg20[%c0_25, %c0_26] : memref<8x32xf32, #tpu.memory_space<vmem>>, vector<8x32xf32>
    tpu.vector_store %arg20[%c0_25, %c0_26], %46 {strides = array<i32>} : memref<8x32xf32, #tpu.memory_space<vmem>>, vector<8x32xf32>,
    %c0_i32 = arith.constant 0 : i32
    %48 = arith.subi %arg1, %c0_i32 : i32
    %c1_i32 = arith.constant 1 : i32
    %c1_i32_27 = arith.constant 1 : i32
    %49 = arith.subi %c1_i32, %c1_i32_27 : i32
    %50 = arith.addi %48, %49 : i32
    %c1_i32_28 = arith.constant 1 : i32
    %51 = arith.divsi %50, %c1_i32_28 : i32
    %c1_i32_29 = arith.constant 1 : i32
    %c0_i32_30 = arith.constant 0 : i32
    %c0_i32_31 = arith.constant 0 : i32
    %52 = arith.subi %51, %c0_i32_31 : i32
    %53 = arith.addi %c0_i32_31, %52 : i32
    %c1_i32_32 = arith.constant 1 : i32
    scf.for %arg21 = %c0_i32_31 to %53 step %c1_i32_32  : i32 {
      %132 = arith.muli %arg21, %c1_i32_29 : i32
      %133 = arith.addi %c0_i32_30, %132 : i32
      %c8_i32_82 = arith.constant 8 : i32
      %134 = arith.muli %133, %c8_i32_82 : i32
      %135 = tpu.assume_multiple %134, 8 : i32
      %136 = arith.index_cast %135 : i32 to index
      %c0_83 = arith.constant 0 : index
      %137 = vector.load %arg16[%136, %c0_83] : memref<32x32xf32, #tpu.memory_space<vmem>>, vector<8x32xf32>
      %138 = arith.index_cast %135 : i32 to index
      %c0_84 = arith.constant 0 : index
      %139 = vector.load %arg17[%138, %c0_84] : memref<32x32xf32, #tpu.memory_space<vmem>>, vector<8x32xf32>
      %cst_85 = arith.constant dense<0.000000e+00> : vector<8x8xf32>
      %140 = tpu.matmul %33, %137, %cst_85 {dimension_numbers = #tpu.dot_dimension_numbers<[1], [1], [0], [0], [0, 0, 1, 0], [], []>} : vector<8x32xf32>, vector<8x32xf32>, vector<8x8xf32> -> vector<8x8xf32>
      %c0_86 = arith.constant 0 : index
      %c0_87 = arith.constant 0 : index
      %141 = vector.load %arg18[%c0_86, %c0_87] : memref<8x1xf32, #tpu.memory_space<vmem>>, vector<8x1xf32>
      %cst_88 = arith.constant dense<0xFF800000> : vector<8xf32>
      %142 = vector.multi_reduction <maximumf>, %140, %cst_88 [1] : vector<8x8xf32> to vector<8xf32>
      %143 = vector.shape_cast %142 : vector<8xf32> to vector<8x1xf32>
      %144 = arith.maximumf %141, %143 : vector<8x1xf32>
      %145 = arith.subf %141, %144 : vector<8x1xf32>
      %146 = math.exp %145 : vector<8x1xf32>
      %147 = vector.broadcast %144 : vector<8x1xf32> to vector<8x8xf32>
      %148 = arith.subf %140, %147 : vector<8x8xf32>
      %149 = math.exp %148 : vector<8x8xf32>
      %c0_89 = arith.constant 0 : index
      %c0_90 = arith.constant 0 : index
      %150 = vector.load %arg19[%c0_89, %c0_90] : memref<8x1xf32, #tpu.memory_space<vmem>>, vector<8x1xf32>
      %151 = arith.mulf %146, %150 : vector<8x1xf32>
      %cst_91 = arith.constant dense<0.000000e+00> : vector<8xf32>
      %152 = vector.multi_reduction <add>, %149, %cst_91 [1] : vector<8x8xf32> to vector<8xf32>
      %153 = vector.shape_cast %152 : vector<8xf32> to vector<8x1xf32>
      %154 = arith.addf %151, %153 : vector<8x1xf32>
      %c0_92 = arith.constant 0 : index
      %c0_93 = arith.constant 0 : index
      %155 = vector.load %arg19[%c0_92, %c0_93] : memref<8x1xf32, #tpu.memory_space<vmem>>, vector<8x1xf32>
      tpu.vector_store %arg19[%c0_92, %c0_93], %154 {strides = array<i32>} : memref<8x1xf32, #tpu.memory_space<vmem>>, vector<8x1xf32>,
      %c0_94 = arith.constant 0 : index
      %c0_95 = arith.constant 0 : index
      %156 = vector.load %arg20[%c0_94, %c0_95] : memref<8x32xf32, #tpu.memory_space<vmem>>, vector<8x32xf32>
      %157 = vector.broadcast %146 : vector<8x1xf32> to vector<8x32xf32>
      %158 = arith.mulf %157, %156 : vector<8x32xf32>
      %cst_96 = arith.constant dense<0.000000e+00> : vector<8x32xf32>
      %159 = tpu.matmul %149, %139, %cst_96 {dimension_numbers = #tpu.dot_dimension_numbers<[1], [0], [0], [1], [0, 0, 1, 1], [], []>} : vector<8x8xf32>, vector<8x32xf32>, vector<8x32xf32> -> vector<8x32xf32>
      %160 = arith.addf %158, %159 : vector<8x32xf32>
      %c0_97 = arith.constant 0 : index
      %c0_98 = arith.constant 0 : index
      %161 = vector.load %arg20[%c0_97, %c0_98] : memref<8x32xf32, #tpu.memory_space<vmem>>, vector<8x32xf32>
      tpu.vector_store %arg20[%c0_97, %c0_98], %160 {strides = array<i32>} : memref<8x32xf32, #tpu.memory_space<vmem>>, vector<8x32xf32>,
      %c0_99 = arith.constant 0 : index
      %c0_100 = arith.constant 0 : index
      %162 = vector.load %arg18[%c0_99, %c0_100] : memref<8x1xf32, #tpu.memory_space<vmem>>, vector<8x1xf32>
      tpu.vector_store %arg18[%c0_99, %c0_100], %144 {strides = array<i32>} : memref<8x1xf32, #tpu.memory_space<vmem>>, vector<8x1xf32>,
    }
    %54 = tpu.iota {dimensions = array<i32: 0>} : vector<8x8xi32>
    %55 = tpu.iota {dimensions = array<i32: 1>} : vector<8x8xi32>
    %56 = arith.cmpi sgt, %55, %54 : vector<8x8xi32>
    %cst_33 = arith.constant dense<0.000000e+00> : vector<8x8xf32>
    %57 = tpu.matmul %33, %34, %cst_33 {dimension_numbers = #tpu.dot_dimension_numbers<[1], [1], [0], [0], [0, 0, 1, 0], [], []>} : vector<8x32xf32>, vector<8x32xf32>, vector<8x8xf32> -> vector<8x8xf32>
    %cst_34 = arith.constant 0xFF800000 : f32
    %58 = vector.broadcast %cst_34 : f32 to vector<8x8xf32>
    %59 = arith.select %56, %58, %57 : vector<8x8xi1>, vector<8x8xf32>
    %c0_35 = arith.constant 0 : index
    %c0_36 = arith.constant 0 : index
    %60 = vector.load %arg18[%c0_35, %c0_36] : memref<8x1xf32, #tpu.memory_space<vmem>>, vector<8x1xf32>
    %cst_37 = arith.constant dense<0xFF800000> : vector<8xf32>
    %61 = vector.multi_reduction <maximumf>, %59, %cst_37 [1] : vector<8x8xf32> to vector<8xf32>
    %62 = vector.shape_cast %61 : vector<8xf32> to vector<8x1xf32>
    %63 = arith.maximumf %60, %62 : vector<8x1xf32>
    %64 = arith.subf %60, %63 : vector<8x1xf32>
    %65 = math.exp %64 : vector<8x1xf32>
    %66 = vector.broadcast %63 : vector<8x1xf32> to vector<8x8xf32>
    %67 = arith.subf %59, %66 : vector<8x8xf32>
    %68 = math.exp %67 : vector<8x8xf32>
    %c0_38 = arith.constant 0 : index
    %c0_39 = arith.constant 0 : index
    %69 = vector.load %arg19[%c0_38, %c0_39] : memref<8x1xf32, #tpu.memory_space<vmem>>, vector<8x1xf32>
    %70 = arith.mulf %65, %69 : vector<8x1xf32>
    %cst_40 = arith.constant dense<0.000000e+00> : vector<8xf32>
    %71 = vector.multi_reduction <add>, %68, %cst_40 [1] : vector<8x8xf32> to vector<8xf32>
    %72 = vector.shape_cast %71 : vector<8xf32> to vector<8x1xf32>
    %73 = arith.addf %70, %72 : vector<8x1xf32>
    %c0_41 = arith.constant 0 : index
    %c0_42 = arith.constant 0 : index
    %74 = vector.load %arg19[%c0_41, %c0_42] : memref<8x1xf32, #tpu.memory_space<vmem>>, vector<8x1xf32>
    tpu.vector_store %arg19[%c0_41, %c0_42], %73 {strides = array<i32>} : memref<8x1xf32, #tpu.memory_space<vmem>>, vector<8x1xf32>,
    %c0_43 = arith.constant 0 : index
    %c0_44 = arith.constant 0 : index
    %75 = vector.load %arg20[%c0_43, %c0_44] : memref<8x32xf32, #tpu.memory_space<vmem>>, vector<8x32xf32>
    %76 = vector.broadcast %65 : vector<8x1xf32> to vector<8x32xf32>
    %77 = arith.mulf %76, %75 : vector<8x32xf32>
    %cst_45 = arith.constant dense<0.000000e+00> : vector<8x32xf32>
    %78 = tpu.matmul %68, %35, %cst_45 {dimension_numbers = #tpu.dot_dimension_numbers<[1], [0], [0], [1], [0, 0, 1, 1], [], []>} : vector<8x8xf32>, vector<8x32xf32>, vector<8x32xf32> -> vector<8x32xf32>
    %79 = arith.addf %77, %78 : vector<8x32xf32>
    %c0_46 = arith.constant 0 : index
    %c0_47 = arith.constant 0 : index
    %80 = vector.load %arg20[%c0_46, %c0_47] : memref<8x32xf32, #tpu.memory_space<vmem>>, vector<8x32xf32>
    tpu.vector_store %arg20[%c0_46, %c0_47], %79 {strides = array<i32>} : memref<8x32xf32, #tpu.memory_space<vmem>>, vector<8x32xf32>,
    %c0_48 = arith.constant 0 : index
    %c0_49 = arith.constant 0 : index
    %81 = vector.load %arg18[%c0_48, %c0_49] : memref<8x1xf32, #tpu.memory_space<vmem>>, vector<8x1xf32>
    tpu.vector_store %arg18[%c0_48, %c0_49], %63 {strides = array<i32>} : memref<8x1xf32, #tpu.memory_space<vmem>>, vector<8x1xf32>,
    %c0_50 = arith.constant 0 : index
    %c0_51 = arith.constant 0 : index
    %82 = vector.load %arg20[%c0_50, %c0_51] : memref<8x32xf32, #tpu.memory_space<vmem>>, vector<8x32xf32>
    %c0_52 = arith.constant 0 : index
    %c0_53 = arith.constant 0 : index
    %83 = vector.load %arg19[%c0_52, %c0_53] : memref<8x1xf32, #tpu.memory_space<vmem>>, vector<8x1xf32>
    %84 = vector.broadcast %83 : vector<8x1xf32> to vector<8x32xf32>
    %85 = arith.divf %82, %84 : vector<8x32xf32>
    %c0_54 = arith.constant 0 : index
    %c0_55 = arith.constant 0 : index
    %86 = vector.load %arg5[%c0_54, %c0_55] : memref<32x32xf32, #tpu.memory_space<vmem>>, vector<32x32xf32>
    %cst_56 = arith.constant dense<0.000000e+00> : vector<8x32xf32>
    %87 = tpu.matmul %85, %86, %cst_56 {dimension_numbers = #tpu.dot_dimension_numbers<[1], [0], [0], [1], [0, 0, 1, 1], [], []>} : vector<8x32xf32>, vector<32x32xf32>, vector<8x32xf32> -> vector<8x32xf32>
    %c0_57 = arith.constant 0 : index
    %c0_58 = arith.constant 0 : index
    %88 = vector.load %arg6[%c0_57, %c0_58] : memref<1x32xf32, #tpu.memory_space<vmem>>, vector<1x32xf32>
    %89 = vector.broadcast %88 : vector<1x32xf32> to vector<8x32xf32>
    %90 = arith.addf %87, %89 : vector<8x32xf32>
    %91 = arith.addf %90, %1 : vector<8x32xf32>
    %c0_59 = arith.constant 0 : index
    %c0_60 = arith.constant 0 : index
    %92 = vector.load %arg9[%c0_59, %c0_60] : memref<1x32xf32, #tpu.memory_space<vmem>>, vector<1x32xf32>
    %c0_61 = arith.constant 0 : index
    %c0_62 = arith.constant 0 : index
    %93 = vector.load %arg10[%c0_61, %c0_62] : memref<1x32xf32, #tpu.memory_space<vmem>>, vector<1x32xf32>
    %cst_63 = arith.constant dense<0.000000e+00> : vector<8xf32>
    %94 = vector.multi_reduction <add>, %91, %cst_63 [1] : vector<8x32xf32> to vector<8xf32>
    %95 = vector.shape_cast %94 : vector<8xf32> to vector<8x1xf32>
    %cst_64 = arith.constant 3.200000e+01 : f32
    %96 = vector.broadcast %cst_64 : f32 to vector<8x1xf32>
    %97 = arith.divf %95, %96 : vector<8x1xf32>
    %98 = vector.broadcast %97 : vector<8x1xf32> to vector<8x32xf32>
    %99 = arith.subf %91, %98 : vector<8x32xf32>
    %100 = arith.mulf %99, %99 : vector<8x32xf32>
    %cst_65 = arith.constant dense<0.000000e+00> : vector<8xf32>
    %101 = vector.multi_reduction <add>, %100, %cst_65 [1] : vector<8x32xf32> to vector<8xf32>
    %102 = vector.shape_cast %101 : vector<8xf32> to vector<8x1xf32>
    %cst_66 = arith.constant 0.0322580636 : f32
    %103 = vector.broadcast %cst_66 : f32 to vector<8x1xf32>
    %104 = arith.mulf %102, %103 : vector<8x1xf32>
    %105 = vector.broadcast %97 : vector<8x1xf32> to vector<8x32xf32>
    %106 = arith.subf %91, %105 : vector<8x32xf32>
    %107 = vector.broadcast %92 : vector<1x32xf32> to vector<8x32xf32>
    %108 = arith.mulf %107, %106 : vector<8x32xf32>
    %109 = math.sqrt %104 : vector<8x1xf32>
    %cst_67 = arith.constant 9.99999997E-7 : f32
    %110 = vector.broadcast %cst_67 : f32 to vector<8x1xf32>
    %111 = arith.addf %109, %110 : vector<8x1xf32>
    %112 = vector.broadcast %111 : vector<8x1xf32> to vector<8x32xf32>
    %113 = arith.divf %108, %112 : vector<8x32xf32>
    %114 = vector.broadcast %93 : vector<1x32xf32> to vector<8x32xf32>
    %115 = arith.addf %113, %114 : vector<8x32xf32>
    %c0_68 = arith.constant 0 : index
    %c0_69 = arith.constant 0 : index
    %116 = vector.load %arg11[%c0_68, %c0_69] : memref<32x32xf32, #tpu.memory_space<vmem>>, vector<32x32xf32>
    %cst_70 = arith.constant dense<0.000000e+00> : vector<8x32xf32>
    %117 = tpu.matmul %115, %116, %cst_70 {dimension_numbers = #tpu.dot_dimension_numbers<[1], [0], [0], [1], [0, 0, 1, 1], [], []>} : vector<8x32xf32>, vector<32x32xf32>, vector<8x32xf32> -> vector<8x32xf32>
    %c0_71 = arith.constant 0 : index
    %c0_72 = arith.constant 0 : index
    %118 = vector.load %arg12[%c0_71, %c0_72] : memref<1x32xf32, #tpu.memory_space<vmem>>, vector<1x32xf32>
    %119 = vector.broadcast %118 : vector<1x32xf32> to vector<8x32xf32>
    %120 = arith.addf %117, %119 : vector<8x32xf32>
    %cst_73 = arith.constant 0.000000e+00 : f32
    %121 = vector.broadcast %cst_73 : f32 to vector<8x32xf32>
    %122 = arith.maximumf %120, %121 : vector<8x32xf32>
    %c0_74 = arith.constant 0 : index
    %c0_75 = arith.constant 0 : index
    %123 = vector.load %arg13[%c0_74, %c0_75] : memref<32x32xf32, #tpu.memory_space<vmem>>, vector<32x32xf32>
    %cst_76 = arith.constant dense<0.000000e+00> : vector<8x32xf32>
    %124 = tpu.matmul %122, %123, %cst_76 {dimension_numbers = #tpu.dot_dimension_numbers<[1], [0], [0], [1], [0, 0, 1, 1], [], []>} : vector<8x32xf32>, vector<32x32xf32>, vector<8x32xf32> -> vector<8x32xf32>
    %c0_77 = arith.constant 0 : index
    %c0_78 = arith.constant 0 : index
    %125 = vector.load %arg14[%c0_77, %c0_78] : memref<1x32xf32, #tpu.memory_space<vmem>>, vector<1x32xf32>
    %126 = vector.broadcast %125 : vector<1x32xf32> to vector<8x32xf32>
    %127 = arith.addf %124, %126 : vector<8x32xf32>
    %128 = arith.addf %91, %127 : vector<8x32xf32>
    %c0_79 = arith.constant 0 : index
    %c0_80 = arith.constant 0 : index
    %c0_81 = arith.constant 0 : index
    %129 = vector.load %arg15[%c0_79, %c0_80, %c0_81] : memref<1x8x32xf32, #tpu.memory_space<vmem>>, vector<1x8x32xf32>
    %130 = vector.shape_cast %129 : vector<1x8x32xf32> to vector<8x32xf32>
    %131 = vector.shape_cast %128 : vector<8x32xf32> to vector<1x8x32xf32>
    tpu.vector_store %arg15[%c0_79, %c0_80, %c0_81], %131 {strides = array<i32>} : memref<1x8x32xf32, #tpu.memory_space<vmem>>, vector<1x8x32xf32>,
    return
  }
  func.func @transform_0(%arg0: i32, %arg1: i32) -> (i32, i32, i32) {
    %c0_i32 = arith.constant 0 : i32
    %c0_i32_0 = arith.constant 0 : i32
    return %arg0, %arg1, %c0_i32 : i32, i32, i32
  }
  func.func @transform_1(%arg0: i32, %arg1: i32) -> (i32, i32) {
    %c0_i32 = arith.constant 0 : i32
    %c0_i32_0 = arith.constant 0 : i32
    %c0_i32_1 = arith.constant 0 : i32
    return %c0_i32, %c0_i32_0 : i32, i32
  }
  func.func @transform_2(%arg0: i32, %arg1: i32) -> (i32, i32) {
    %c0_i32 = arith.constant 0 : i32
    %c0_i32_0 = arith.constant 0 : i32
    %c0_i32_1 = arith.constant 0 : i32
    return %c0_i32, %c0_i32_0 : i32, i32
  }
  func.func @transform_3(%arg0: i32, %arg1: i32) -> (i32, i32) {
    %c0_i32 = arith.constant 0 : i32
    %c0_i32_0 = arith.constant 0 : i32
    %c0_i32_1 = arith.constant 0 : i32
    return %c0_i32, %c0_i32_0 : i32, i32
  }
  func.func @transform_4(%arg0: i32, %arg1: i32) -> (i32, i32) {
    %c0_i32 = arith.constant 0 : i32
    %c0_i32_0 = arith.constant 0 : i32
    %c0_i32_1 = arith.constant 0 : i32
    return %c0_i32, %c0_i32_0 : i32, i32
  }
  func.func @transform_5(%arg0: i32, %arg1: i32) -> (i32, i32) {
    %c0_i32 = arith.constant 0 : i32
    %c0_i32_0 = arith.constant 0 : i32
    %c0_i32_1 = arith.constant 0 : i32
    return %c0_i32, %c0_i32_0 : i32, i32
  }
  func.func @transform_6(%arg0: i32, %arg1: i32) -> (i32, i32) {
    %c0_i32 = arith.constant 0 : i32
    %c0_i32_0 = arith.constant 0 : i32
    %c0_i32_1 = arith.constant 0 : i32
    return %c0_i32, %c0_i32_0 : i32, i32
  }
  func.func @transform_7(%arg0: i32, %arg1: i32) -> (i32, i32) {
    %c0_i32 = arith.constant 0 : i32
    %c0_i32_0 = arith.constant 0 : i32
    %c0_i32_1 = arith.constant 0 : i32
    return %c0_i32, %c0_i32_0 : i32, i32
  }
  func.func @transform_8(%arg0: i32, %arg1: i32) -> (i32, i32) {
    %c0_i32 = arith.constant 0 : i32
    %c0_i32_0 = arith.constant 0 : i32
    %c0_i32_1 = arith.constant 0 : i32
    return %c0_i32, %c0_i32_0 : i32, i32
  }
  func.func @transform_9(%arg0: i32, %arg1: i32) -> (i32, i32) {
    %c0_i32 = arith.constant 0 : i32
    %c0_i32_0 = arith.constant 0 : i32
    %c0_i32_1 = arith.constant 0 : i32
    return %c0_i32, %c0_i32_0 : i32, i32
  }
  func.func @transform_10(%arg0: i32, %arg1: i32) -> (i32, i32) {
    %c0_i32 = arith.constant 0 : i32
    %c0_i32_0 = arith.constant 0 : i32
    %c0_i32_1 = arith.constant 0 : i32
    return %c0_i32, %c0_i32_0 : i32, i32
  }
  func.func @transform_11(%arg0: i32, %arg1: i32) -> (i32, i32) {
    %c0_i32 = arith.constant 0 : i32
    %c0_i32_0 = arith.constant 0 : i32
    %c0_i32_1 = arith.constant 0 : i32
    return %c0_i32, %c0_i32_0 : i32, i32
  }
  func.func @transform_12(%arg0: i32, %arg1: i32) -> (i32, i32) {
    %c0_i32 = arith.constant 0 : i32
    %c0_i32_0 = arith.constant 0 : i32
    %c0_i32_1 = arith.constant 0 : i32
    return %c0_i32, %c0_i32_0 : i32, i32
  }
  func.func @transform_13(%arg0: i32, %arg1: i32) -> (i32, i32, i32) {
    %c0_i32 = arith.constant 0 : i32
    %c0_i32_0 = arith.constant 0 : i32
    return %arg0, %arg1, %c0_i32 : i32, i32, i32
  }
}

module attributes {stable_mosaic.version = 11 : i64} {
  func.func @kernel(%arg0: i32, %arg1: i32, %arg2: memref<1x8x32xf32, #tpu.memory_space<vmem>>, %arg3: memref<32x96xf32, #tpu.memory_space<vmem>>, %arg4: memref<1x96xf32, #tpu.memory_space<vmem>>, %arg5: memref<32x32xf32, #tpu.memory_space<vmem>>, %arg6: memref<1x32xf32, #tpu.memory_space<vmem>>, %arg7: memref<1x32xf32, #tpu.memory_space<vmem>>, %arg8: memref<1x32xf32, #tpu.memory_space<vmem>>, %arg9: memref<1x32xf32, #tpu.memory_space<vmem>>, %arg10: memref<1x32xf32, #tpu.memory_space<vmem>>, %arg11: memref<32x32xf32, #tpu.memory_space<vmem>>, %arg12: memref<1x32xf32, #tpu.memory_space<vmem>>, %arg13: memref<32x32xf32, #tpu.memory_space<vmem>>, %arg14: memref<1x32xf32, #tpu.memory_space<vmem>>, %arg15: memref<1x8x32xf32, #tpu.memory_space<vmem>>, %arg16: memref<32x32xf32, #tpu.memory_space<vmem>>, %arg17: memref<32x32xf32, #tpu.memory_space<vmem>>, %arg18: memref<8x1xf32, #tpu.memory_space<vmem>>, %arg19: memref<8x1xf32, #tpu.memory_space<vmem>>, %arg20: memref<8x32xf32, #tpu.memory_space<vmem>>) attributes {dimension_semantics = [#tpu.dimension_semantics<parallel>, #tpu.dimension_semantics<arbitrary>], iteration_bounds = array<i64: 2, 4>, scalar_prefetch = 0 : i64, scratch_operands = 5 : i64, tpu.core_type = #tpu.core_type<tc>, window_params = [{transform_indices = @transform_0, window_bounds = array<i64: 1, 8, 32>}, {pipeline_mode = #tpu.pipeline_mode<synchronous>, transform_indices = @transform_1, window_bounds = array<i64: 32, 96>}, {pipeline_mode = #tpu.pipeline_mode<synchronous>, transform_indices = @transform_2, window_bounds = array<i64: 1, 96>}, {pipeline_mode = #tpu.pipeline_mode<synchronous>, transform_indices = @transform_3, window_bounds = array<i64: 32, 32>}, {pipeline_mode = #tpu.pipeline_mode<synchronous>, transform_indices = @transform_4, window_bounds = array<i64: 1, 32>}, {pipeline_mode = #tpu.pipeline_mode<synchronous>, transform_indices = @transform_5, window_bounds = array<i64: 1, 32>}, {pipeline_mode = #tpu.pipeline_mode<synchronous>, transform_indices = @transform_6, window_bounds = array<i64: 1, 32>}, {pipeline_mode = #tpu.pipeline_mode<synchronous>, transform_indices = @transform_7, window_bounds = array<i64: 1, 32>}, {pipeline_mode = #tpu.pipeline_mode<synchronous>, transform_indices = @transform_8, window_bounds = array<i64: 1, 32>}, {pipeline_mode = #tpu.pipeline_mode<synchronous>, transform_indices = @transform_9, window_bounds = array<i64: 32, 32>}, {pipeline_mode = #tpu.pipeline_mode<synchronous>, transform_indices = @transform_10, window_bounds = array<i64: 1, 32>}, {pipeline_mode = #tpu.pipeline_mode<synchronous>, transform_indices = @transform_11, window_bounds = array<i64: 32, 32>}, {pipeline_mode = #tpu.pipeline_mode<synchronous>, transform_indices = @transform_12, window_bounds = array<i64: 1, 32>}, {transform_indices = @transform_13, window_bounds = array<i64: 1, 8, 32>}]} {
    %c0 = arith.constant 0 : index
    %c0_0 = arith.constant 0 : index
    %c0_1 = arith.constant 0 : index
    %0 = vector.load %arg2[%c0, %c0_0, %c0_1] : memref<1x8x32xf32, #tpu.memory_space<vmem>>, vector<1x8x32xf32>
    %1 = vector.shape_cast %0 : vector<1x8x32xf32> to vector<8x32xf32>
    %c0_2 = arith.constant 0 : index
    %c0_3 = arith.constant 0 : index
    %2 = vector.load %arg7[%c0_2, %c0_3] : memref<1x32xf32, #tpu.memory_space<vmem>>, vector<1x32xf32>
    %c0_4 = arith.constant 0 : index
    %c0_5 = arith.constant 0 : index
    %3 = vector.load %arg8[%c0_4, %c0_5] : memref<1x32xf32, #tpu.memory_space<vmem>>, vector<1x32xf32>
    %cst = arith.constant dense<0.000000e+00> : vector<8xf32>
    %4 = vector.multi_reduction <add>, %1, %cst [1] : vector<8x32xf32> to vector<8xf32>
    %5 = vector.shape_cast %4 : vector<8xf32> to vector<8x1xf32>
    %cst_6 = arith.constant 3.200000e+01 : f32
    %6 = vector.broadcast %cst_6 : f32 to vector<8x1xf32>
    %7 = arith.divf %5, %6 : vector<8x1xf32>
    %8 = vector.broadcast %7 : vector<8x1xf32> to vector<8x32xf32>
    %9 = arith.subf %1, %8 : vector<8x32xf32>
    %10 = arith.mulf %9, %9 : vector<8x32xf32>
    %cst_7 = arith.constant dense<0.000000e+00> : vector<8xf32>
    %11 = vector.multi_reduction <add>, %10, %cst_7 [1] : vector<8x32xf32> to vector<8xf32>
    %12 = vector.shape_cast %11 : vector<8xf32> to vector<8x1xf32>
    %cst_8 = arith.constant 0.0322580636 : f32
    %13 = vector.broadcast %cst_8 : f32 to vector<8x1xf32>
    %14 = arith.mulf %12, %13 : vector<8x1xf32>
    %15 = vector.broadcast %7 : vector<8x1xf32> to vector<8x32xf32>
    %16 = arith.subf %1, %15 : vector<8x32xf32>
    %17 = vector.broadcast %2 : vector<1x32xf32> to vector<8x32xf32>
    %18 = arith.mulf %17, %16 : vector<8x32xf32>
    %19 = math.sqrt %14 : vector<8x1xf32>
    %cst_9 = arith.constant 9.99999997E-7 : f32
    %20 = vector.broadcast %cst_9 : f32 to vector<8x1xf32>
    %21 = arith.addf %19, %20 : vector<8x1xf32>
    %22 = vector.broadcast %21 : vector<8x1xf32> to vector<8x32xf32>
    %23 = arith.divf %18, %22 : vector<8x32xf32>
    %24 = vector.broadcast %3 : vector<1x32xf32> to vector<8x32xf32>
    %25 = arith.addf %23, %24 : vector<8x32xf32>
    %c0_10 = arith.constant 0 : index
    %c0_11 = arith.constant 0 : index
    %26 = vector.load %arg3[%c0_10, %c0_11] : memref<32x96xf32, #tpu.memory_space<vmem>>, vector<32x96xf32>
    %cst_12 = arith.constant dense<0.000000e+00> : vector<8x96xf32>
    %27 = tpu.matmul %25, %26, %cst_12 {dimension_numbers = #tpu.dot_dimension_numbers<[1], [0], [0], [1], [0, 0, 1, 1], [], []>} : vector<8x32xf32>, vector<32x96xf32>, vector<8x96xf32> -> vector<8x96xf32>
    %c0_13 = arith.constant 0 : index
    %c0_14 = arith.constant 0 : index
    %28 = vector.load %arg4[%c0_13, %c0_14] : memref<1x96xf32, #tpu.memory_space<vmem>>, vector<1x96xf32>
    %29 = vector.broadcast %28 : vector<1x96xf32> to vector<8x96xf32>
    %30 = arith.addf %27, %29 : vector<8x96xf32>
    %31 = vector.extract_strided_slice %30 {offsets = [0, 0], sizes = [8, 32], strides = [1, 1]} : vector<8x96xf32> to vector<8x32xf32>
    %cst_15 = arith.constant 0.176776692 : f32
    %32 = vector.broadcast %cst_15 : f32 to vector<8x32xf32>
    %33 = arith.mulf %31, %32 : vector<8x32xf32>
    %34 = vector.extract_strided_slice %30 {offsets = [0, 32], sizes = [8, 32], strides = [1, 1]} : vector<8x96xf32> to vector<8x32xf32>
    %35 = vector.extract_strided_slice %30 {offsets = [0, 64], sizes = [8, 32], strides = [1, 1]} : vector<8x96xf32> to vector<8x32xf32>
    %c8_i32 = arith.constant 8 : i32
    %36 = arith.muli %arg1, %c8_i32 : i32
    %37 = tpu.assume_multiple %36, 8 : i32
    %38 = arith.index_cast %37 : i32 to index
    %c0_16 = arith.constant 0 : index
    %39 = vector.load %arg16[%38, %c0_16] : memref<32x32xf32, #tpu.memory_space<vmem>>, vector<8x32xf32>
    tpu.vector_store %arg16[%38, %c0_16], %34 {strides = array<i32>} : memref<32x32xf32, #tpu.memory_space<vmem>>, vector<8x32xf32>,
    %40 = arith.index_cast %37 : i32 to index
    %c0_17 = arith.constant 0 : index
    %41 = vector.load %arg17[%40, %c0_17] : memref<32x32xf32, #tpu.memory_space<vmem>>, vector<8x32xf32>
    tpu.vector_store %arg17[%40, %c0_17], %35 {strides = array<i32>} : memref<32x32xf32, #tpu.memory_space<vmem>>, vector<8x32xf32>,
    %cst_18 = arith.constant 0xFF800000 : f32
    %42 = vector.broadcast %cst_18 : f32 to vector<8x1xf32>
    %c0_19 = arith.constant 0 : index
    %c0_20 = arith.constant 0 : index
    %43 = vector.load %arg18[%c0_19, %c0_20] : memref<8x1xf32, #tpu.memory_space<vmem>>, vector<8x1xf32>
    tpu.vector_store %arg18[%c0_19, %c0_20], %42 {strides = array<i32>} : memref<8x1xf32, #tpu.memory_space<vmem>>, vector<8x1xf32>,
    %cst_21 = arith.constant 0.000000e+00 : f32
    %44 = vector.broadcast %cst_21 : f32 to vector<8x1xf32>
    %c0_22 = arith.constant 0 : index
    %c0_23 = arith.constant 0 : index
    %45 = vector.load %arg19[%c0_22, %c0_23] : memref<8x1xf32, #tpu.memory_space<vmem>>, vector<8x1xf32>
    tpu.vector_store %arg19[%c0_22, %c0_23], %44 {strides = array<i32>} : memref<8x1xf32, #tpu.memory_space<vmem>>, vector<8x1xf32>,
    %cst_24 = arith.constant 0.000000e+00 : f32
    %46 = vector.broadcast %cst_24 : f32 to vector<8x32xf32>
    %c0_25 = arith.constant 0 : index
    %c0_26 = arith.constant 0 : index
    %47 = vector.load %arg20[%c0_25, %c0_26] : memref<8x32xf32, #tpu.memory_space<vmem>>, vector<8x32xf32>
    tpu.vector_store %arg20[%c0_25, %c0_26], %46 {strides = array<i32>} : memref<8x32xf32, #tpu.memory_space<vmem>>, vector<8x32xf32>,
    %c0_i32 = arith.constant 0 : i32
    %48 = arith.subi %arg1, %c0_i32 : i32
    %c1_i32 = arith.constant 1 : i32
    %c1_i32_27 = arith.constant 1 : i32
    %49 = arith.subi %c1_i32, %c1_i32_27 : i32
    %50 = arith.addi %48, %49 : i32
    %c1_i32_28 = arith.constant 1 : i32
    %51 = arith.divsi %50, %c1_i32_28 : i32
    %c1_i32_29 = arith.constant 1 : i32
    %c0_i32_30 = arith.constant 0 : i32
    %c0_i32_31 = arith.constant 0 : i32
    %52 = arith.subi %51, %c0_i32_31 : i32
    %53 = arith.addi %c0_i32_31, %52 : i32
    %c1_i32_32 = arith.constant 1 : i32
    scf.for %arg21 = %c0_i32_31 to %53 step %c1_i32_32  : i32 {
      %132 = arith.muli %arg21, %c1_i32_29 : i32
      %133 = arith.addi %c0_i32_30, %132 : i32
      %c8_i32_82 = arith.constant 8 : i32
      %134 = arith.muli %133, %c8_i32_82 : i32
      %135 = tpu.assume_multiple %134, 8 : i32
      %136 = arith.index_cast %135 : i32 to index
      %c0_83 = arith.constant 0 : index
      %137 = vector.load %arg16[%136, %c0_83] : memref<32x32xf32, #tpu.memory_space<vmem>>, vector<8x32xf32>
      %138 = arith.index_cast %135 : i32 to index
      %c0_84 = arith.constant 0 : index
      %139 = vector.load %arg17[%138, %c0_84] : memref<32x32xf32, #tpu.memory_space<vmem>>, vector<8x32xf32>
      %cst_85 = arith.constant dense<0.000000e+00> : vector<8x8xf32>
      %140 = tpu.matmul %33, %137, %cst_85 {dimension_numbers = #tpu.dot_dimension_numbers<[1], [1], [0], [0], [0, 0, 1, 0], [], []>} : vector<8x32xf32>, vector<8x32xf32>, vector<8x8xf32> -> vector<8x8xf32>
      %c0_86 = arith.constant 0 : index
      %c0_87 = arith.constant 0 : index
      %141 = vector.load %arg18[%c0_86, %c0_87] : memref<8x1xf32, #tpu.memory_space<vmem>>, vector<8x1xf32>
      %cst_88 = arith.constant dense<0xFF800000> : vector<8xf32>
      %142 = vector.multi_reduction <maximumf>, %140, %cst_88 [1] : vector<8x8xf32> to vector<8xf32>
      %143 = vector.shape_cast %142 : vector<8xf32> to vector<8x1xf32>
      %144 = arith.maximumf %141, %143 : vector<8x1xf32>
      %145 = arith.subf %141, %144 : vector<8x1xf32>
      %146 = math.exp %145 : vector<8x1xf32>
      %147 = vector.broadcast %144 : vector<8x1xf32> to vector<8x8xf32>
      %148 = arith.subf %140, %147 : vector<8x8xf32>
      %149 = math.exp %148 : vector<8x8xf32>
      %c0_89 = arith.constant 0 : index
      %c0_90 = arith.constant 0 : index
      %150 = vector.load %arg19[%c0_89, %c0_90] : memref<8x1xf32, #tpu.memory_space<vmem>>, vector<8x1xf32>
      %151 = arith.mulf %146, %150 : vector<8x1xf32>
      %cst_91 = arith.constant dense<0.000000e+00> : vector<8xf32>
      %152 = vector.multi_reduction <add>, %149, %cst_91 [1] : vector<8x8xf32> to vector<8xf32>
      %153 = vector.shape_cast %152 : vector<8xf32> to vector<8x1xf32>
      %154 = arith.addf %151, %153 : vector<8x1xf32>
      %c0_92 = arith.constant 0 : index
      %c0_93 = arith.constant 0 : index
      %155 = vector.load %arg19[%c0_92, %c0_93] : memref<8x1xf32, #tpu.memory_space<vmem>>, vector<8x1xf32>
      tpu.vector_store %arg19[%c0_92, %c0_93], %154 {strides = array<i32>} : memref<8x1xf32, #tpu.memory_space<vmem>>, vector<8x1xf32>,
      %c0_94 = arith.constant 0 : index
      %c0_95 = arith.constant 0 : index
      %156 = vector.load %arg20[%c0_94, %c0_95] : memref<8x32xf32, #tpu.memory_space<vmem>>, vector<8x32xf32>
      %157 = vector.broadcast %146 : vector<8x1xf32> to vector<8x32xf32>
      %158 = arith.mulf %157, %156 : vector<8x32xf32>
      %cst_96 = arith.constant dense<0.000000e+00> : vector<8x32xf32>
      %159 = tpu.matmul %149, %139, %cst_96 {dimension_numbers = #tpu.dot_dimension_numbers<[1], [0], [0], [1], [0, 0, 1, 1], [], []>} : vector<8x8xf32>, vector<8x32xf32>, vector<8x32xf32> -> vector<8x32xf32>
      %160 = arith.addf %158, %159 : vector<8x32xf32>
      %c0_97 = arith.constant 0 : index
      %c0_98 = arith.constant 0 : index
      %161 = vector.load %arg20[%c0_97, %c0_98] : memref<8x32xf32, #tpu.memory_space<vmem>>, vector<8x32xf32>
      tpu.vector_store %arg20[%c0_97, %c0_98], %160 {strides = array<i32>} : memref<8x32xf32, #tpu.memory_space<vmem>>, vector<8x32xf32>,
      %c0_99 = arith.constant 0 : index
      %c0_100 = arith.constant 0 : index
      %162 = vector.load %arg18[%c0_99, %c0_100] : memref<8x1xf32, #tpu.memory_space<vmem>>, vector<8x1xf32>
      tpu.vector_store %arg18[%c0_99, %c0_100], %144 {strides = array<i32>} : memref<8x1xf32, #tpu.memory_space<vmem>>, vector<8x1xf32>,
    }
    %54 = tpu.iota {dimensions = array<i32: 0>} : vector<8x8xi32>
    %55 = tpu.iota {dimensions = array<i32: 1>} : vector<8x8xi32>
    %56 = arith.cmpi sgt, %55, %54 : vector<8x8xi32>
    %cst_33 = arith.constant dense<0.000000e+00> : vector<8x8xf32>
    %57 = tpu.matmul %33, %34, %cst_33 {dimension_numbers = #tpu.dot_dimension_numbers<[1], [1], [0], [0], [0, 0, 1, 0], [], []>} : vector<8x32xf32>, vector<8x32xf32>, vector<8x8xf32> -> vector<8x8xf32>
    %cst_34 = arith.constant 0xFF800000 : f32
    %58 = vector.broadcast %cst_34 : f32 to vector<8x8xf32>
    %59 = arith.select %56, %58, %57 : vector<8x8xi1>, vector<8x8xf32>
    %c0_35 = arith.constant 0 : index
    %c0_36 = arith.constant 0 : index
    %60 = vector.load %arg18[%c0_35, %c0_36] : memref<8x1xf32, #tpu.memory_space<vmem>>, vector<8x1xf32>
    %cst_37 = arith.constant dense<0xFF800000> : vector<8xf32>
    %61 = vector.multi_reduction <maximumf>, %59, %cst_37 [1] : vector<8x8xf32> to vector<8xf32>
    %62 = vector.shape_cast %61 : vector<8xf32> to vector<8x1xf32>
    %63 = arith.maximumf %60, %62 : vector<8x1xf32>
    %64 = arith.subf %60, %63 : vector<8x1xf32>
    %65 = math.exp %64 : vector<8x1xf32>
    %66 = vector.broadcast %63 : vector<8x1xf32> to vector<8x8xf32>
    %67 = arith.subf %59, %66 : vector<8x8xf32>
    %68 = math.exp %67 : vector<8x8xf32>
    %c0_38 = arith.constant 0 : index
    %c0_39 = arith.constant 0 : index
    %69 = vector.load %arg19[%c0_38, %c0_39] : memref<8x1xf32, #tpu.memory_space<vmem>>, vector<8x1xf32>
    %70 = arith.mulf %65, %69 : vector<8x1xf32>
    %cst_40 = arith.constant dense<0.000000e+00> : vector<8xf32>
    %71 = vector.multi_reduction <add>, %68, %cst_40 [1] : vector<8x8xf32> to vector<8xf32>
    %72 = vector.shape_cast %71 : vector<8xf32> to vector<8x1xf32>
    %73 = arith.addf %70, %72 : vector<8x1xf32>
    %c0_41 = arith.constant 0 : index
    %c0_42 = arith.constant 0 : index
    %74 = vector.load %arg19[%c0_41, %c0_42] : memref<8x1xf32, #tpu.memory_space<vmem>>, vector<8x1xf32>
    tpu.vector_store %arg19[%c0_41, %c0_42], %73 {strides = array<i32>} : memref<8x1xf32, #tpu.memory_space<vmem>>, vector<8x1xf32>,
    %c0_43 = arith.constant 0 : index
    %c0_44 = arith.constant 0 : index
    %75 = vector.load %arg20[%c0_43, %c0_44] : memref<8x32xf32, #tpu.memory_space<vmem>>, vector<8x32xf32>
    %76 = vector.broadcast %65 : vector<8x1xf32> to vector<8x32xf32>
    %77 = arith.mulf %76, %75 : vector<8x32xf32>
    %cst_45 = arith.constant dense<0.000000e+00> : vector<8x32xf32>
    %78 = tpu.matmul %68, %35, %cst_45 {dimension_numbers = #tpu.dot_dimension_numbers<[1], [0], [0], [1], [0, 0, 1, 1], [], []>} : vector<8x8xf32>, vector<8x32xf32>, vector<8x32xf32> -> vector<8x32xf32>
    %79 = arith.addf %77, %78 : vector<8x32xf32>
    %c0_46 = arith.constant 0 : index
    %c0_47 = arith.constant 0 : index
    %80 = vector.load %arg20[%c0_46, %c0_47] : memref<8x32xf32, #tpu.memory_space<vmem>>, vector<8x32xf32>
    tpu.vector_store %arg20[%c0_46, %c0_47], %79 {strides = array<i32>} : memref<8x32xf32, #tpu.memory_space<vmem>>, vector<8x32xf32>,
    %c0_48 = arith.constant 0 : index
    %c0_49 = arith.constant 0 : index
    %81 = vector.load %arg18[%c0_48, %c0_49] : memref<8x1xf32, #tpu.memory_space<vmem>>, vector<8x1xf32>
    tpu.vector_store %arg18[%c0_48, %c0_49], %63 {strides = array<i32>} : memref<8x1xf32, #tpu.memory_space<vmem>>, vector<8x1xf32>,
    %c0_50 = arith.constant 0 : index
    %c0_51 = arith.constant 0 : index
    %82 = vector.load %arg20[%c0_50, %c0_51] : memref<8x32xf32, #tpu.memory_space<vmem>>, vector<8x32xf32>
    %c0_52 = arith.constant 0 : index
    %c0_53 = arith.constant 0 : index
    %83 = vector.load %arg19[%c0_52, %c0_53] : memref<8x1xf32, #tpu.memory_space<vmem>>, vector<8x1xf32>
    %84 = vector.broadcast %83 : vector<8x1xf32> to vector<8x32xf32>
    %85 = arith.divf %82, %84 : vector<8x32xf32>
    %c0_54 = arith.constant 0 : index
    %c0_55 = arith.constant 0 : index
    %86 = vector.load %arg5[%c0_54, %c0_55] : memref<32x32xf32, #tpu.memory_space<vmem>>, vector<32x32xf32>
    %cst_56 = arith.constant dense<0.000000e+00> : vector<8x32xf32>
    %87 = tpu.matmul %85, %86, %cst_56 {dimension_numbers = #tpu.dot_dimension_numbers<[1], [0], [0], [1], [0, 0, 1, 1], [], []>} : vector<8x32xf32>, vector<32x32xf32>, vector<8x32xf32> -> vector<8x32xf32>
    %c0_57 = arith.constant 0 : index
    %c0_58 = arith.constant 0 : index
    %88 = vector.load %arg6[%c0_57, %c0_58] : memref<1x32xf32, #tpu.memory_space<vmem>>, vector<1x32xf32>
    %89 = vector.broadcast %88 : vector<1x32xf32> to vector<8x32xf32>
    %90 = arith.addf %87, %89 : vector<8x32xf32>
    %91 = arith.addf %90, %1 : vector<8x32xf32>
    %c0_59 = arith.constant 0 : index
    %c0_60 = arith.constant 0 : index
    %92 = vector.load %arg9[%c0_59, %c0_60] : memref<1x32xf32, #tpu.memory_space<vmem>>, vector<1x32xf32>
    %c0_61 = arith.constant 0 : index
    %c0_62 = arith.constant 0 : index
    %93 = vector.load %arg10[%c0_61, %c0_62] : memref<1x32xf32, #tpu.memory_space<vmem>>, vector<1x32xf32>
    %cst_63 = arith.constant dense<0.000000e+00> : vector<8xf32>
    %94 = vector.multi_reduction <add>, %91, %cst_63 [1] : vector<8x32xf32> to vector<8xf32>
    %95 = vector.shape_cast %94 : vector<8xf32> to vector<8x1xf32>
    %cst_64 = arith.constant 3.200000e+01 : f32
    %96 = vector.broadcast %cst_64 : f32 to vector<8x1xf32>
    %97 = arith.divf %95, %96 : vector<8x1xf32>
    %98 = vector.broadcast %97 : vector<8x1xf32> to vector<8x32xf32>
    %99 = arith.subf %91, %98 : vector<8x32xf32>
    %100 = arith.mulf %99, %99 : vector<8x32xf32>
    %cst_65 = arith.constant dense<0.000000e+00> : vector<8xf32>
    %101 = vector.multi_reduction <add>, %100, %cst_65 [1] : vector<8x32xf32> to vector<8xf32>
    %102 = vector.shape_cast %101 : vector<8xf32> to vector<8x1xf32>
    %cst_66 = arith.constant 0.0322580636 : f32
    %103 = vector.broadcast %cst_66 : f32 to vector<8x1xf32>
    %104 = arith.mulf %102, %103 : vector<8x1xf32>
    %105 = vector.broadcast %97 : vector<8x1xf32> to vector<8x32xf32>
    %106 = arith.subf %91, %105 : vector<8x32xf32>
    %107 = vector.broadcast %92 : vector<1x32xf32> to vector<8x32xf32>
    %108 = arith.mulf %107, %106 : vector<8x32xf32>
    %109 = math.sqrt %104 : vector<8x1xf32>
    %cst_67 = arith.constant 9.99999997E-7 : f32
    %110 = vector.broadcast %cst_67 : f32 to vector<8x1xf32>
    %111 = arith.addf %109, %110 : vector<8x1xf32>
    %112 = vector.broadcast %111 : vector<8x1xf32> to vector<8x32xf32>
    %113 = arith.divf %108, %112 : vector<8x32xf32>
    %114 = vector.broadcast %93 : vector<1x32xf32> to vector<8x32xf32>
    %115 = arith.addf %113, %114 : vector<8x32xf32>
    %c0_68 = arith.constant 0 : index
    %c0_69 = arith.constant 0 : index
    %116 = vector.load %arg11[%c0_68, %c0_69] : memref<32x32xf32, #tpu.memory_space<vmem>>, vector<32x32xf32>
    %cst_70 = arith.constant dense<0.000000e+00> : vector<8x32xf32>
    %117 = tpu.matmul %115, %116, %cst_70 {dimension_numbers = #tpu.dot_dimension_numbers<[1], [0], [0], [1], [0, 0, 1, 1], [], []>} : vector<8x32xf32>, vector<32x32xf32>, vector<8x32xf32> -> vector<8x32xf32>
    %c0_71 = arith.constant 0 : index
    %c0_72 = arith.constant 0 : index
    %118 = vector.load %arg12[%c0_71, %c0_72] : memref<1x32xf32, #tpu.memory_space<vmem>>, vector<1x32xf32>
    %119 = vector.broadcast %118 : vector<1x32xf32> to vector<8x32xf32>
    %120 = arith.addf %117, %119 : vector<8x32xf32>
    %cst_73 = arith.constant 0.000000e+00 : f32
    %121 = vector.broadcast %cst_73 : f32 to vector<8x32xf32>
    %122 = arith.maximumf %120, %121 : vector<8x32xf32>
    %c0_74 = arith.constant 0 : index
    %c0_75 = arith.constant 0 : index
    %123 = vector.load %arg13[%c0_74, %c0_75] : memref<32x32xf32, #tpu.memory_space<vmem>>, vector<32x32xf32>
    %cst_76 = arith.constant dense<0.000000e+00> : vector<8x32xf32>
    %124 = tpu.matmul %122, %123, %cst_76 {dimension_numbers = #tpu.dot_dimension_numbers<[1], [0], [0], [1], [0, 0, 1, 1], [], []>} : vector<8x32xf32>, vector<32x32xf32>, vector<8x32xf32> -> vector<8x32xf32>
    %c0_77 = arith.constant 0 : index
    %c0_78 = arith.constant 0 : index
    %125 = vector.load %arg14[%c0_77, %c0_78] : memref<1x32xf32, #tpu.memory_space<vmem>>, vector<1x32xf32>
    %126 = vector.broadcast %125 : vector<1x32xf32> to vector<8x32xf32>
    %127 = arith.addf %124, %126 : vector<8x32xf32>
    %128 = arith.addf %91, %127 : vector<8x32xf32>
    %c0_79 = arith.constant 0 : index
    %c0_80 = arith.constant 0 : index
    %c0_81 = arith.constant 0 : index
    %129 = vector.load %arg15[%c0_79, %c0_80, %c0_81] : memref<1x8x32xf32, #tpu.memory_space<vmem>>, vector<1x8x32xf32>
    %130 = vector.shape_cast %129 : vector<1x8x32xf32> to vector<8x32xf32>
    %131 = vector.shape_cast %128 : vector<8x32xf32> to vector<1x8x32xf32>
    tpu.vector_store %arg15[%c0_79, %c0_80, %c0_81], %131 {strides = array<i32>} : memref<1x8x32xf32, #tpu.memory_space<vmem>>, vector<1x8x32xf32>,
    return
  }
  func.func @transform_0(%arg0: i32, %arg1: i32) -> (i32, i32, i32) {
    %c0_i32 = arith.constant 0 : i32
    %c0_i32_0 = arith.constant 0 : i32
    return %arg0, %arg1, %c0_i32 : i32, i32, i32
  }
  func.func @transform_1(%arg0: i32, %arg1: i32) -> (i32, i32) {
    %c0_i32 = arith.constant 0 : i32
    %c0_i32_0 = arith.constant 0 : i32
    %c0_i32_1 = arith.constant 0 : i32
    return %c0_i32, %c0_i32_0 : i32, i32
  }
  func.func @transform_2(%arg0: i32, %arg1: i32) -> (i32, i32) {
    %c0_i32 = arith.constant 0 : i32
    %c0_i32_0 = arith.constant 0 : i32
    %c0_i32_1 = arith.constant 0 : i32
    return %c0_i32, %c0_i32_0 : i32, i32
  }
  func.func @transform_3(%arg0: i32, %arg1: i32) -> (i32, i32) {
    %c0_i32 = arith.constant 0 : i32
    %c0_i32_0 = arith.constant 0 : i32
    %c0_i32_1 = arith.constant 0 : i32
    return %c0_i32, %c0_i32_0 : i32, i32
  }
  func.func @transform_4(%arg0: i32, %arg1: i32) -> (i32, i32) {
    %c0_i32 = arith.constant 0 : i32
    %c0_i32_0 = arith.constant 0 : i32
    %c0_i32_1 = arith.constant 0 : i32
    return %c0_i32, %c0_i32_0 : i32, i32
  }
  func.func @transform_5(%arg0: i32, %arg1: i32) -> (i32, i32) {
    %c0_i32 = arith.constant 0 : i32
    %c0_i32_0 = arith.constant 0 : i32
    %c0_i32_1 = arith.constant 0 : i32
    return %c0_i32, %c0_i32_0 : i32, i32
  }
  func.func @transform_6(%arg0: i32, %arg1: i32) -> (i32, i32) {
    %c0_i32 = arith.constant 0 : i32
    %c0_i32_0 = arith.constant 0 : i32
    %c0_i32_1 = arith.constant 0 : i32
    return %c0_i32, %c0_i32_0 : i32, i32
  }
  func.func @transform_7(%arg0: i32, %arg1: i32) -> (i32, i32) {
    %c0_i32 = arith.constant 0 : i32
    %c0_i32_0 = arith.constant 0 : i32
    %c0_i32_1 = arith.constant 0 : i32
    return %c0_i32, %c0_i32_0 : i32, i32
  }
  func.func @transform_8(%arg0: i32, %arg1: i32) -> (i32, i32) {
    %c0_i32 = arith.constant 0 : i32
    %c0_i32_0 = arith.constant 0 : i32
    %c0_i32_1 = arith.constant 0 : i32
    return %c0_i32, %c0_i32_0 : i32, i32
  }
  func.func @transform_9(%arg0: i32, %arg1: i32) -> (i32, i32) {
    %c0_i32 = arith.constant 0 : i32
    %c0_i32_0 = arith.constant 0 : i32
    %c0_i32_1 = arith.constant 0 : i32
    return %c0_i32, %c0_i32_0 : i32, i32
  }
  func.func @transform_10(%arg0: i32, %arg1: i32) -> (i32, i32) {
    %c0_i32 = arith.constant 0 : i32
    %c0_i32_0 = arith.constant 0 : i32
    %c0_i32_1 = arith.constant 0 : i32
    return %c0_i32, %c0_i32_0 : i32, i32
  }
  func.func @transform_11(%arg0: i32, %arg1: i32) -> (i32, i32) {
    %c0_i32 = arith.constant 0 : i32
    %c0_i32_0 = arith.constant 0 : i32
    %c0_i32_1 = arith.constant 0 : i32
    return %c0_i32, %c0_i32_0 : i32, i32
  }
  func.func @transform_12(%arg0: i32, %arg1: i32) -> (i32, i32) {
    %c0_i32 = arith.constant 0 : i32
    %c0_i32_0 = arith.constant 0 : i32
    %c0_i32_1 = arith.constant 0 : i32
    return %c0_i32, %c0_i32_0 : i32, i32
  }
  func.func @transform_13(%arg0: i32, %arg1: i32) -> (i32, i32, i32) {
    %c0_i32 = arith.constant 0 : i32
    %c0_i32_0 = arith.constant 0 : i32
    return %arg0, %arg1, %c0_i32 : i32, i32, i32
  }
}

</mosaic_0001>

<llo_original>
// kernel: tpu_custom_call.1
$region0: #{tpu_custom_call.1}
  #allocation0 [shape = 'u32[]', space=smem, size = 0x4, offset = 0x4, fixed_abs, tag = 'smem constant byte address 0x4 - core index']
  #allocation1 [shape = 'u32[144,128]{1,0:T(1,128)}', space=vmem, size = 0x12000, scoped, tag = 'internal scratch']
  #allocation2 [shape = 'f32[32,32]{1,0:T(8,128)}', space=vmem, size = 0x4000, scoped, tag = 'scratch operand']
  #allocation3 [shape = 'f32[32,32]{1,0:T(8,128)}', space=vmem, size = 0x4000, scoped, tag = 'scratch operand']
  #allocation4 [shape = 'f32[8,1]{1,0:T(8,128)}', space=vmem, size = 0x1000, scoped, tag = 'scratch operand']
  #allocation5 [shape = 'f32[8,1]{1,0:T(8,128)}', space=vmem, size = 0x1000, scoped, tag = 'scratch operand']
  #allocation6 [shape = 'f32[8,32]{1,0:T(8,128)}', space=vmem, size = 0x1000, scoped, tag = 'scratch operand']
  %s0 = inlined_call_operand.hbm [shape: f32[2,32,32], index: 0, kind: input, shape index: {}]
  %s1 = inlined_call_operand.hbm [shape: f32[32,96], index: 1, kind: input, shape index: {}]
  %s2 = inlined_call_operand.vmem [shape: f32[1,96], index: 2, kind: input, shape index: {}]
  %s3 = inlined_call_operand.hbm [shape: f32[32,32], index: 3, kind: input, shape index: {}]
  %s4 = inlined_call_operand.vmem [shape: f32[1,32], index: 4, kind: input, shape index: {}]
  %s5 = inlined_call_operand.vmem [shape: f32[1,32], index: 5, kind: input, shape index: {}]
  %s6 = inlined_call_operand.vmem [shape: f32[1,32], index: 6, kind: input, shape index: {}]
  %s7 = inlined_call_operand.vmem [shape: f32[1,32], index: 7, kind: input, shape index: {}]
  %s8 = inlined_call_operand.vmem [shape: f32[1,32], index: 8, kind: input, shape index: {}]
  %s9 = inlined_call_operand.hbm [shape: f32[32,32], index: 9, kind: input, shape index: {}]
  %s10 = inlined_call_operand.vmem [shape: f32[1,32], index: 10, kind: input, shape index: {}]
  %s11 = inlined_call_operand.hbm [shape: f32[32,32], index: 11, kind: input, shape index: {}]
  %s12 = inlined_call_operand.vmem [shape: f32[1,32], index: 12, kind: input, shape index: {}]
  %s13 = inlined_call_operand.hbm [shape: f32[2,32,32], index: 13, kind: output, shape index: {}]
  %s14 = sld [smem:[#allocation0]]
  $region112: #{tpu_custom_call.1} parent=0
    _
  %s16 = ssub.s32 1, %s14
  %s17 = scalar_select 0, %s16, %s14
  $region1: #{tpu_custom_call.1} parent=0
    #allocation7 [shape = 'u8[8192]{0}', space=vmem, size = 0x2000, scoped, tag = 'input window, operand 0']
    #allocation8 [shape = 's32[2]{0}', space=sflag, size = 0x8, scoped, tag = 'scoped memory for tpu_custom_call.1']
    #allocation9 [shape = 's32[2]{0}', space=sflag, size = 0x8, scoped, tag = 'scoped memory for tpu_custom_call.1']
    #allocation10 [shape = 'u8[16384]{0}', space=vmem, size = 0x4000, scoped, tag = 'input window, operand 1, single buffered']
    #allocation11 [shape = 's32[1]{0}', space=sflag, size = 0x4, scoped, tag = 'scoped memory for tpu_custom_call.1']
    #allocation12 [shape = 'u8[16384]{0}', space=vmem, size = 0x4000, scoped, tag = 'input window, operand 3, single buffered']
    #allocation13 [shape = 'u8[16384]{0}', space=vmem, size = 0x4000, scoped, tag = 'input window, operand 9, single buffered']
    #allocation14 [shape = 's32[1]{0}', space=sflag, size = 0x4, scoped, tag = 'scoped memory for tpu_custom_call.1']
    #allocation15 [shape = 'u8[16384]{0}', space=vmem, size = 0x4000, scoped, tag = 'input window, operand 11, single buffered']
    #allocation16 [shape = 'u8[8192]{0}', space=vmem, size = 0x2000, scoped, tag = 'output window, operand 0']
    %18 = vsyncpa [#allocation8], 0
    %s19 = scalar_lea.sflag [#allocation8], 1
    %20 = vsyncpa %s19, 0
    %21 = vsyncpa [#allocation11], 0
    %22 = vsyncpa [#allocation14], 0
    %23 = vsyncpa [#allocation9], 0
    %s24 = scalar_lea.sflag [#allocation9], 1
    %25 = vsyncpa %s24, 0
    loop: start=0, step=1, limit=10
    $region2: #{tpu_custom_call.1} parent=1 // loop_pre_header
      _
    $region3: #{tpu_custom_call.1} parent=1 // loop_header
      %s27 = sphi 0, %s31
      %p28 = scmp.ge.s32.totalorder %s27, 10
      %s34 = sphi 0, %s46
      %s35 = sphi 0, %s42
      %s36 = sphi 0, %s34
      %s37 = sphi 0, %s35
      %s38 = sphi 0, %s36
      %s39 = sphi 0, %s37
      %s51 = sphi 0, %s53
      %s54 = sphi 0, %s51
      %s55 = sphi 0, %s54
      %s71 = sphi 0, %s55
      %s75 = sphi 0, %s75
      %s77 = sphi 0, %s75
      %s78 = sphi 0, %s77
      %s92 = sphi 0, %s78
      %s96 = sphi 0, %s96
      %s98 = sphi 0, %s96
      %s99 = sphi 0, %s98
      %s113 = sphi 0, %s99
      %s117 = sphi 0, %s117
      %s119 = sphi 0, %s117
      %s120 = sphi 0, %s119
      %s134 = sphi 0, %s120
      %s138 = sphi 0, %s138
      %s140 = sphi 0, %s138
      %s141 = sphi 0, %s140
      %s155 = sphi 0, %s141
      %s159 = sphi 0, %s159
      %s161 = sphi 0, %s159
      %s162 = sphi 0, %s161
      %s176 = sphi 0, %s162
      %s180 = sphi 0, %s180
      %s182 = sphi 0, %s180
      %s183 = sphi 0, %s182
      %s197 = sphi 0, %s183
      %s201 = sphi 0, %s201
      %s203 = sphi 0, %s201
      %s204 = sphi 0, %s203
      %s218 = sphi 0, %s204
      %s222 = sphi 0, %s222
      %s224 = sphi 0, %s222
      %s225 = sphi 0, %s224
      %s239 = sphi 0, %s225
      %s243 = sphi 0, %s243
      %s245 = sphi 0, %s243
      %s246 = sphi 0, %s245
      %s260 = sphi 0, %s246
      %s264 = sphi 0, %s264
      %s266 = sphi 0, %s264
      %s267 = sphi 0, %s266
      %s281 = sphi 0, %s267
      %s285 = sphi 0, %s285
      %s287 = sphi 0, %s285
      %s288 = sphi 0, %s287
      %s302 = sphi 0, %s288
      %s306 = sphi 0, %s306
      %s308 = sphi 0, %s306
      %s309 = sphi 0, %s308
      %s323 = sphi 0, %s309
      %s331 = sphi 0, %s333
      %s334 = sphi 0, %s331
      %s335 = sphi 0, %s334
      %s351 = sphi 0, %s335
    $region4: #{tpu_custom_call.1} parent=1 // loop_header_branch
      %30 = sbr.rel (%p28) target = $region8
    $region5: #{tpu_custom_call.1} parent=1 // loop_body
      %s32 = ssub.s32 %s27, 1
      %s33 = ssub.s32 %s27, 2
      %s40 = sadd.s32 1, %s35
      %p41 = scmp.ge.s32.totalorder %s40, 4
      %s42 = scalar_select %p41, 0, %s40
      %s43 = sadd.s32 1, %s34
      %s44 = scalar_select %p41, %s43, %s34
      %p45 = scmp.ge.s32.totalorder %s44, 2
      %s46 = scalar_select %p45, 0, %s44
      %s47 = ssub.s32 %s34, %s46
      %s48 = ssub.s32 %s35, %s42
      %s49 = sor.u32 %s47, %s48
      %p50 = scmp.eq.s32.totalorder %s49, 0
      %s52 = sadd.s32 %s51, 1
      %s53 = scalar_select %p50, %s51, %s52
      %p56 = pneg %p50
      %p57 = scmp.eq.s32.totalorder %s27, 7
      %p58 = por %p56, %p57
      %p59 = scmp.ne.s32.totalorder %s51, %s54
      %p60 = scmp.eq.s32.totalorder %s27, 0
      %p61 = por %p59, %p60
      %p62 = scmp.ne.s32.totalorder %s51, %s54
      %p63 = scmp.eq.s32.totalorder %s32, 7
      %p64 = por %p62, %p63
      %p65 = scmp.ne.s32.totalorder %s54, %s55
      %p66 = scmp.eq.s32.totalorder %s32, 0
      %p67 = por %p65, %p66
      %p68 = scmp.ne.s32.totalorder %s54, %s55
      %p69 = scmp.eq.s32.totalorder %s33, 7
      %p70 = por %p68, %p69
      %p72 = scmp.ne.s32.totalorder %s55, %s71
      %p73 = scmp.eq.s32.totalorder %s33, 0
      %p74 = por %p72, %p73
      %s76 = sadd.s32 %s75, 1
      %p79 = scmp.eq.s32.totalorder %s27, 7
      %p80 = scmp.ne.s32.totalorder %s75, %s77
      %p81 = scmp.eq.s32.totalorder %s27, 0
      %p82 = por %p80, %p81
      %p83 = scmp.ne.s32.totalorder %s75, %s77
      %p84 = scmp.eq.s32.totalorder %s32, 7
      %p85 = por %p83, %p84
      %p86 = scmp.ne.s32.totalorder %s77, %s78
      %p87 = scmp.eq.s32.totalorder %s32, 0
      %p88 = por %p86, %p87
      %p89 = scmp.ne.s32.totalorder %s77, %s78
      %p90 = scmp.eq.s32.totalorder %s33, 7
      %p91 = por %p89, %p90
      %p93 = scmp.ne.s32.totalorder %s78, %s92
      %p94 = scmp.eq.s32.totalorder %s33, 0
      %p95 = por %p93, %p94
      %s97 = sadd.s32 %s96, 1
      %p100 = scmp.eq.s32.totalorder %s27, 7
      %p101 = scmp.ne.s32.totalorder %s96, %s98
      %p102 = scmp.eq.s32.totalorder %s27, 0
      %p103 = por %p101, %p102
      %p104 = scmp.ne.s32.totalorder %s96, %s98
      %p105 = scmp.eq.s32.totalorder %s32, 7
      %p106 = por %p104, %p105
      %p107 = scmp.ne.s32.totalorder %s98, %s99
      %p108 = scmp.eq.s32.totalorder %s32, 0
      %p109 = por %p107, %p108
      %p110 = scmp.ne.s32.totalorder %s98, %s99
      %p111 = scmp.eq.s32.totalorder %s33, 7
      %p112 = por %p110, %p111
      %p114 = scmp.ne.s32.totalorder %s99, %s113
      %p115 = scmp.eq.s32.totalorder %s33, 0
      %p116 = por %p114, %p115
      %s118 = sadd.s32 %s117, 1
      %p121 = scmp.eq.s32.totalorder %s27, 7
      %p122 = scmp.ne.s32.totalorder %s117, %s119
      %p123 = scmp.eq.s32.totalorder %s27, 0
      %p124 = por %p122, %p123
      %p125 = scmp.ne.s32.totalorder %s117, %s119
      %p126 = scmp.eq.s32.totalorder %s32, 7
      %p127 = por %p125, %p126
      %p128 = scmp.ne.s32.totalorder %s119, %s120
      %p129 = scmp.eq.s32.totalorder %s32, 0
      %p130 = por %p128, %p129
      %p131 = scmp.ne.s32.totalorder %s119, %s120
      %p132 = scmp.eq.s32.totalorder %s33, 7
      %p133 = por %p131, %p132
      %p135 = scmp.ne.s32.totalorder %s120, %s134
      %p136 = scmp.eq.s32.totalorder %s33, 0
      %p137 = por %p135, %p136
      %s139 = sadd.s32 %s138, 1
      %p142 = scmp.eq.s32.totalorder %s27, 7
      %p143 = scmp.ne.s32.totalorder %s138, %s140
      %p144 = scmp.eq.s32.totalorder %s27, 0
      %p145 = por %p143, %p144
      %p146 = scmp.ne.s32.totalorder %s138, %s140
      %p147 = scmp.eq.s32.totalorder %s32, 7
      %p148 = por %p146, %p147
      %p149 = scmp.ne.s32.totalorder %s140, %s141
      %p150 = scmp.eq.s32.totalorder %s32, 0
      %p151 = por %p149, %p150
      %p152 = scmp.ne.s32.totalorder %s140, %s141
      %p153 = scmp.eq.s32.totalorder %s33, 7
      %p154 = por %p152, %p153
      %p156 = scmp.ne.s32.totalorder %s141, %s155
      %p157 = scmp.eq.s32.totalorder %s33, 0
      %p158 = por %p156, %p157
      %s160 = sadd.s32 %s159, 1
      %p163 = scmp.eq.s32.totalorder %s27, 7
      %p164 = scmp.ne.s32.totalorder %s159, %s161
      %p165 = scmp.eq.s32.totalorder %s27, 0
      %p166 = por %p164, %p165
      %p167 = scmp.ne.s32.totalorder %s159, %s161
      %p168 = scmp.eq.s32.totalorder %s32, 7
      %p169 = por %p167, %p168
      %p170 = scmp.ne.s32.totalorder %s161, %s162
      %p171 = scmp.eq.s32.totalorder %s32, 0
      %p172 = por %p170, %p171
      %p173 = scmp.ne.s32.totalorder %s161, %s162
      %p174 = scmp.eq.s32.totalorder %s33, 7
      %p175 = por %p173, %p174
      %p177 = scmp.ne.s32.totalorder %s162, %s176
      %p178 = scmp.eq.s32.totalorder %s33, 0
      %p179 = por %p177, %p178
      %s181 = sadd.s32 %s180, 1
      %p184 = scmp.eq.s32.totalorder %s27, 7
      %p185 = scmp.ne.s32.totalorder %s180, %s182
      %p186 = scmp.eq.s32.totalorder %s27, 0
      %p187 = por %p185, %p186
      %p188 = scmp.ne.s32.totalorder %s180, %s182
      %p189 = scmp.eq.s32.totalorder %s32, 7
      %p190 = por %p188, %p189
      %p191 = scmp.ne.s32.totalorder %s182, %s183
      %p192 = scmp.eq.s32.totalorder %s32, 0
      %p193 = por %p191, %p192
      %p194 = scmp.ne.s32.totalorder %s182, %s183
      %p195 = scmp.eq.s32.totalorder %s33, 7
      %p196 = por %p194, %p195
      %p198 = scmp.ne.s32.totalorder %s183, %s197
      %p199 = scmp.eq.s32.totalorder %s33, 0
      %p200 = por %p198, %p199
      %s202 = sadd.s32 %s201, 1
      %p205 = scmp.eq.s32.totalorder %s27, 7
      %p206 = scmp.ne.s32.totalorder %s201, %s203
      %p207 = scmp.eq.s32.totalorder %s27, 0
      %p208 = por %p206, %p207
      %p209 = scmp.ne.s32.totalorder %s201, %s203
      %p210 = scmp.eq.s32.totalorder %s32, 7
      %p211 = por %p209, %p210
      %p212 = scmp.ne.s32.totalorder %s203, %s204
      %p213 = scmp.eq.s32.totalorder %s32, 0
      %p214 = por %p212, %p213
      %p215 = scmp.ne.s32.totalorder %s203, %s204
      %p216 = scmp.eq.s32.totalorder %s33, 7
      %p217 = por %p215, %p216
      %p219 = scmp.ne.s32.totalorder %s204, %s218
      %p220 = scmp.eq.s32.totalorder %s33, 0
      %p221 = por %p219, %p220
      %s223 = sadd.s32 %s222, 1
      %p226 = scmp.eq.s32.totalorder %s27, 7
      %p227 = scmp.ne.s32.totalorder %s222, %s224
      %p228 = scmp.eq.s32.totalorder %s27, 0
      %p229 = por %p227, %p228
      %p230 = scmp.ne.s32.totalorder %s222, %s224
      %p231 = scmp.eq.s32.totalorder %s32, 7
      %p232 = por %p230, %p231
      %p233 = scmp.ne.s32.totalorder %s224, %s225
      %p234 = scmp.eq.s32.totalorder %s32, 0
      %p235 = por %p233, %p234
      %p236 = scmp.ne.s32.totalorder %s224, %s225
      %p237 = scmp.eq.s32.totalorder %s33, 7
      %p238 = por %p236, %p237
      %p240 = scmp.ne.s32.totalorder %s225, %s239
      %p241 = scmp.eq.s32.totalorder %s33, 0
      %p242 = por %p240, %p241
      %s244 = sadd.s32 %s243, 1
      %p247 = scmp.eq.s32.totalorder %s27, 7
      %p248 = scmp.ne.s32.totalorder %s243, %s245
      %p249 = scmp.eq.s32.totalorder %s27, 0
      %p250 = por %p248, %p249
      %p251 = scmp.ne.s32.totalorder %s243, %s245
      %p252 = scmp.eq.s32.totalorder %s32, 7
      %p253 = por %p251, %p252
      %p254 = scmp.ne.s32.totalorder %s245, %s246
      %p255 = scmp.eq.s32.totalorder %s32, 0
      %p256 = por %p254, %p255
      %p257 = scmp.ne.s32.totalorder %s245, %s246
      %p258 = scmp.eq.s32.totalorder %s33, 7
      %p259 = por %p257, %p258
      %p261 = scmp.ne.s32.totalorder %s246, %s260
      %p262 = scmp.eq.s32.totalorder %s33, 0
      %p263 = por %p261, %p262
      %s265 = sadd.s32 %s264, 1
      %p268 = scmp.eq.s32.totalorder %s27, 7
      %p269 = scmp.ne.s32.totalorder %s264, %s266
      %p270 = scmp.eq.s32.totalorder %s27, 0
      %p271 = por %p269, %p270
      %p272 = scmp.ne.s32.totalorder %s264, %s266
      %p273 = scmp.eq.s32.totalorder %s32, 7
      %p274 = por %p272, %p273
      %p275 = scmp.ne.s32.totalorder %s266, %s267
      %p276 = scmp.eq.s32.totalorder %s32, 0
      %p277 = por %p275, %p276
      %p278 = scmp.ne.s32.totalorder %s266, %s267
      %p279 = scmp.eq.s32.totalorder %s33, 7
      %p280 = por %p278, %p279
      %p282 = scmp.ne.s32.totalorder %s267, %s281
      %p283 = scmp.eq.s32.totalorder %s33, 0
      %p284 = por %p282, %p283
      %s286 = sadd.s32 %s285, 1
      %p289 = scmp.eq.s32.totalorder %s27, 7
      %p290 = scmp.ne.s32.totalorder %s285, %s287
      %p291 = scmp.eq.s32.totalorder %s27, 0
      %p292 = por %p290, %p291
      %p293 = scmp.ne.s32.totalorder %s285, %s287
      %p294 = scmp.eq.s32.totalorder %s32, 7
      %p295 = por %p293, %p294
      %p296 = scmp.ne.s32.totalorder %s287, %s288
      %p297 = scmp.eq.s32.totalorder %s32, 0
      %p298 = por %p296, %p297
      %p299 = scmp.ne.s32.totalorder %s287, %s288
      %p300 = scmp.eq.s32.totalorder %s33, 7
      %p301 = por %p299, %p300
      %p303 = scmp.ne.s32.totalorder %s288, %s302
      %p304 = scmp.eq.s32.totalorder %s33, 0
      %p305 = por %p303, %p304
      %s307 = sadd.s32 %s306, 1
      %p310 = scmp.eq.s32.totalorder %s27, 7
      %p311 = scmp.ne.s32.totalorder %s306, %s308
      %p312 = scmp.eq.s32.totalorder %s27, 0
      %p313 = por %p311, %p312
      %p314 = scmp.ne.s32.totalorder %s306, %s308
      %p315 = scmp.eq.s32.totalorder %s32, 7
      %p316 = por %p314, %p315
      %p317 = scmp.ne.s32.totalorder %s308, %s309
      %p318 = scmp.eq.s32.totalorder %s32, 0
      %p319 = por %p317, %p318
      %p320 = scmp.ne.s32.totalorder %s308, %s309
      %p321 = scmp.eq.s32.totalorder %s33, 7
      %p322 = por %p320, %p321
      %p324 = scmp.ne.s32.totalorder %s309, %s323
      %p325 = scmp.eq.s32.totalorder %s33, 0
      %p326 = por %p324, %p325
      %s327 = ssub.s32 %s34, %s46
      %s328 = ssub.s32 %s35, %s42
      %s329 = sor.u32 %s327, %s328
      %p330 = scmp.eq.s32.totalorder %s329, 0
      %s332 = sadd.s32 %s331, 1
      %s333 = scalar_select %p330, %s331, %s332
      %p336 = pneg %p330
      %p337 = scmp.eq.s32.totalorder %s27, 7
      %p338 = por %p336, %p337
      %p339 = scmp.ne.s32.totalorder %s331, %s334
      %p340 = scmp.eq.s32.totalorder %s27, 0
      %p341 = por %p339, %p340
      %p342 = scmp.ne.s32.totalorder %s331, %s334
      %p343 = scmp.eq.s32.totalorder %s32, 7
      %p344 = por %p342, %p343
      %p345 = scmp.ne.s32.totalorder %s334, %s335
      %p346 = scmp.eq.s32.totalorder %s32, 0
      %p347 = por %p345, %p346
      %p348 = scmp.ne.s32.totalorder %s334, %s335
      %p349 = scmp.eq.s32.totalorder %s33, 7
      %p350 = por %p348, %p349
      %p352 = scmp.ne.s32.totalorder %s335, %s351
      %p353 = scmp.eq.s32.totalorder %s33, 0
      %p354 = por %p352, %p353
      %p355 = scmp.le.s32.totalorder 1, %s27
      %p356 = scmp.lt.s32.totalorder %s27, 9
      %p357 = pnand %p355, %p356
      %p358 = pneg %p357
      // Predicated region
      $region9: #{tpu_custom_call.1} parent=5 // pred_check
        _
      $region10: #{tpu_custom_call.1} parent=5 // pred_check_branch
        %360 = sbr.rel (%p357) target = $region12
      $region11: #{tpu_custom_call.1} parent=5 // pred_region
        %s361 = ssub.s32 %s27, 1
        // Predicated region
        $region13: #{tpu_custom_call.1} parent=11 // pred_check
          %p362 = pneg %p88
        $region14: #{tpu_custom_call.1} parent=11 // pred_check_branch
          %364 = sbr.rel (%p362) target = $region16
        $region15: #{tpu_custom_call.1} parent=11 // pred_region
          %s366 = ssub.s32 512, 512
          %367 = vsyncadd [#allocation11], %s366
          %s368 = sshll.u32 [#allocation10], 4
          %s369 = int_to_ptr.vmem [resolvable:$true] %s368
          %374 = dma.hbm_to_vmem [thread:$0]  %s1, 512, %s369, [#allocation11], 128, 128, 8
        $region16: #{tpu_custom_call.1} parent=11 // pred_fallthru
          _
        // Predicated region
        $region17: #{tpu_custom_call.1} parent=11 // pred_check
          %p375 = pneg %p109
        $region18: #{tpu_custom_call.1} parent=11 // pred_check_branch
          %377 = sbr.rel (%p375) target = $region20
        $region19: #{tpu_custom_call.1} parent=11 // pred_region
          _
        $region20: #{tpu_custom_call.1} parent=11 // pred_fallthru
          _
        // Predicated region
        $region21: #{tpu_custom_call.1} parent=11 // pred_check
          %p378 = pneg %p130
        $region22: #{tpu_custom_call.1} parent=11 // pred_check_branch
          %380 = sbr.rel (%p378) target = $region24
        $region23: #{tpu_custom_call.1} parent=11 // pred_region
          %s382 = ssub.s32 512, 512
          %383 = vsyncadd [#allocation11], %s382
          %s384 = sshll.u32 [#allocation12], 4
          %s385 = int_to_ptr.vmem [resolvable:$true] %s384
          %390 = dma.hbm_to_vmem [thread:$0]  %s3, 512, %s385, [#allocation11], 128, 128, 8
        $region24: #{tpu_custom_call.1} parent=11 // pred_fallthru
          _
        // Predicated region
        $region25: #{tpu_custom_call.1} parent=11 // pred_check
          %p391 = pneg %p151
        $region26: #{tpu_custom_call.1} parent=11 // pred_check_branch
          %393 = sbr.rel (%p391) target = $region28
        $region27: #{tpu_custom_call.1} parent=11 // pred_region
          _
        $region28: #{tpu_custom_call.1} parent=11 // pred_fallthru
          _
        // Predicated region
        $region29: #{tpu_custom_call.1} parent=11 // pred_check
          %p394 = pneg %p172
        $region30: #{tpu_custom_call.1} parent=11 // pred_check_branch
          %396 = sbr.rel (%p394) target = $region32
        $region31: #{tpu_custom_call.1} parent=11 // pred_region
          _
        $region32: #{tpu_custom_call.1} parent=11 // pred_fallthru
          _
        // Predicated region
        $region33: #{tpu_custom_call.1} parent=11 // pred_check
          %p397 = pneg %p193
        $region34: #{tpu_custom_call.1} parent=11 // pred_check_branch
          %399 = sbr.rel (%p397) target = $region36
        $region35: #{tpu_custom_call.1} parent=11 // pred_region
          _
        $region36: #{tpu_custom_call.1} parent=11 // pred_fallthru
          _
        // Predicated region
        $region37: #{tpu_custom_call.1} parent=11 // pred_check
          %p400 = pneg %p214
        $region38: #{tpu_custom_call.1} parent=11 // pred_check_branch
          %402 = sbr.rel (%p400) target = $region40
        $region39: #{tpu_custom_call.1} parent=11 // pred_region
          _
        $region40: #{tpu_custom_call.1} parent=11 // pred_fallthru
          _
        // Predicated region
        $region41: #{tpu_custom_call.1} parent=11 // pred_check
          %p403 = pneg %p235
        $region42: #{tpu_custom_call.1} parent=11 // pred_check_branch
          %405 = sbr.rel (%p403) target = $region44
        $region43: #{tpu_custom_call.1} parent=11 // pred_region
          _
        $region44: #{tpu_custom_call.1} parent=11 // pred_fallthru
          _
        // Predicated region
        $region45: #{tpu_custom_call.1} parent=11 // pred_check
          %p406 = pneg %p256
        $region46: #{tpu_custom_call.1} parent=11 // pred_check_branch
          %408 = sbr.rel (%p406) target = $region48
        $region47: #{tpu_custom_call.1} parent=11 // pred_region
          %s410 = ssub.s32 512, 512
          %411 = vsyncadd [#allocation14], %s410
          %s412 = sshll.u32 [#allocation13], 4
          %s413 = int_to_ptr.vmem [resolvable:$true] %s412
          %418 = dma.hbm_to_vmem [thread:$0]  %s9, 512, %s413, [#allocation14], 128, 128, 8
        $region48: #{tpu_custom_call.1} parent=11 // pred_fallthru
          _
        // Predicated region
        $region49: #{tpu_custom_call.1} parent=11 // pred_check
          %p419 = pneg %p277
        $region50: #{tpu_custom_call.1} parent=11 // pred_check_branch
          %421 = sbr.rel (%p419) target = $region52
        $region51: #{tpu_custom_call.1} parent=11 // pred_region
          _
        $region52: #{tpu_custom_call.1} parent=11 // pred_fallthru
          _
        // Predicated region
        $region53: #{tpu_custom_call.1} parent=11 // pred_check
          %p422 = pneg %p298
        $region54: #{tpu_custom_call.1} parent=11 // pred_check_branch
          %424 = sbr.rel (%p422) target = $region56
        $region55: #{tpu_custom_call.1} parent=11 // pred_region
          %s426 = ssub.s32 512, 512
          %427 = vsyncadd [#allocation14], %s426
          %s428 = sshll.u32 [#allocation15], 4
          %s429 = int_to_ptr.vmem [resolvable:$true] %s428
          %434 = dma.hbm_to_vmem [thread:$0]  %s11, 512, %s429, [#allocation14], 128, 128, 8
        $region56: #{tpu_custom_call.1} parent=11 // pred_fallthru
          _
        // Predicated region
        $region57: #{tpu_custom_call.1} parent=11 // pred_check
          %p435 = pneg %p319
        $region58: #{tpu_custom_call.1} parent=11 // pred_check_branch
          %437 = sbr.rel (%p435) target = $region60
        $region59: #{tpu_custom_call.1} parent=11 // pred_region
          _
        $region60: #{tpu_custom_call.1} parent=11 // pred_fallthru
          _
      $region12: #{tpu_custom_call.1} parent=5 // pred_fallthru
        _
      %p438 = scmp.lt.s32.totalorder %s27, 8
      // Predicated region
      $region61: #{tpu_custom_call.1} parent=5 // pred_check
        %p439 = pneg %p438
      $region62: #{tpu_custom_call.1} parent=5 // pred_check_branch
        %441 = sbr.rel (%p439) target = $region64
      $region63: #{tpu_custom_call.1} parent=5 // pred_region
        // Predicated region
        $region65: #{tpu_custom_call.1} parent=63 // pred_check
          %p442 = pneg %p61
        $region66: #{tpu_custom_call.1} parent=63 // pred_check_branch
          %444 = sbr.rel (%p442) target = $region68
        $region67: #{tpu_custom_call.1} parent=63 // pred_region
          %s445 = sand.u32 %s51, 1
          %s446 = scalar_lea.sflag [#allocation8], %s445
          %s447 = sand.u32 %s51, 1
          %s448 = smul.addr %s447, 8
          %s449 = scalar_lea.vmem [#allocation7], %s448
          %s451 = ssub.s32 128, 128
          %452 = vsyncadd %s446, %s451
          %s453 = smul.addr %s34, 4
          %s454 = sadd.s32 %s35, %s453
          %s455 = smul.addr %s454, 128
          %s456 = scalar_lea.hbm %s0, %s455
          %s458 = sshll.u32 %s449, 4
          %s459 = int_to_ptr.vmem [resolvable:$true] %s458
          %461 = dma.hbm_to_vmem [thread:$0]  %s456, 128, %s459, %s446
        $region68: #{tpu_custom_call.1} parent=63 // pred_fallthru
          _
      $region64: #{tpu_custom_call.1} parent=5 // pred_fallthru
        _
      %p462 = scmp.le.s32.totalorder 1, %s27
      %p463 = scmp.lt.s32.totalorder %s27, 9
      %p464 = pnand %p462, %p463
      %p465 = pneg %p464
      // Predicated region
      $region69: #{tpu_custom_call.1} parent=5 // pred_check
        _
      $region70: #{tpu_custom_call.1} parent=5 // pred_check_branch
        %467 = sbr.rel (%p464) target = $region72
      $region71: #{tpu_custom_call.1} parent=5 // pred_region
        %s468 = ssub.s32 %s27, 1
        %s469 = sand.u32 %s54, 1
        %s470 = scalar_lea.sflag [#allocation8], %s469
        %s471 = sand.u32 %s54, 1
        %s472 = smul.addr %s471, 8
        %s473 = scalar_lea.vmem [#allocation7], %s472
        // Predicated region
        $region73: #{tpu_custom_call.1} parent=71 // pred_check
          %p474 = pneg %p67
        $region74: #{tpu_custom_call.1} parent=71 // pred_check_branch
          %476 = sbr.rel (%p474) target = $region76
        $region75: #{tpu_custom_call.1} parent=71 // pred_region
          %477 = dma.done %s470, 128
        $region76: #{tpu_custom_call.1} parent=71 // pred_fallthru
          _
        // Predicated region
        $region77: #{tpu_custom_call.1} parent=71 // pred_check
          %p478 = pneg %p88
        $region78: #{tpu_custom_call.1} parent=71 // pred_check_branch
          %480 = sbr.rel (%p478) target = $region80
        $region79: #{tpu_custom_call.1} parent=71 // pred_region
          %481 = dma.done [#allocation11], 512
        $region80: #{tpu_custom_call.1} parent=71 // pred_fallthru
          _
        // Predicated region
        $region81: #{tpu_custom_call.1} parent=71 // pred_check
          %p482 = pneg %p130
        $region82: #{tpu_custom_call.1} parent=71 // pred_check_branch
          %484 = sbr.rel (%p482) target = $region84
        $region83: #{tpu_custom_call.1} parent=71 // pred_region
          %485 = dma.done [#allocation11], 512
        $region84: #{tpu_custom_call.1} parent=71 // pred_fallthru
          _
        // Predicated region
        $region85: #{tpu_custom_call.1} parent=71 // pred_check
          %p486 = pneg %p256
        $region86: #{tpu_custom_call.1} parent=71 // pred_check_branch
          %488 = sbr.rel (%p486) target = $region88
        $region87: #{tpu_custom_call.1} parent=71 // pred_region
          %489 = dma.done [#allocation14], 512
        $region88: #{tpu_custom_call.1} parent=71 // pred_fallthru
          _
        // Predicated region
        $region89: #{tpu_custom_call.1} parent=71 // pred_check
          %p490 = pneg %p298
        $region90: #{tpu_custom_call.1} parent=71 // pred_check_branch
          %492 = sbr.rel (%p490) target = $region92
        $region91: #{tpu_custom_call.1} parent=71 // pred_region
          %493 = dma.done [#allocation14], 512
        $region92: #{tpu_custom_call.1} parent=71 // pred_fallthru
          _
        %s494 = sand.u32 %s54, 1
        %s495 = scalar_lea.sflag [#allocation8], %s494
        %s496 = sand.u32 %s54, 1
        %s497 = smul.addr %s496, 8
        %s498 = scalar_lea.vmem [#allocation7], %s497
        %p499 = pneg %p67
        %p500 = pneg %p64
        %p501 = pneg %p88
        %p502 = pneg %p85
        %p503 = pneg %p109
        %p504 = pneg %p106
        %p505 = pneg %p130
        %p506 = pneg %p127
        %p507 = pneg %p151
        %p508 = pneg %p148
        %p509 = pneg %p172
        %p510 = pneg %p169
        %p511 = pneg %p193
        %p512 = pneg %p190
        %p513 = pneg %p214
        %p514 = pneg %p211
        %p515 = pneg %p235
        %p516 = pneg %p232
        %p517 = pneg %p256
        %p518 = pneg %p253
        %p519 = pneg %p277
        %p520 = pneg %p274
        %p521 = pneg %p298
        %p522 = pneg %p295
        %p523 = pneg %p319
        %p524 = pneg %p316
        %p525 = pneg %p347
        %p526 = pneg %p344
        %s527 = sand.u32 %s334, 1
        %s528 = scalar_lea.sflag [#allocation9], %s527
        %s529 = sand.u32 %s334, 1
        %s530 = smul.addr %s529, 8
        %s531 = scalar_lea.vmem [#allocation16], %s530
        %v532 = vld [vmem:[%s473] sm:$0xff]
        %v533 = vld [vmem:[%s5] sm:$0x1]
        %v534 = vld [vmem:[%s6] sm:$0x1]
        %vm535 = vcmask 261120
        %v536 = vsel %vm535, %v532, 0.0
        %537 = vadd.xlane.f32.xlu0 %v536
        %v538 = vpop.xlane.xlu0 %537
        %v539 = vrcp.pop 32.0
        %v540 = vmul.f32 %v538, %v539
        %v541 = vsub.f32 %v532, %v540
        %v542 = vmul.f32 %v541, %v541
        %v543 = vsel %vm535, %v542, 0.0
        %544 = vadd.xlane.f32.xlu0 %v543
        %v545 = vpop.xlane.xlu0 %544
        %v546 = vmul.f32 %v545, 0.032258064
        %v548 = vlaneseq
        %v549 = vshrl.u32 %v548, 7
        %v550 = vsub.s32 0, %v549
        %v551 = vrot.slane %v533, %v550
        %v553 = vmul.f32 %v551, %v541
        %v554 = vrsqrt.pop %v546
        %v555 = vmul.f32 %v546, %v554
        %vm556 = vcmp.eq.f32.partialorder %v546, inf
        %v557 = vsel %vm556, %v546, %v555
        %vm558 = vcmp.eq.f32.partialorder %v546, 0.0
        %v559 = vand.u32 %v546, 2147483648
        %v560 = vsel %vm558, %v559, %v557
        %v561 = vadd.f32 %v560, 1e-06
        %v562 = vrcp.pop %v561
        %v563 = vmul.f32 %v553, %v562
        %v565 = vlaneseq
        %v566 = vshrl.u32 %v565, 7
        %v567 = vsub.s32 0, %v566
        %v568 = vrot.slane %v534, %v567
        %v570 = vadd.f32 %v563, %v568
        %v571 = vld [vmem:[#allocation10] sm:$0xff]
        %v572 = vld [vmem:[#allocation10 + $0x8] sm:$0xff]
        %v573 = vld [vmem:[#allocation10 + $0x10] sm:$0xff]
        %v574 = vld [vmem:[#allocation10 + $0x18] sm:$0xff]
        %v575 = vld [vmem:[%s2] sm:$0x1]
        %v577 = vlaneseq
        %v578 = vshrl.u32 %v577, 7
        %v579 = vsub.s32 0, %v578
        %v580 = vrot.slane %v575, %v579
        %v583 = vsel %vm535, %v570, 0
        %585 = vmatprep.subr.mxu0 0.0
        %586 = vmatpush1.msra.mxu0 0.0
        %587 = vmatprep.subr.mxu0 0.0
        %588 = vmatpush1.msra.mxu0 0.0
        %589 = vmatprep.subr.mxu0 0.0
        %590 = vmatpush1.msra.mxu0 0.0
        %591 = vmatprep.subr.mxu0 0.0
        %592 = vmatpush1.msra.mxu0 0.0
        %593 = vmatprep.subr.mxu0 0.0
        %594 = vmatpush1.msra.mxu0 0.0
        %595 = vmatprep.subr.mxu0 0.0
        %596 = vmatpush1.msra.mxu0 0.0
        %597 = vmatprep.subr.mxu0 0.0
        %598 = vmatpush1.msra.mxu0 0.0
        %599 = vmatprep.subr.mxu0 0.0
        %600 = vmatpush1.msra.mxu0 0.0
        %601 = vmatprep.subr.mxu0 0.0
        %602 = vmatpush1.msra.mxu0 0.0
        %603 = vmatprep.subr.mxu0 0.0
        %604 = vmatpush1.msra.mxu0 0.0
        %605 = vmatprep.subr.mxu0 0.0
        %606 = vmatpush1.msra.mxu0 0.0
        %607 = vmatprep.subr.mxu0 0.0
        %608 = vmatpush1.msra.mxu0 0.0
        %609 = vmatprep.subr.mxu0 0.0
        %610 = vmatpush1.msra.mxu0 %v574
        %611 = vmatprep.subr.mxu0 0.0
        %612 = vmatpush1.msra.mxu0 %v573
        %613 = vmatprep.subr.mxu0 0.0
        %614 = vmatpush1.msra.mxu0 %v572
        %615 = vmatprep.subr.mxu0 0.0
        %616 = vmatpush1.msra.mxu0 %v571
        %617 = vmatprep.subr.mxu0 0.0
        %618 = vmatpush2.msra.mxu0 0.0
        %619 = vmatprep.subr.mxu0 0.0
        %620 = vmatpush2.msra.mxu0 0.0
        %621 = vmatprep.subr.mxu0 0.0
        %622 = vmatpush2.msra.mxu0 0.0
        %623 = vmatprep.subr.mxu0 0.0
        %624 = vmatpush2.msra.mxu0 0.0
        %625 = vmatprep.subr.mxu0 0.0
        %626 = vmatpush2.msra.mxu0 0.0
        %627 = vmatprep.subr.mxu0 0.0
        %628 = vmatpush2.msra.mxu0 0.0
        %629 = vmatprep.subr.mxu0 0.0
        %630 = vmatpush2.msra.mxu0 0.0
        %631 = vmatprep.subr.mxu0 0.0
        %632 = vmatpush2.msra.mxu0 0.0
        %633 = vmatprep.subr.mxu0 0.0
        %634 = vmatpush2.msra.mxu0 0.0
        %635 = vmatprep.subr.mxu0 0.0
        %636 = vmatpush2.msra.mxu0 0.0
        %637 = vmatprep.subr.mxu0 0.0
        %638 = vmatpush2.msra.mxu0 0.0
        %639 = vmatprep.subr.mxu0 0.0
        %640 = vmatpush2.msra.mxu0 0.0
        %641 = vmatprep.subr.mxu0 0.0
        %642 = vmatpush2.msra.mxu0 0.0
        %643 = vmatprep.subr.mxu0 0.0
        %644 = vmatpush2.msra.mxu0 0.0
        %645 = vmatprep.subr.mxu0 0.0
        %646 = vmatpush2.msra.mxu0 0.0
        %647 = vmatprep.subr.mxu0 0.0
        %648 = vmatpush2.msra.mxu0 0.0
        %649 = vmatprep.mubr.f32.mxu0 0.0
        %650 = vmatmul.mubr.f32.gmra.mxu0 %v583
        %v651 = vpop.f32.mrf.mxu0
        %v652 = vadd.f32 %v580, %v651
        %v653 = vpop.f32.mrf.mxu0
        %654 = vdwg.mxu0
        %v655 = vmul.f32 %v652, 0.17677669
        %s656 = smul.u32 %s37, 8
        %658 = vrot.lane.b32.xlu0 %v652, 96
        %v659 = vpop.permute.xlu0 %658
        %s661 = scalar_lea.vmem [#allocation2], %s656
        %662 = vst.msk [vmem:[%s661] sm:$0xff] %vm535, %v659
        %663 = vrot.lane.b32.xlu0 %v652, 64
        %v664 = vpop.permute.xlu0 %663
        %s666 = scalar_lea.vmem [#allocation3], %s656
        %667 = vst.msk [vmem:[%s666] sm:$0xff] %vm535, %v664
        %vm668 = vcmask 7168
        %669 = vst.msk [vmem:[#allocation4] sm:$0xff] %vm668, -inf
        %670 = vst.msk [vmem:[#allocation5] sm:$0xff] %vm668, 0.0
        %671 = vst.msk [vmem:[#allocation6] sm:$0xff] %vm535, 0.0
        // While loop
        $region93: #{tpu_custom_call.1} parent=71 // loop_pre_header
          _
        $region94: #{tpu_custom_call.1} parent=71 // loop_header
          %s673 = sphi 0, %s675
          %p674 = scmp.ge.s32.totalorder %s673, %s37
        $region95: #{tpu_custom_call.1} parent=71 // loop_header_branch
          %677 = sbr.rel (%p674) target = $region99
        $region96: #{tpu_custom_call.1} parent=71 // loop_body
          %s678 = smul.u32 %s673, 8
          %s679 = scalar_lea.vmem [#allocation2], %s678
          %v680 = vld [vmem:[%s679] sm:$0xff]
          %s681 = scalar_lea.vmem [#allocation3], %s678
          %v682 = vld [vmem:[%s681] sm:$0xff]
          %v684 = vsel %vm535, %v655, 0
          %v687 = vsel %vm535, %v680, 0
          %689 = vmatprep.subr.mxu0 0.0
          %690 = vmatpush1.xpose.msra.mxu0 0.0
          %691 = vmatprep.subr.mxu0 0.0
          %692 = vmatpush1.xpose.msra.mxu0 0.0
          %693 = vmatprep.subr.mxu0 0.0
          %694 = vmatpush1.xpose.msra.mxu0 0.0
          %695 = vmatprep.subr.mxu0 0.0
          %696 = vmatpush1.xpose.msra.mxu0 0.0
          %697 = vmatprep.subr.mxu0 0.0
          %698 = vmatpush1.xpose.msra.mxu0 0.0
          %699 = vmatprep.subr.mxu0 0.0
          %700 = vmatpush1.xpose.msra.mxu0 0.0
          %701 = vmatprep.subr.mxu0 0.0
          %702 = vmatpush1.xpose.msra.mxu0 0.0
          %703 = vmatprep.subr.mxu0 0.0
          %704 = vmatpush1.xpose.msra.mxu0 0.0
          %705 = vmatprep.subr.mxu0 0.0
          %706 = vmatpush1.xpose.msra.mxu0 0.0
          %707 = vmatprep.subr.mxu0 0.0
          %708 = vmatpush1.xpose.msra.mxu0 0.0
          %709 = vmatprep.subr.mxu0 0.0
          %710 = vmatpush1.xpose.msra.mxu0 0.0
          %711 = vmatprep.subr.mxu0 0.0
          %712 = vmatpush1.xpose.msra.mxu0 0.0
          %713 = vmatprep.subr.mxu0 0.0
          %714 = vmatpush1.xpose.msra.mxu0 0.0
          %715 = vmatprep.subr.mxu0 0.0
          %716 = vmatpush1.xpose.msra.mxu0 0.0
          %717 = vmatprep.subr.mxu0 0.0
          %718 = vmatpush1.xpose.msra.mxu0 0.0
          %719 = vmatprep.subr.mxu0 0.0
          %720 = vmatpush1.xpose.msra.mxu0 %v687
          %721 = vmatprep.subr.mxu0 0.0
          %722 = vmatpush2.xpose.msra.mxu0 0.0
          %723 = vmatprep.subr.mxu0 0.0
          %724 = vmatpush2.xpose.msra.mxu0 0.0
          %725 = vmatprep.subr.mxu0 0.0
          %726 = vmatpush2.xpose.msra.mxu0 0.0
          %727 = vmatprep.subr.mxu0 0.0
          %728 = vmatpush2.xpose.msra.mxu0 0.0
          %729 = vmatprep.subr.mxu0 0.0
          %730 = vmatpush2.xpose.msra.mxu0 0.0
          %731 = vmatprep.subr.mxu0 0.0
          %732 = vmatpush2.xpose.msra.mxu0 0.0
          %733 = vmatprep.subr.mxu0 0.0
          %734 = vmatpush2.xpose.msra.mxu0 0.0
          %735 = vmatprep.subr.mxu0 0.0
          %736 = vmatpush2.xpose.msra.mxu0 0.0
          %737 = vmatprep.subr.mxu0 0.0
          %738 = vmatpush2.xpose.msra.mxu0 0.0
          %739 = vmatprep.subr.mxu0 0.0
          %740 = vmatpush2.xpose.msra.mxu0 0.0
          %741 = vmatprep.subr.mxu0 0.0
          %742 = vmatpush2.xpose.msra.mxu0 0.0
          %743 = vmatprep.subr.mxu0 0.0
          %744 = vmatpush2.xpose.msra.mxu0 0.0
          %745 = vmatprep.subr.mxu0 0.0
          %746 = vmatpush2.xpose.msra.mxu0 0.0
          %747 = vmatprep.subr.mxu0 0.0
          %748 = vmatpush2.xpose.msra.mxu0 0.0
          %749 = vmatprep.subr.mxu0 0.0
          %750 = vmatpush2.xpose.msra.mxu0 0.0
          %751 = vmatprep.subr.mxu0 0.0
          %752 = vmatpush2.xpose.msra.mxu0 0.0
          %753 = vmatprep.mubr.f32.mxu0 0.0
          %754 = vmatmul.mubr.f32.gmra.mxu0 %v684
          %v755 = vpop.f32.mrf.mxu0
          %v756 = vadd.f32 0.0, %v755
          %v757 = vpop.f32.mrf.mxu0
          %758 = vdwg.mxu0
          %v759 = vld [vmem:[#allocation4] sm:$0xff]
          %vm760 = vcmask 64512
          %v761 = vsel %vm760, %v756, -inf
          %762 = vmax.xlane.f32.xlu0 %v761
          %v763 = vpop.xlane.xlu0 %762
          %v764 = vmax.f32 %v759, %v763
          %v765 = vsub.f32 %v759, %v764
          %v766 = vmul.f32 %v765, 1.442695
          %v767 = vpow.pop %v766
          %769 = vset.pattern.permute.xlu0 0
          %770 = vperm.xlu0 %769, %v764
          %v771 = vpop.permute.xlu0 %770
          %v773 = vsub.f32 %v756, %v771
          %v774 = vmul.f32 %v773, 1.442695
          %v775 = vpow.pop %v774
          %v776 = vld [vmem:[#allocation5] sm:$0xff]
          %v777 = vmul.f32 %v767, %v776
          %v778 = vsel %vm760, %v775, 0.0
          %779 = vadd.xlane.f32.xlu0 %v778
          %v780 = vpop.xlane.xlu0 %779
          %v781 = vadd.f32 %v777, %v780
          %782 = vst.msk [vmem:[#allocation5] sm:$0xff] %vm668, %v781
          %v783 = vld [vmem:[#allocation6] sm:$0xff]
          %785 = vset.pattern.permute.xlu0 0
          %786 = vperm.xlu0 %785, %v767
          %v787 = vpop.permute.xlu0 %786
          %v789 = vmul.f32 %v787, %v783
          %v791 = vsel %vm760, %v775, 0
          %793 = vmatprep.subr.mxu0 0.0
          %794 = vmatpush1.msra.mxu0 0.0
          %795 = vmatprep.subr.mxu0 0.0
          %796 = vmatpush1.msra.mxu0 0.0
          %797 = vmatprep.subr.mxu0 0.0
          %798 = vmatpush1.msra.mxu0 0.0
          %799 = vmatprep.subr.mxu0 0.0
          %800 = vmatpush1.msra.mxu0 0.0
          %801 = vmatprep.subr.mxu0 0.0
          %802 = vmatpush1.msra.mxu0 0.0
          %803 = vmatprep.subr.mxu0 0.0
          %804 = vmatpush1.msra.mxu0 0.0
          %805 = vmatprep.subr.mxu0 0.0
          %806 = vmatpush1.msra.mxu0 0.0
          %807 = vmatprep.subr.mxu0 0.0
          %808 = vmatpush1.msra.mxu0 0.0
          %809 = vmatprep.subr.mxu0 0.0
          %810 = vmatpush1.msra.mxu0 0.0
          %811 = vmatprep.subr.mxu0 0.0
          %812 = vmatpush1.msra.mxu0 0.0
          %813 = vmatprep.subr.mxu0 0.0
          %814 = vmatpush1.msra.mxu0 0.0
          %815 = vmatprep.subr.mxu0 0.0
          %816 = vmatpush1.msra.mxu0 0.0
          %817 = vmatprep.subr.mxu0 0.0
          %818 = vmatpush1.msra.mxu0 0.0
          %819 = vmatprep.subr.mxu0 0.0
          %820 = vmatpush1.msra.mxu0 0.0
          %821 = vmatprep.subr.mxu0 0.0
          %822 = vmatpush1.msra.mxu0 0.0
          %823 = vmatprep.subr.mxu0 0.0
          %824 = vmatpush1.msra.mxu0 %v682
          %825 = vmatprep.subr.mxu0 0.0
          %826 = vmatpush2.msra.mxu0 0.0
          %827 = vmatprep.subr.mxu0 0.0
          %828 = vmatpush2.msra.mxu0 0.0
          %829 = vmatprep.subr.mxu0 0.0
          %830 = vmatpush2.msra.mxu0 0.0
          %831 = vmatprep.subr.mxu0 0.0
          %832 = vmatpush2.msra.mxu0 0.0
          %833 = vmatprep.subr.mxu0 0.0
          %834 = vmatpush2.msra.mxu0 0.0
          %835 = vmatprep.subr.mxu0 0.0
          %836 = vmatpush2.msra.mxu0 0.0
          %837 = vmatprep.subr.mxu0 0.0
          %838 = vmatpush2.msra.mxu0 0.0
          %839 = vmatprep.subr.mxu0 0.0
          %840 = vmatpush2.msra.mxu0 0.0
          %841 = vmatprep.subr.mxu0 0.0
          %842 = vmatpush2.msra.mxu0 0.0
          %843 = vmatprep.subr.mxu0 0.0
          %844 = vmatpush2.msra.mxu0 0.0
          %845 = vmatprep.subr.mxu0 0.0
          %846 = vmatpush2.msra.mxu0 0.0
          %847 = vmatprep.subr.mxu0 0.0
          %848 = vmatpush2.msra.mxu0 0.0
          %849 = vmatprep.subr.mxu0 0.0
          %850 = vmatpush2.msra.mxu0 0.0
          %851 = vmatprep.subr.mxu0 0.0
          %852 = vmatpush2.msra.mxu0 0.0
          %853 = vmatprep.subr.mxu0 0.0
          %854 = vmatpush2.msra.mxu0 0.0
          %855 = vmatprep.subr.mxu0 0.0
          %856 = vmatpush2.msra.mxu0 0.0
          %857 = vmatprep.mubr.f32.mxu0 0.0
          %858 = vmatmul.mubr.f32.gmra.mxu0 %v791
          %v859 = vpop.f32.mrf.mxu0
          %v860 = vadd.f32 0.0, %v859
          %v861 = vpop.f32.mrf.mxu0
          %862 = vdwg.mxu0
          %v863 = vadd.f32 %v789, %v860
          %864 = vst.msk [vmem:[#allocation6] sm:$0xff] %vm535, %v863
          %865 = vst.msk [vmem:[#allocation4] sm:$0xff] %vm668, %v764
        $region97: #{tpu_custom_call.1} parent=71 // loop_footer
          %s675 = sadd.s32 %s673, 1
        $region98: #{tpu_custom_call.1} parent=71 // loop_footer_branch
          %672 = sbr.rel target = $region94
        $region99: #{tpu_custom_call.1} parent=71 // loop_exit
          _
        %v866 = vlaneseq
        %v867 = vshrl.u32 %v866, 7
        %v868 = vlaneseq
        %v869 = vand.u32 %v868, 127
        %vm870 = vcmp.gt.s32.totalorder %v869, %v867
        %v872 = vsel %vm535, %v655, 0
        %v874 = vsel %vm535, %v659, 0
        %876 = vmatprep.subr.mxu0 0.0
        %877 = vmatpush1.xpose.msra.mxu0 0.0
        %878 = vmatprep.subr.mxu0 0.0
        %879 = vmatpush1.xpose.msra.mxu0 0.0
        %880 = vmatprep.subr.mxu0 0.0
        %881 = vmatpush1.xpose.msra.mxu0 0.0
        %882 = vmatprep.subr.mxu0 0.0
        %883 = vmatpush1.xpose.msra.mxu0 0.0
        %884 = vmatprep.subr.mxu0 0.0
        %885 = vmatpush1.xpose.msra.mxu0 0.0
        %886 = vmatprep.subr.mxu0 0.0
        %887 = vmatpush1.xpose.msra.mxu0 0.0
        %888 = vmatprep.subr.mxu0 0.0
        %889 = vmatpush1.xpose.msra.mxu0 0.0
        %890 = vmatprep.subr.mxu0 0.0
        %891 = vmatpush1.xpose.msra.mxu0 0.0
        %892 = vmatprep.subr.mxu0 0.0
        %893 = vmatpush1.xpose.msra.mxu0 0.0
        %894 = vmatprep.subr.mxu0 0.0
        %895 = vmatpush1.xpose.msra.mxu0 0.0
        %896 = vmatprep.subr.mxu0 0.0
        %897 = vmatpush1.xpose.msra.mxu0 0.0
        %898 = vmatprep.subr.mxu0 0.0
        %899 = vmatpush1.xpose.msra.mxu0 0.0
        %900 = vmatprep.subr.mxu0 0.0
        %901 = vmatpush1.xpose.msra.mxu0 0.0
        %902 = vmatprep.subr.mxu0 0.0
        %903 = vmatpush1.xpose.msra.mxu0 0.0
        %904 = vmatprep.subr.mxu0 0.0
        %905 = vmatpush1.xpose.msra.mxu0 0.0
        %906 = vmatprep.subr.mxu0 0.0
        %907 = vmatpush1.xpose.msra.mxu0 %v874
        %908 = vmatprep.subr.mxu0 0.0
        %909 = vmatpush2.xpose.msra.mxu0 0.0
        %910 = vmatprep.subr.mxu0 0.0
        %911 = vmatpush2.xpose.msra.mxu0 0.0
        %912 = vmatprep.subr.mxu0 0.0
        %913 = vmatpush2.xpose.msra.mxu0 0.0
        %914 = vmatprep.subr.mxu0 0.0
        %915 = vmatpush2.xpose.msra.mxu0 0.0
        %916 = vmatprep.subr.mxu0 0.0
        %917 = vmatpush2.xpose.msra.mxu0 0.0
        %918 = vmatprep.subr.mxu0 0.0
        %919 = vmatpush2.xpose.msra.mxu0 0.0
        %920 = vmatprep.subr.mxu0 0.0
        %921 = vmatpush2.xpose.msra.mxu0 0.0
        %922 = vmatprep.subr.mxu0 0.0
        %923 = vmatpush2.xpose.msra.mxu0 0.0
        %924 = vmatprep.subr.mxu0 0.0
        %925 = vmatpush2.xpose.msra.mxu0 0.0
        %926 = vmatprep.subr.mxu0 0.0
        %927 = vmatpush2.xpose.msra.mxu0 0.0
        %928 = vmatprep.subr.mxu0 0.0
        %929 = vmatpush2.xpose.msra.mxu0 0.0
        %930 = vmatprep.subr.mxu0 0.0
        %931 = vmatpush2.xpose.msra.mxu0 0.0
        %932 = vmatprep.subr.mxu0 0.0
        %933 = vmatpush2.xpose.msra.mxu0 0.0
        %934 = vmatprep.subr.mxu0 0.0
        %935 = vmatpush2.xpose.msra.mxu0 0.0
        %936 = vmatprep.subr.mxu0 0.0
        %937 = vmatpush2.xpose.msra.mxu0 0.0
        %938 = vmatprep.subr.mxu0 0.0
        %939 = vmatpush2.xpose.msra.mxu0 0.0
        %940 = vmatprep.mubr.f32.mxu0 0.0
        %941 = vmatmul.mubr.f32.gmra.mxu0 %v872
        %v942 = vpop.f32.mrf.mxu0
        %v943 = vadd.f32 0.0, %v942
        %v944 = vpop.f32.mrf.mxu0
        %945 = vdwg.mxu0
        %v946 = vsel %vm870, -inf, %v943
        %v947 = vld [vmem:[#allocation4] sm:$0xff]
        %vm948 = vcmask 64512
        %v949 = vsel %vm948, %v946, -inf
        %950 = vmax.xlane.f32.xlu0 %v949
        %v951 = vpop.xlane.xlu0 %950
        %v952 = vmax.f32 %v947, %v951
        %v953 = vsub.f32 %v947, %v952
        %v954 = vmul.f32 %v953, 1.442695
        %v955 = vpow.pop %v954
        %957 = vset.pattern.permute.xlu0 0
        %958 = vperm.xlu0 %957, %v952
        %v959 = vpop.permute.xlu0 %958
        %v961 = vsub.f32 %v946, %v959
        %v962 = vmul.f32 %v961, 1.442695
        %v963 = vpow.pop %v962
        %v964 = vld [vmem:[#allocation5] sm:$0xff]
        %v965 = vmul.f32 %v955, %v964
        %v966 = vsel %vm948, %v963, 0.0
        %967 = vadd.xlane.f32.xlu0 %v966
        %v968 = vpop.xlane.xlu0 %967
        %v969 = vadd.f32 %v965, %v968
        %970 = vst.msk [vmem:[#allocation5] sm:$0xff] %vm668, %v969
        %v971 = vld [vmem:[#allocation6] sm:$0xff]
        %973 = vset.pattern.permute.xlu0 0
        %974 = vperm.xlu0 %973, %v955
        %v975 = vpop.permute.xlu0 %974
        %v977 = vmul.f32 %v975, %v971
        %v979 = vsel %vm948, %v963, 0
        %981 = vmatprep.subr.mxu0 0.0
        %982 = vmatpush1.msra.mxu0 0.0
        %983 = vmatprep.subr.mxu0 0.0
        %984 = vmatpush1.msra.mxu0 0.0
        %985 = vmatprep.subr.mxu0 0.0
        %986 = vmatpush1.msra.mxu0 0.0
        %987 = vmatprep.subr.mxu0 0.0
        %988 = vmatpush1.msra.mxu0 0.0
        %989 = vmatprep.subr.mxu0 0.0
        %990 = vmatpush1.msra.mxu0 0.0
        %991 = vmatprep.subr.mxu0 0.0
        %992 = vmatpush1.msra.mxu0 0.0
        %993 = vmatprep.subr.mxu0 0.0
        %994 = vmatpush1.msra.mxu0 0.0
        %995 = vmatprep.subr.mxu0 0.0
        %996 = vmatpush1.msra.mxu0 0.0
        %997 = vmatprep.subr.mxu0 0.0
        %998 = vmatpush1.msra.mxu0 0.0
        %999 = vmatprep.subr.mxu0 0.0
        %1000 = vmatpush1.msra.mxu0 0.0
        %1001 = vmatprep.subr.mxu0 0.0
        %1002 = vmatpush1.msra.mxu0 0.0
        %1003 = vmatprep.subr.mxu0 0.0
        %1004 = vmatpush1.msra.mxu0 0.0
        %1005 = vmatprep.subr.mxu0 0.0
        %1006 = vmatpush1.msra.mxu0 0.0
        %1007 = vmatprep.subr.mxu0 0.0
        %1008 = vmatpush1.msra.mxu0 0.0
        %1009 = vmatprep.subr.mxu0 0.0
        %1010 = vmatpush1.msra.mxu0 0.0
        %1011 = vmatprep.subr.mxu0 0.0
        %1012 = vmatpush1.msra.mxu0 %v664
        %1013 = vmatprep.subr.mxu0 0.0
        %1014 = vmatpush2.msra.mxu0 0.0
        %1015 = vmatprep.subr.mxu0 0.0
        %1016 = vmatpush2.msra.mxu0 0.0
        %1017 = vmatprep.subr.mxu0 0.0
        %1018 = vmatpush2.msra.mxu0 0.0
        %1019 = vmatprep.subr.mxu0 0.0
        %1020 = vmatpush2.msra.mxu0 0.0
        %1021 = vmatprep.subr.mxu0 0.0
        %1022 = vmatpush2.msra.mxu0 0.0
        %1023 = vmatprep.subr.mxu0 0.0
        %1024 = vmatpush2.msra.mxu0 0.0
        %1025 = vmatprep.subr.mxu0 0.0
        %1026 = vmatpush2.msra.mxu0 0.0
        %1027 = vmatprep.subr.mxu0 0.0
        %1028 = vmatpush2.msra.mxu0 0.0
        %1029 = vmatprep.subr.mxu0 0.0
        %1030 = vmatpush2.msra.mxu0 0.0
        %1031 = vmatprep.subr.mxu0 0.0
        %1032 = vmatpush2.msra.mxu0 0.0
        %1033 = vmatprep.subr.mxu0 0.0
        %1034 = vmatpush2.msra.mxu0 0.0
        %1035 = vmatprep.subr.mxu0 0.0
        %1036 = vmatpush2.msra.mxu0 0.0
        %1037 = vmatprep.subr.mxu0 0.0
        %1038 = vmatpush2.msra.mxu0 0.0
        %1039 = vmatprep.subr.mxu0 0.0
        %1040 = vmatpush2.msra.mxu0 0.0
        %1041 = vmatprep.subr.mxu0 0.0
        %1042 = vmatpush2.msra.mxu0 0.0
        %1043 = vmatprep.subr.mxu0 0.0
        %1044 = vmatpush2.msra.mxu0 0.0
        %1045 = vmatprep.mubr.f32.mxu0 0.0
        %1046 = vmatmul.mubr.f32.gmra.mxu0 %v979
        %v1047 = vpop.f32.mrf.mxu0
        %v1048 = vadd.f32 0.0, %v1047
        %v1049 = vpop.f32.mrf.mxu0
        %1050 = vdwg.mxu0
        %v1051 = vadd.f32 %v977, %v1048
        %1052 = vst.msk [vmem:[#allocation6] sm:$0xff] %vm535, %v1051
        %1053 = vst.msk [vmem:[#allocation4] sm:$0xff] %vm668, %v952
        %v1054 = vld [vmem:[#allocation6] sm:$0xff]
        %v1055 = vld [vmem:[#allocation5] sm:$0xff]
        %1057 = vset.pattern.permute.xlu0 0
        %1058 = vperm.xlu0 %1057, %v1055
        %v1059 = vpop.permute.xlu0 %1058
        %v1061 = vrcp.pop %v1059
        %v1062 = vmul.f32 %v1054, %v1061
        %v1063 = vld [vmem:[#allocation12] sm:$0xff]
        %v1064 = vld [vmem:[#allocation12 + $0x8] sm:$0xff]
        %v1065 = vld [vmem:[#allocation12 + $0x10] sm:$0xff]
        %v1066 = vld [vmem:[#allocation12 + $0x18] sm:$0xff]
        %v1067 = vld [vmem:[%s4] sm:$0x1]
        %v1069 = vlaneseq
        %v1070 = vshrl.u32 %v1069, 7
        %v1071 = vsub.s32 0, %v1070
        %v1072 = vrot.slane %v1067, %v1071
        %v1075 = vsel %vm535, %v1062, 0
        %1077 = vmatprep.subr.mxu0 0.0
        %1078 = vmatpush1.msra.mxu0 0.0
        %1079 = vmatprep.subr.mxu0 0.0
        %1080 = vmatpush1.msra.mxu0 0.0
        %1081 = vmatprep.subr.mxu0 0.0
        %1082 = vmatpush1.msra.mxu0 0.0
        %1083 = vmatprep.subr.mxu0 0.0
        %1084 = vmatpush1.msra.mxu0 0.0
        %1085 = vmatprep.subr.mxu0 0.0
        %1086 = vmatpush1.msra.mxu0 0.0
        %1087 = vmatprep.subr.mxu0 0.0
        %1088 = vmatpush1.msra.mxu0 0.0
        %1089 = vmatprep.subr.mxu0 0.0
        %1090 = vmatpush1.msra.mxu0 0.0
        %1091 = vmatprep.subr.mxu0 0.0
        %1092 = vmatpush1.msra.mxu0 0.0
        %1093 = vmatprep.subr.mxu0 0.0
        %1094 = vmatpush1.msra.mxu0 0.0
        %1095 = vmatprep.subr.mxu0 0.0
        %1096 = vmatpush1.msra.mxu0 0.0
        %1097 = vmatprep.subr.mxu0 0.0
        %1098 = vmatpush1.msra.mxu0 0.0
        %1099 = vmatprep.subr.mxu0 0.0
        %1100 = vmatpush1.msra.mxu0 0.0
        %1101 = vmatprep.subr.mxu0 0.0
        %1102 = vmatpush1.msra.mxu0 %v1066
        %1103 = vmatprep.subr.mxu0 0.0
        %1104 = vmatpush1.msra.mxu0 %v1065
        %1105 = vmatprep.subr.mxu0 0.0
        %1106 = vmatpush1.msra.mxu0 %v1064
        %1107 = vmatprep.subr.mxu0 0.0
        %1108 = vmatpush1.msra.mxu0 %v1063
        %1109 = vmatprep.subr.mxu0 0.0
        %1110 = vmatpush2.msra.mxu0 0.0
        %1111 = vmatprep.subr.mxu0 0.0
        %1112 = vmatpush2.msra.mxu0 0.0
        %1113 = vmatprep.subr.mxu0 0.0
        %1114 = vmatpush2.msra.mxu0 0.0
        %1115 = vmatprep.subr.mxu0 0.0
        %1116 = vmatpush2.msra.mxu0 0.0
        %1117 = vmatprep.subr.mxu0 0.0
        %1118 = vmatpush2.msra.mxu0 0.0
        %1119 = vmatprep.subr.mxu0 0.0
        %1120 = vmatpush2.msra.mxu0 0.0
        %1121 = vmatprep.subr.mxu0 0.0
        %1122 = vmatpush2.msra.mxu0 0.0
        %1123 = vmatprep.subr.mxu0 0.0
        %1124 = vmatpush2.msra.mxu0 0.0
        %1125 = vmatprep.subr.mxu0 0.0
        %1126 = vmatpush2.msra.mxu0 0.0
        %1127 = vmatprep.subr.mxu0 0.0
        %1128 = vmatpush2.msra.mxu0 0.0
        %1129 = vmatprep.subr.mxu0 0.0
        %1130 = vmatpush2.msra.mxu0 0.0
        %1131 = vmatprep.subr.mxu0 0.0
        %1132 = vmatpush2.msra.mxu0 0.0
        %1133 = vmatprep.subr.mxu0 0.0
        %1134 = vmatpush2.msra.mxu0 0.0
        %1135 = vmatprep.subr.mxu0 0.0
        %1136 = vmatpush2.msra.mxu0 0.0
        %1137 = vmatprep.subr.mxu0 0.0
        %1138 = vmatpush2.msra.mxu0 0.0
        %1139 = vmatprep.subr.mxu0 0.0
        %1140 = vmatpush2.msra.mxu0 0.0
        %1141 = vmatprep.mubr.f32.mxu0 0.0
        %1142 = vmatmul.mubr.f32.gmra.mxu0 %v1075
        %v1143 = vpop.f32.mrf.mxu0
        %v1144 = vadd.f32 %v1072, %v1143
        %v1145 = vpop.f32.mrf.mxu0
        %1146 = vdwg.mxu0
        %v1147 = vadd.f32 %v1144, %v532
        %v1148 = vld [vmem:[%s7] sm:$0x1]
        %v1149 = vld [vmem:[%s8] sm:$0x1]
        %v1150 = vsel %vm535, %v1147, 0.0
        %1151 = vadd.xlane.f32.xlu0 %v1150
        %v1152 = vpop.xlane.xlu0 %1151
        %v1153 = vmul.f32 %v1152, %v539
        %v1154 = vsub.f32 %v1147, %v1153
        %v1155 = vmul.f32 %v1154, %v1154
        %v1156 = vsel %vm535, %v1155, 0.0
        %1157 = vadd.xlane.f32.xlu0 %v1156
        %v1158 = vpop.xlane.xlu0 %1157
        %v1159 = vmul.f32 %v1158, 0.032258064
        %v1161 = vlaneseq
        %v1162 = vshrl.u32 %v1161, 7
        %v1163 = vsub.s32 0, %v1162
        %v1164 = vrot.slane %v1148, %v1163
        %v1166 = vmul.f32 %v1164, %v1154
        %v1167 = vrsqrt.pop %v1159
        %v1168 = vmul.f32 %v1159, %v1167
        %vm1169 = vcmp.eq.f32.partialorder %v1159, inf
        %v1170 = vsel %vm1169, %v1159, %v1168
        %vm1171 = vcmp.eq.f32.partialorder %v1159, 0.0
        %v1172 = vand.u32 %v1159, 2147483648
        %v1173 = vsel %vm1171, %v1172, %v1170
        %v1174 = vadd.f32 %v1173, 1e-06
        %v1175 = vrcp.pop %v1174
        %v1176 = vmul.f32 %v1166, %v1175
        %v1178 = vlaneseq
        %v1179 = vshrl.u32 %v1178, 7
        %v1180 = vsub.s32 0, %v1179
        %v1181 = vrot.slane %v1149, %v1180
        %v1183 = vadd.f32 %v1176, %v1181
        %v1184 = vld [vmem:[#allocation13] sm:$0xff]
        %v1185 = vld [vmem:[#allocation13 + $0x8] sm:$0xff]
        %v1186 = vld [vmem:[#allocation13 + $0x10] sm:$0xff]
        %v1187 = vld [vmem:[#allocation13 + $0x18] sm:$0xff]
        %v1188 = vld [vmem:[%s10] sm:$0x1]
        %v1190 = vlaneseq
        %v1191 = vshrl.u32 %v1190, 7
        %v1192 = vsub.s32 0, %v1191
        %v1193 = vrot.slane %v1188, %v1192
        %v1196 = vsel %vm535, %v1183, 0
        %1198 = vmatprep.subr.mxu0 0.0
        %1199 = vmatpush1.msra.mxu0 0.0
        %1200 = vmatprep.subr.mxu0 0.0
        %1201 = vmatpush1.msra.mxu0 0.0
        %1202 = vmatprep.subr.mxu0 0.0
        %1203 = vmatpush1.msra.mxu0 0.0
        %1204 = vmatprep.subr.mxu0 0.0
        %1205 = vmatpush1.msra.mxu0 0.0
        %1206 = vmatprep.subr.mxu0 0.0
        %1207 = vmatpush1.msra.mxu0 0.0
        %1208 = vmatprep.subr.mxu0 0.0
        %1209 = vmatpush1.msra.mxu0 0.0
        %1210 = vmatprep.subr.mxu0 0.0
        %1211 = vmatpush1.msra.mxu0 0.0
        %1212 = vmatprep.subr.mxu0 0.0
        %1213 = vmatpush1.msra.mxu0 0.0
        %1214 = vmatprep.subr.mxu0 0.0
        %1215 = vmatpush1.msra.mxu0 0.0
        %1216 = vmatprep.subr.mxu0 0.0
        %1217 = vmatpush1.msra.mxu0 0.0
        %1218 = vmatprep.subr.mxu0 0.0
        %1219 = vmatpush1.msra.mxu0 0.0
        %1220 = vmatprep.subr.mxu0 0.0
        %1221 = vmatpush1.msra.mxu0 0.0
        %1222 = vmatprep.subr.mxu0 0.0
        %1223 = vmatpush1.msra.mxu0 %v1187
        %1224 = vmatprep.subr.mxu0 0.0
        %1225 = vmatpush1.msra.mxu0 %v1186
        %1226 = vmatprep.subr.mxu0 0.0
        %1227 = vmatpush1.msra.mxu0 %v1185
        %1228 = vmatprep.subr.mxu0 0.0
        %1229 = vmatpush1.msra.mxu0 %v1184
        %1230 = vmatprep.subr.mxu0 0.0
        %1231 = vmatpush2.msra.mxu0 0.0
        %1232 = vmatprep.subr.mxu0 0.0
        %1233 = vmatpush2.msra.mxu0 0.0
        %1234 = vmatprep.subr.mxu0 0.0
        %1235 = vmatpush2.msra.mxu0 0.0
        %1236 = vmatprep.subr.mxu0 0.0
        %1237 = vmatpush2.msra.mxu0 0.0
        %1238 = vmatprep.subr.mxu0 0.0
        %1239 = vmatpush2.msra.mxu0 0.0
        %1240 = vmatprep.subr.mxu0 0.0
        %1241 = vmatpush2.msra.mxu0 0.0
        %1242 = vmatprep.subr.mxu0 0.0
        %1243 = vmatpush2.msra.mxu0 0.0
        %1244 = vmatprep.subr.mxu0 0.0
        %1245 = vmatpush2.msra.mxu0 0.0
        %1246 = vmatprep.subr.mxu0 0.0
        %1247 = vmatpush2.msra.mxu0 0.0
        %1248 = vmatprep.subr.mxu0 0.0
        %1249 = vmatpush2.msra.mxu0 0.0
        %1250 = vmatprep.subr.mxu0 0.0
        %1251 = vmatpush2.msra.mxu0 0.0
        %1252 = vmatprep.subr.mxu0 0.0
        %1253 = vmatpush2.msra.mxu0 0.0
        %1254 = vmatprep.subr.mxu0 0.0
        %1255 = vmatpush2.msra.mxu0 0.0
        %1256 = vmatprep.subr.mxu0 0.0
        %1257 = vmatpush2.msra.mxu0 0.0
        %1258 = vmatprep.subr.mxu0 0.0
        %1259 = vmatpush2.msra.mxu0 0.0
        %1260 = vmatprep.subr.mxu0 0.0
        %1261 = vmatpush2.msra.mxu0 0.0
        %1262 = vmatprep.mubr.f32.mxu0 0.0
        %1263 = vmatmul.mubr.f32.gmra.mxu0 %v1196
        %v1264 = vpop.f32.mrf.mxu0
        %v1265 = vadd.f32 %v1193, %v1264
        %v1266 = vpop.f32.mrf.mxu0
        %1267 = vdwg.mxu0
        %v1268 = vmax.f32 %v1265, 0.0
        %v1269 = vld [vmem:[#allocation15] sm:$0xff]
        %v1270 = vld [vmem:[#allocation15 + $0x8] sm:$0xff]
        %v1271 = vld [vmem:[#allocation15 + $0x10] sm:$0xff]
        %v1272 = vld [vmem:[#allocation15 + $0x18] sm:$0xff]
        %v1273 = vld [vmem:[%s12] sm:$0x1]
        %v1275 = vlaneseq
        %v1276 = vshrl.u32 %v1275, 7
        %v1277 = vsub.s32 0, %v1276
        %v1278 = vrot.slane %v1273, %v1277
        %v1281 = vsel %vm535, %v1268, 0
        %1283 = vmatprep.subr.mxu0 0.0
        %1284 = vmatpush1.msra.mxu0 0.0
        %1285 = vmatprep.subr.mxu0 0.0
        %1286 = vmatpush1.msra.mxu0 0.0
        %1287 = vmatprep.subr.mxu0 0.0
        %1288 = vmatpush1.msra.mxu0 0.0
        %1289 = vmatprep.subr.mxu0 0.0
        %1290 = vmatpush1.msra.mxu0 0.0
        %1291 = vmatprep.subr.mxu0 0.0
        %1292 = vmatpush1.msra.mxu0 0.0
        %1293 = vmatprep.subr.mxu0 0.0
        %1294 = vmatpush1.msra.mxu0 0.0
        %1295 = vmatprep.subr.mxu0 0.0
        %1296 = vmatpush1.msra.mxu0 0.0
        %1297 = vmatprep.subr.mxu0 0.0
        %1298 = vmatpush1.msra.mxu0 0.0
        %1299 = vmatprep.subr.mxu0 0.0
        %1300 = vmatpush1.msra.mxu0 0.0
        %1301 = vmatprep.subr.mxu0 0.0
        %1302 = vmatpush1.msra.mxu0 0.0
        %1303 = vmatprep.subr.mxu0 0.0
        %1304 = vmatpush1.msra.mxu0 0.0
        %1305 = vmatprep.subr.mxu0 0.0
        %1306 = vmatpush1.msra.mxu0 0.0
        %1307 = vmatprep.subr.mxu0 0.0
        %1308 = vmatpush1.msra.mxu0 %v1272
        %1309 = vmatprep.subr.mxu0 0.0
        %1310 = vmatpush1.msra.mxu0 %v1271
        %1311 = vmatprep.subr.mxu0 0.0
        %1312 = vmatpush1.msra.mxu0 %v1270
        %1313 = vmatprep.subr.mxu0 0.0
        %1314 = vmatpush1.msra.mxu0 %v1269
        %1315 = vmatprep.subr.mxu0 0.0
        %1316 = vmatpush2.msra.mxu0 0.0
        %1317 = vmatprep.subr.mxu0 0.0
        %1318 = vmatpush2.msra.mxu0 0.0
        %1319 = vmatprep.subr.mxu0 0.0
        %1320 = vmatpush2.msra.mxu0 0.0
        %1321 = vmatprep.subr.mxu0 0.0
        %1322 = vmatpush2.msra.mxu0 0.0
        %1323 = vmatprep.subr.mxu0 0.0
        %1324 = vmatpush2.msra.mxu0 0.0
        %1325 = vmatprep.subr.mxu0 0.0
        %1326 = vmatpush2.msra.mxu0 0.0
        %1327 = vmatprep.subr.mxu0 0.0
        %1328 = vmatpush2.msra.mxu0 0.0
        %1329 = vmatprep.subr.mxu0 0.0
        %1330 = vmatpush2.msra.mxu0 0.0
        %1331 = vmatprep.subr.mxu0 0.0
        %1332 = vmatpush2.msra.mxu0 0.0
        %1333 = vmatprep.subr.mxu0 0.0
        %1334 = vmatpush2.msra.mxu0 0.0
        %1335 = vmatprep.subr.mxu0 0.0
        %1336 = vmatpush2.msra.mxu0 0.0
        %1337 = vmatprep.subr.mxu0 0.0
        %1338 = vmatpush2.msra.mxu0 0.0
        %1339 = vmatprep.subr.mxu0 0.0
        %1340 = vmatpush2.msra.mxu0 0.0
        %1341 = vmatprep.subr.mxu0 0.0
        %1342 = vmatpush2.msra.mxu0 0.0
        %1343 = vmatprep.subr.mxu0 0.0
        %1344 = vmatpush2.msra.mxu0 0.0
        %1345 = vmatprep.subr.mxu0 0.0
        %1346 = vmatpush2.msra.mxu0 0.0
        %1347 = vmatprep.mubr.f32.mxu0 0.0
        %1348 = vmatmul.mubr.f32.gmra.mxu0 %v1281
        %v1349 = vpop.f32.mrf.mxu0
        %v1350 = vadd.f32 %v1278, %v1349
        %v1351 = vpop.f32.mrf.mxu0
        %1352 = vdwg.mxu0
        %v1353 = vadd.f32 %v1147, %v1350
        %1354 = vst.msk [vmem:[%s531] sm:$0xff] %vm535, %v1353
        %s1355 = sand.u32 %s334, 1
        %s1356 = scalar_lea.sflag [#allocation9], %s1355
        %s1357 = sand.u32 %s334, 1
        %s1358 = smul.addr %s1357, 8
        %s1359 = scalar_lea.vmem [#allocation16], %s1358
        // Predicated region
        $region100: #{tpu_custom_call.1} parent=71 // pred_check
          %p1360 = pneg %p344
        $region101: #{tpu_custom_call.1} parent=71 // pred_check_branch
          %1362 = sbr.rel (%p1360) target = $region103
        $region102: #{tpu_custom_call.1} parent=71 // pred_region
          %s1364 = ssub.s32 128, 128
          %1365 = vsyncadd %s1356, %s1364
          %s1366 = smul.addr %s36, 4
          %s1367 = sadd.s32 %s37, %s1366
          %s1368 = smul.addr %s1367, 128
          %s1369 = scalar_lea.hbm %s13, %s1368
          %s1371 = sshll.u32 %s1359, 4
          %s1372 = int_to_ptr.vmem [resolvable:$true] %s1371
          %1374 = dma.vmem_to_hbm [thread:$0]  %s1372, 128, %s1369, %s1356
        $region103: #{tpu_custom_call.1} parent=71 // pred_fallthru
          _
      $region72: #{tpu_custom_call.1} parent=5 // pred_fallthru
        _
      %p1375 = scmp.le.s32.totalorder 2, %s27
      // Predicated region
      $region104: #{tpu_custom_call.1} parent=5 // pred_check
        %p1376 = pneg %p1375
      $region105: #{tpu_custom_call.1} parent=5 // pred_check_branch
        %1378 = sbr.rel (%p1376) target = $region107
      $region106: #{tpu_custom_call.1} parent=5 // pred_region
        %s1379 = ssub.s32 %s27, 2
        // Predicated region
        $region108: #{tpu_custom_call.1} parent=106 // pred_check
          %p1380 = pneg %p350
        $region109: #{tpu_custom_call.1} parent=106 // pred_check_branch
          %1382 = sbr.rel (%p1380) target = $region111
        $region110: #{tpu_custom_call.1} parent=106 // pred_region
          %s1383 = sand.u32 %s335, 1
          %s1384 = scalar_lea.sflag [#allocation9], %s1383
          %s1385 = sand.u32 %s335, 1
          %s1386 = smul.addr %s1385, 8
          %s1387 = scalar_lea.vmem [#allocation16], %s1386
          %1388 = dma.done %s1384, 128
        $region111: #{tpu_custom_call.1} parent=106 // pred_fallthru
          _
      $region107: #{tpu_custom_call.1} parent=5 // pred_fallthru
        _
    $region6: #{tpu_custom_call.1} parent=1 // loop_footer
      %s31 = sadd.s32 1, %s27
    $region7: #{tpu_custom_call.1} parent=1 // loop_footer_branch
      %26 = sbr.rel target = $region3
    $region8: #{tpu_custom_call.1} parent=1 // loop_exit
      _
    %1389 = vsyncpa [#allocation8], 1
    %s1390 = scalar_lea.sflag [#allocation8], 1
    %1391 = vsyncpa %s1390, 1
    %1392 = vsyncpa [#allocation11], 1
    %1393 = vsyncpa [#allocation14], 1
    %1394 = vsyncpa [#allocation9], 1
    %s1395 = scalar_lea.sflag [#allocation9], 1
    %1396 = vsyncpa %s1395, 1

// kernel: tpu_custom_call.1
$region0: #{tpu_custom_call.1}
  #allocation0 [shape = 'u32[]', space=smem, size = 0x4, offset = 0x4, fixed_abs, tag = 'smem constant byte address 0x4 - core index']
  #allocation1 [shape = 'u32[144,128]{1,0:T(1,128)}', space=vmem, size = 0x12000, scoped, tag = 'internal scratch']
  #allocation2 [shape = 'f32[32,32]{1,0:T(8,128)}', space=vmem, size = 0x4000, scoped, tag = 'scratch operand']
  #allocation3 [shape = 'f32[32,32]{1,0:T(8,128)}', space=vmem, size = 0x4000, scoped, tag = 'scratch operand']
  #allocation4 [shape = 'f32[8,1]{1,0:T(8,128)}', space=vmem, size = 0x1000, scoped, tag = 'scratch operand']
  #allocation5 [shape = 'f32[8,1]{1,0:T(8,128)}', space=vmem, size = 0x1000, scoped, tag = 'scratch operand']
  #allocation6 [shape = 'f32[8,32]{1,0:T(8,128)}', space=vmem, size = 0x1000, scoped, tag = 'scratch operand']
  %s0 = inlined_call_operand.hbm [shape: f32[2,32,32], index: 0, kind: input, shape index: {}]
  %s1 = inlined_call_operand.hbm [shape: f32[32,96], index: 1, kind: input, shape index: {}]
  %s2 = inlined_call_operand.vmem [shape: f32[1,96], index: 2, kind: input, shape index: {}]
  %s3 = inlined_call_operand.hbm [shape: f32[32,32], index: 3, kind: input, shape index: {}]
  %s4 = inlined_call_operand.vmem [shape: f32[1,32], index: 4, kind: input, shape index: {}]
  %s5 = inlined_call_operand.vmem [shape: f32[1,32], index: 5, kind: input, shape index: {}]
  %s6 = inlined_call_operand.vmem [shape: f32[1,32], index: 6, kind: input, shape index: {}]
  %s7 = inlined_call_operand.vmem [shape: f32[1,32], index: 7, kind: input, shape index: {}]
  %s8 = inlined_call_operand.vmem [shape: f32[1,32], index: 8, kind: input, shape index: {}]
  %s9 = inlined_call_operand.hbm [shape: f32[32,32], index: 9, kind: input, shape index: {}]
  %s10 = inlined_call_operand.vmem [shape: f32[1,32], index: 10, kind: input, shape index: {}]
  %s11 = inlined_call_operand.hbm [shape: f32[32,32], index: 11, kind: input, shape index: {}]
  %s12 = inlined_call_operand.vmem [shape: f32[1,32], index: 12, kind: input, shape index: {}]
  %s13 = inlined_call_operand.hbm [shape: f32[2,32,32], index: 13, kind: output, shape index: {}]
  %s14 = sld [smem:[#allocation0]]
  $region112: #{tpu_custom_call.1} parent=0
    _
  %s16 = ssub.s32 1, %s14
  %s17 = scalar_select 0, %s16, %s14
  $region1: #{tpu_custom_call.1} parent=0
    #allocation7 [shape = 'u8[8192]{0}', space=vmem, size = 0x2000, scoped, tag = 'input window, operand 0']
    #allocation8 [shape = 's32[2]{0}', space=sflag, size = 0x8, scoped, tag = 'scoped memory for tpu_custom_call.1']
    #allocation9 [shape = 's32[2]{0}', space=sflag, size = 0x8, scoped, tag = 'scoped memory for tpu_custom_call.1']
    #allocation10 [shape = 'u8[16384]{0}', space=vmem, size = 0x4000, scoped, tag = 'input window, operand 1, single buffered']
    #allocation11 [shape = 's32[1]{0}', space=sflag, size = 0x4, scoped, tag = 'scoped memory for tpu_custom_call.1']
    #allocation12 [shape = 'u8[16384]{0}', space=vmem, size = 0x4000, scoped, tag = 'input window, operand 3, single buffered']
    #allocation13 [shape = 'u8[16384]{0}', space=vmem, size = 0x4000, scoped, tag = 'input window, operand 9, single buffered']
    #allocation14 [shape = 's32[1]{0}', space=sflag, size = 0x4, scoped, tag = 'scoped memory for tpu_custom_call.1']
    #allocation15 [shape = 'u8[16384]{0}', space=vmem, size = 0x4000, scoped, tag = 'input window, operand 11, single buffered']
    #allocation16 [shape = 'u8[8192]{0}', space=vmem, size = 0x2000, scoped, tag = 'output window, operand 0']
    %18 = vsyncpa [#allocation8], 0
    %s19 = scalar_lea.sflag [#allocation8], 1
    %20 = vsyncpa %s19, 0
    %21 = vsyncpa [#allocation11], 0
    %22 = vsyncpa [#allocation14], 0
    %23 = vsyncpa [#allocation9], 0
    %s24 = scalar_lea.sflag [#allocation9], 1
    %25 = vsyncpa %s24, 0
    loop: start=0, step=1, limit=10
    $region2: #{tpu_custom_call.1} parent=1 // loop_pre_header
      _
    $region3: #{tpu_custom_call.1} parent=1 // loop_header
      %s27 = sphi 0, %s31
      %p28 = scmp.ge.s32.totalorder %s27, 10
      %s34 = sphi 0, %s46
      %s35 = sphi 0, %s42
      %s36 = sphi 0, %s34
      %s37 = sphi 0, %s35
      %s38 = sphi 0, %s36
      %s39 = sphi 0, %s37
      %s51 = sphi 0, %s53
      %s54 = sphi 0, %s51
      %s55 = sphi 0, %s54
      %s71 = sphi 0, %s55
      %s75 = sphi 0, %s75
      %s77 = sphi 0, %s75
      %s78 = sphi 0, %s77
      %s92 = sphi 0, %s78
      %s96 = sphi 0, %s96
      %s98 = sphi 0, %s96
      %s99 = sphi 0, %s98
      %s113 = sphi 0, %s99
      %s117 = sphi 0, %s117
      %s119 = sphi 0, %s117
      %s120 = sphi 0, %s119
      %s134 = sphi 0, %s120
      %s138 = sphi 0, %s138
      %s140 = sphi 0, %s138
      %s141 = sphi 0, %s140
      %s155 = sphi 0, %s141
      %s159 = sphi 0, %s159
      %s161 = sphi 0, %s159
      %s162 = sphi 0, %s161
      %s176 = sphi 0, %s162
      %s180 = sphi 0, %s180
      %s182 = sphi 0, %s180
      %s183 = sphi 0, %s182
      %s197 = sphi 0, %s183
      %s201 = sphi 0, %s201
      %s203 = sphi 0, %s201
      %s204 = sphi 0, %s203
      %s218 = sphi 0, %s204
      %s222 = sphi 0, %s222
      %s224 = sphi 0, %s222
      %s225 = sphi 0, %s224
      %s239 = sphi 0, %s225
      %s243 = sphi 0, %s243
      %s245 = sphi 0, %s243
      %s246 = sphi 0, %s245
      %s260 = sphi 0, %s246
      %s264 = sphi 0, %s264
      %s266 = sphi 0, %s264
      %s267 = sphi 0, %s266
      %s281 = sphi 0, %s267
      %s285 = sphi 0, %s285
      %s287 = sphi 0, %s285
      %s288 = sphi 0, %s287
      %s302 = sphi 0, %s288
      %s306 = sphi 0, %s306
      %s308 = sphi 0, %s306
      %s309 = sphi 0, %s308
      %s323 = sphi 0, %s309
      %s331 = sphi 0, %s333
      %s334 = sphi 0, %s331
      %s335 = sphi 0, %s334
      %s351 = sphi 0, %s335
    $region4: #{tpu_custom_call.1} parent=1 // loop_header_branch
      %30 = sbr.rel (%p28) target = $region8
    $region5: #{tpu_custom_call.1} parent=1 // loop_body
      %s32 = ssub.s32 %s27, 1
      %s33 = ssub.s32 %s27, 2
      %s40 = sadd.s32 1, %s35
      %p41 = scmp.ge.s32.totalorder %s40, 4
      %s42 = scalar_select %p41, 0, %s40
      %s43 = sadd.s32 1, %s34
      %s44 = scalar_select %p41, %s43, %s34
      %p45 = scmp.ge.s32.totalorder %s44, 2
      %s46 = scalar_select %p45, 0, %s44
      %s47 = ssub.s32 %s34, %s46
      %s48 = ssub.s32 %s35, %s42
      %s49 = sor.u32 %s47, %s48
      %p50 = scmp.eq.s32.totalorder %s49, 0
      %s52 = sadd.s32 %s51, 1
      %s53 = scalar_select %p50, %s51, %s52
      %p56 = pneg %p50
      %p57 = scmp.eq.s32.totalorder %s27, 7
      %p58 = por %p56, %p57
      %p59 = scmp.ne.s32.totalorder %s51, %s54
      %p60 = scmp.eq.s32.totalorder %s27, 0
      %p61 = por %p59, %p60
      %p62 = scmp.ne.s32.totalorder %s51, %s54
      %p63 = scmp.eq.s32.totalorder %s32, 7
      %p64 = por %p62, %p63
      %p65 = scmp.ne.s32.totalorder %s54, %s55
      %p66 = scmp.eq.s32.totalorder %s32, 0
      %p67 = por %p65, %p66
      %p68 = scmp.ne.s32.totalorder %s54, %s55
      %p69 = scmp.eq.s32.totalorder %s33, 7
      %p70 = por %p68, %p69
      %p72 = scmp.ne.s32.totalorder %s55, %s71
      %p73 = scmp.eq.s32.totalorder %s33, 0
      %p74 = por %p72, %p73
      %s76 = sadd.s32 %s75, 1
      %p79 = scmp.eq.s32.totalorder %s27, 7
      %p80 = scmp.ne.s32.totalorder %s75, %s77
      %p81 = scmp.eq.s32.totalorder %s27, 0
      %p82 = por %p80, %p81
      %p83 = scmp.ne.s32.totalorder %s75, %s77
      %p84 = scmp.eq.s32.totalorder %s32, 7
      %p85 = por %p83, %p84
      %p86 = scmp.ne.s32.totalorder %s77, %s78
      %p87 = scmp.eq.s32.totalorder %s32, 0
      %p88 = por %p86, %p87
      %p89 = scmp.ne.s32.totalorder %s77, %s78
      %p90 = scmp.eq.s32.totalorder %s33, 7
      %p91 = por %p89, %p90
      %p93 = scmp.ne.s32.totalorder %s78, %s92
      %p94 = scmp.eq.s32.totalorder %s33, 0
      %p95 = por %p93, %p94
      %s97 = sadd.s32 %s96, 1
      %p100 = scmp.eq.s32.totalorder %s27, 7
      %p101 = scmp.ne.s32.totalorder %s96, %s98
      %p102 = scmp.eq.s32.totalorder %s27, 0
      %p103 = por %p101, %p102
      %p104 = scmp.ne.s32.totalorder %s96, %s98
      %p105 = scmp.eq.s32.totalorder %s32, 7
      %p106 = por %p104, %p105
      %p107 = scmp.ne.s32.totalorder %s98, %s99
      %p108 = scmp.eq.s32.totalorder %s32, 0
      %p109 = por %p107, %p108
      %p110 = scmp.ne.s32.totalorder %s98, %s99
      %p111 = scmp.eq.s32.totalorder %s33, 7
      %p112 = por %p110, %p111
      %p114 = scmp.ne.s32.totalorder %s99, %s113
      %p115 = scmp.eq.s32.totalorder %s33, 0
      %p116 = por %p114, %p115
      %s118 = sadd.s32 %s117, 1
      %p121 = scmp.eq.s32.totalorder %s27, 7
      %p122 = scmp.ne.s32.totalorder %s117, %s119
      %p123 = scmp.eq.s32.totalorder %s27, 0
      %p124 = por %p122, %p123
      %p125 = scmp.ne.s32.totalorder %s117, %s119
      %p126 = scmp.eq.s32.totalorder %s32, 7
      %p127 = por %p125, %p126
      %p128 = scmp.ne.s32.totalorder %s119, %s120
      %p129 = scmp.eq.s32.totalorder %s32, 0
      %p130 = por %p128, %p129
      %p131 = scmp.ne.s32.totalorder %s119, %s120
      %p132 = scmp.eq.s32.totalorder %s33, 7
      %p133 = por %p131, %p132
      %p135 = scmp.ne.s32.totalorder %s120, %s134
      %p136 = scmp.eq.s32.totalorder %s33, 0
      %p137 = por %p135, %p136
      %s139 = sadd.s32 %s138, 1
      %p142 = scmp.eq.s32.totalorder %s27, 7
      %p143 = scmp.ne.s32.totalorder %s138, %s140
      %p144 = scmp.eq.s32.totalorder %s27, 0
      %p145 = por %p143, %p144
      %p146 = scmp.ne.s32.totalorder %s138, %s140
      %p147 = scmp.eq.s32.totalorder %s32, 7
      %p148 = por %p146, %p147
      %p149 = scmp.ne.s32.totalorder %s140, %s141
      %p150 = scmp.eq.s32.totalorder %s32, 0
      %p151 = por %p149, %p150
      %p152 = scmp.ne.s32.totalorder %s140, %s141
      %p153 = scmp.eq.s32.totalorder %s33, 7
      %p154 = por %p152, %p153
      %p156 = scmp.ne.s32.totalorder %s141, %s155
      %p157 = scmp.eq.s32.totalorder %s33, 0
      %p158 = por %p156, %p157
      %s160 = sadd.s32 %s159, 1
      %p163 = scmp.eq.s32.totalorder %s27, 7
      %p164 = scmp.ne.s32.totalorder %s159, %s161
      %p165 = scmp.eq.s32.totalorder %s27, 0
      %p166 = por %p164, %p165
      %p167 = scmp.ne.s32.totalorder %s159, %s161
      %p168 = scmp.eq.s32.totalorder %s32, 7
      %p169 = por %p167, %p168
      %p170 = scmp.ne.s32.totalorder %s161, %s162
      %p171 = scmp.eq.s32.totalorder %s32, 0
      %p172 = por %p170, %p171
      %p173 = scmp.ne.s32.totalorder %s161, %s162
      %p174 = scmp.eq.s32.totalorder %s33, 7
      %p175 = por %p173, %p174
      %p177 = scmp.ne.s32.totalorder %s162, %s176
      %p178 = scmp.eq.s32.totalorder %s33, 0
      %p179 = por %p177, %p178
      %s181 = sadd.s32 %s180, 1
      %p184 = scmp.eq.s32.totalorder %s27, 7
      %p185 = scmp.ne.s32.totalorder %s180, %s182
      %p186 = scmp.eq.s32.totalorder %s27, 0
      %p187 = por %p185, %p186
      %p188 = scmp.ne.s32.totalorder %s180, %s182
      %p189 = scmp.eq.s32.totalorder %s32, 7
      %p190 = por %p188, %p189
      %p191 = scmp.ne.s32.totalorder %s182, %s183
      %p192 = scmp.eq.s32.totalorder %s32, 0
      %p193 = por %p191, %p192
      %p194 = scmp.ne.s32.totalorder %s182, %s183
      %p195 = scmp.eq.s32.totalorder %s33, 7
      %p196 = por %p194, %p195
      %p198 = scmp.ne.s32.totalorder %s183, %s197
      %p199 = scmp.eq.s32.totalorder %s33, 0
      %p200 = por %p198, %p199
      %s202 = sadd.s32 %s201, 1
      %p205 = scmp.eq.s32.totalorder %s27, 7
      %p206 = scmp.ne.s32.totalorder %s201, %s203
      %p207 = scmp.eq.s32.totalorder %s27, 0
      %p208 = por %p206, %p207
      %p209 = scmp.ne.s32.totalorder %s201, %s203
      %p210 = scmp.eq.s32.totalorder %s32, 7
      %p211 = por %p209, %p210
      %p212 = scmp.ne.s32.totalorder %s203, %s204
      %p213 = scmp.eq.s32.totalorder %s32, 0
      %p214 = por %p212, %p213
      %p215 = scmp.ne.s32.totalorder %s203, %s204
      %p216 = scmp.eq.s32.totalorder %s33, 7
      %p217 = por %p215, %p216
      %p219 = scmp.ne.s32.totalorder %s204, %s218
      %p220 = scmp.eq.s32.totalorder %s33, 0
      %p221 = por %p219, %p220
      %s223 = sadd.s32 %s222, 1
      %p226 = scmp.eq.s32.totalorder %s27, 7
      %p227 = scmp.ne.s32.totalorder %s222, %s224
      %p228 = scmp.eq.s32.totalorder %s27, 0
      %p229 = por %p227, %p228
      %p230 = scmp.ne.s32.totalorder %s222, %s224
      %p231 = scmp.eq.s32.totalorder %s32, 7
      %p232 = por %p230, %p231
      %p233 = scmp.ne.s32.totalorder %s224, %s225
      %p234 = scmp.eq.s32.totalorder %s32, 0
      %p235 = por %p233, %p234
      %p236 = scmp.ne.s32.totalorder %s224, %s225
      %p237 = scmp.eq.s32.totalorder %s33, 7
      %p238 = por %p236, %p237
      %p240 = scmp.ne.s32.totalorder %s225, %s239
      %p241 = scmp.eq.s32.totalorder %s33, 0
      %p242 = por %p240, %p241
      %s244 = sadd.s32 %s243, 1
      %p247 = scmp.eq.s32.totalorder %s27, 7
      %p248 = scmp.ne.s32.totalorder %s243, %s245
      %p249 = scmp.eq.s32.totalorder %s27, 0
      %p250 = por %p248, %p249
      %p251 = scmp.ne.s32.totalorder %s243, %s245
      %p252 = scmp.eq.s32.totalorder %s32, 7
      %p253 = por %p251, %p252
      %p254 = scmp.ne.s32.totalorder %s245, %s246
      %p255 = scmp.eq.s32.totalorder %s32, 0
      %p256 = por %p254, %p255
      %p257 = scmp.ne.s32.totalorder %s245, %s246
      %p258 = scmp.eq.s32.totalorder %s33, 7
      %p259 = por %p257, %p258
      %p261 = scmp.ne.s32.totalorder %s246, %s260
      %p262 = scmp.eq.s32.totalorder %s33, 0
      %p263 = por %p261, %p262
      %s265 = sadd.s32 %s264, 1
      %p268 = scmp.eq.s32.totalorder %s27, 7
      %p269 = scmp.ne.s32.totalorder %s264, %s266
      %p270 = scmp.eq.s32.totalorder %s27, 0
      %p271 = por %p269, %p270
      %p272 = scmp.ne.s32.totalorder %s264, %s266
      %p273 = scmp.eq.s32.totalorder %s32, 7
      %p274 = por %p272, %p273
      %p275 = scmp.ne.s32.totalorder %s266, %s267
      %p276 = scmp.eq.s32.totalorder %s32, 0
      %p277 = por %p275, %p276
      %p278 = scmp.ne.s32.totalorder %s266, %s267
      %p279 = scmp.eq.s32.totalorder %s33, 7
      %p280 = por %p278, %p279
      %p282 = scmp.ne.s32.totalorder %s267, %s281
      %p283 = scmp.eq.s32.totalorder %s33, 0
      %p284 = por %p282, %p283
      %s286 = sadd.s32 %s285, 1
      %p289 = scmp.eq.s32.totalorder %s27, 7
      %p290 = scmp.ne.s32.totalorder %s285, %s287
      %p291 = scmp.eq.s32.totalorder %s27, 0
      %p292 = por %p290, %p291
      %p293 = scmp.ne.s32.totalorder %s285, %s287
      %p294 = scmp.eq.s32.totalorder %s32, 7
      %p295 = por %p293, %p294
      %p296 = scmp.ne.s32.totalorder %s287, %s288
      %p297 = scmp.eq.s32.totalorder %s32, 0
      %p298 = por %p296, %p297
      %p299 = scmp.ne.s32.totalorder %s287, %s288
      %p300 = scmp.eq.s32.totalorder %s33, 7
      %p301 = por %p299, %p300
      %p303 = scmp.ne.s32.totalorder %s288, %s302
      %p304 = scmp.eq.s32.totalorder %s33, 0
      %p305 = por %p303, %p304
      %s307 = sadd.s32 %s306, 1
      %p310 = scmp.eq.s32.totalorder %s27, 7
      %p311 = scmp.ne.s32.totalorder %s306, %s308
      %p312 = scmp.eq.s32.totalorder %s27, 0
      %p313 = por %p311, %p312
      %p314 = scmp.ne.s32.totalorder %s306, %s308
      %p315 = scmp.eq.s32.totalorder %s32, 7
      %p316 = por %p314, %p315
      %p317 = scmp.ne.s32.totalorder %s308, %s309
      %p318 = scmp.eq.s32.totalorder %s32, 0
      %p319 = por %p317, %p318
      %p320 = scmp.ne.s32.totalorder %s308, %s309
      %p321 = scmp.eq.s32.totalorder %s33, 7
      %p322 = por %p320, %p321
      %p324 = scmp.ne.s32.totalorder %s309, %s323
      %p325 = scmp.eq.s32.totalorder %s33, 0
      %p326 = por %p324, %p325
      %s327 = ssub.s32 %s34, %s46
      %s328 = ssub.s32 %s35, %s42
      %s329 = sor.u32 %s327, %s328
      %p330 = scmp.eq.s32.totalorder %s329, 0
      %s332 = sadd.s32 %s331, 1
      %s333 = scalar_select %p330, %s331, %s332
      %p336 = pneg %p330
      %p337 = scmp.eq.s32.totalorder %s27, 7
      %p338 = por %p336, %p337
      %p339 = scmp.ne.s32.totalorder %s331, %s334
      %p340 = scmp.eq.s32.totalorder %s27, 0
      %p341 = por %p339, %p340
      %p342 = scmp.ne.s32.totalorder %s331, %s334
      %p343 = scmp.eq.s32.totalorder %s32, 7
      %p344 = por %p342, %p343
      %p345 = scmp.ne.s32.totalorder %s334, %s335
      %p346 = scmp.eq.s32.totalorder %s32, 0
      %p347 = por %p345, %p346
      %p348 = scmp.ne.s32.totalorder %s334, %s335
      %p349 = scmp.eq.s32.totalorder %s33, 7
      %p350 = por %p348, %p349
      %p352 = scmp.ne.s32.totalorder %s335, %s351
      %p353 = scmp.eq.s32.totalorder %s33, 0
      %p354 = por %p352, %p353
      %p355 = scmp.le.s32.totalorder 1, %s27
      %p356 = scmp.lt.s32.totalorder %s27, 9
      %p357 = pnand %p355, %p356
      %p358 = pneg %p357
      // Predicated region
      $region9: #{tpu_custom_call.1} parent=5 // pred_check
        _
      $region10: #{tpu_custom_call.1} parent=5 // pred_check_branch
        %360 = sbr.rel (%p357) target = $region12
      $region11: #{tpu_custom_call.1} parent=5 // pred_region
        %s361 = ssub.s32 %s27, 1
        // Predicated region
        $region13: #{tpu_custom_call.1} parent=11 // pred_check
          %p362 = pneg %p88
        $region14: #{tpu_custom_call.1} parent=11 // pred_check_branch
          %364 = sbr.rel (%p362) target = $region16
        $region15: #{tpu_custom_call.1} parent=11 // pred_region
          %s366 = ssub.s32 512, 512
          %367 = vsyncadd [#allocation11], %s366
          %s368 = sshll.u32 [#allocation10], 4
          %s369 = int_to_ptr.vmem [resolvable:$true] %s368
          %374 = dma.hbm_to_vmem [thread:$0]  %s1, 512, %s369, [#allocation11], 128, 128, 8
        $region16: #{tpu_custom_call.1} parent=11 // pred_fallthru
          _
        // Predicated region
        $region17: #{tpu_custom_call.1} parent=11 // pred_check
          %p375 = pneg %p109
        $region18: #{tpu_custom_call.1} parent=11 // pred_check_branch
          %377 = sbr.rel (%p375) target = $region20
        $region19: #{tpu_custom_call.1} parent=11 // pred_region
          _
        $region20: #{tpu_custom_call.1} parent=11 // pred_fallthru
          _
        // Predicated region
        $region21: #{tpu_custom_call.1} parent=11 // pred_check
          %p378 = pneg %p130
        $region22: #{tpu_custom_call.1} parent=11 // pred_check_branch
          %380 = sbr.rel (%p378) target = $region24
        $region23: #{tpu_custom_call.1} parent=11 // pred_region
          %s382 = ssub.s32 512, 512
          %383 = vsyncadd [#allocation11], %s382
          %s384 = sshll.u32 [#allocation12], 4
          %s385 = int_to_ptr.vmem [resolvable:$true] %s384
          %390 = dma.hbm_to_vmem [thread:$0]  %s3, 512, %s385, [#allocation11], 128, 128, 8
        $region24: #{tpu_custom_call.1} parent=11 // pred_fallthru
          _
        // Predicated region
        $region25: #{tpu_custom_call.1} parent=11 // pred_check
          %p391 = pneg %p151
        $region26: #{tpu_custom_call.1} parent=11 // pred_check_branch
          %393 = sbr.rel (%p391) target = $region28
        $region27: #{tpu_custom_call.1} parent=11 // pred_region
          _
        $region28: #{tpu_custom_call.1} parent=11 // pred_fallthru
          _
        // Predicated region
        $region29: #{tpu_custom_call.1} parent=11 // pred_check
          %p394 = pneg %p172
        $region30: #{tpu_custom_call.1} parent=11 // pred_check_branch
          %396 = sbr.rel (%p394) target = $region32
        $region31: #{tpu_custom_call.1} parent=11 // pred_region
          _
        $region32: #{tpu_custom_call.1} parent=11 // pred_fallthru
          _
        // Predicated region
        $region33: #{tpu_custom_call.1} parent=11 // pred_check
          %p397 = pneg %p193
        $region34: #{tpu_custom_call.1} parent=11 // pred_check_branch
          %399 = sbr.rel (%p397) target = $region36
        $region35: #{tpu_custom_call.1} parent=11 // pred_region
          _
        $region36: #{tpu_custom_call.1} parent=11 // pred_fallthru
          _
        // Predicated region
        $region37: #{tpu_custom_call.1} parent=11 // pred_check
          %p400 = pneg %p214
        $region38: #{tpu_custom_call.1} parent=11 // pred_check_branch
          %402 = sbr.rel (%p400) target = $region40
        $region39: #{tpu_custom_call.1} parent=11 // pred_region
          _
        $region40: #{tpu_custom_call.1} parent=11 // pred_fallthru
          _
        // Predicated region
        $region41: #{tpu_custom_call.1} parent=11 // pred_check
          %p403 = pneg %p235
        $region42: #{tpu_custom_call.1} parent=11 // pred_check_branch
          %405 = sbr.rel (%p403) target = $region44
        $region43: #{tpu_custom_call.1} parent=11 // pred_region
          _
        $region44: #{tpu_custom_call.1} parent=11 // pred_fallthru
          _
        // Predicated region
        $region45: #{tpu_custom_call.1} parent=11 // pred_check
          %p406 = pneg %p256
        $region46: #{tpu_custom_call.1} parent=11 // pred_check_branch
          %408 = sbr.rel (%p406) target = $region48
        $region47: #{tpu_custom_call.1} parent=11 // pred_region
          %s410 = ssub.s32 512, 512
          %411 = vsyncadd [#allocation14], %s410
          %s412 = sshll.u32 [#allocation13], 4
          %s413 = int_to_ptr.vmem [resolvable:$true] %s412
          %418 = dma.hbm_to_vmem [thread:$0]  %s9, 512, %s413, [#allocation14], 128, 128, 8
        $region48: #{tpu_custom_call.1} parent=11 // pred_fallthru
          _
        // Predicated region
        $region49: #{tpu_custom_call.1} parent=11 // pred_check
          %p419 = pneg %p277
        $region50: #{tpu_custom_call.1} parent=11 // pred_check_branch
          %421 = sbr.rel (%p419) target = $region52
        $region51: #{tpu_custom_call.1} parent=11 // pred_region
          _
        $region52: #{tpu_custom_call.1} parent=11 // pred_fallthru
          _
        // Predicated region
        $region53: #{tpu_custom_call.1} parent=11 // pred_check
          %p422 = pneg %p298
        $region54: #{tpu_custom_call.1} parent=11 // pred_check_branch
          %424 = sbr.rel (%p422) target = $region56
        $region55: #{tpu_custom_call.1} parent=11 // pred_region
          %s426 = ssub.s32 512, 512
          %427 = vsyncadd [#allocation14], %s426
          %s428 = sshll.u32 [#allocation15], 4
          %s429 = int_to_ptr.vmem [resolvable:$true] %s428
          %434 = dma.hbm_to_vmem [thread:$0]  %s11, 512, %s429, [#allocation14], 128, 128, 8
        $region56: #{tpu_custom_call.1} parent=11 // pred_fallthru
          _
        // Predicated region
        $region57: #{tpu_custom_call.1} parent=11 // pred_check
          %p435 = pneg %p319
        $region58: #{tpu_custom_call.1} parent=11 // pred_check_branch
          %437 = sbr.rel (%p435) target = $region60
        $region59: #{tpu_custom_call.1} parent=11 // pred_region
          _
        $region60: #{tpu_custom_call.1} parent=11 // pred_fallthru
          _
      $region12: #{tpu_custom_call.1} parent=5 // pred_fallthru
        _
      %p438 = scmp.lt.s32.totalorder %s27, 8
      // Predicated region
      $region61: #{tpu_custom_call.1} parent=5 // pred_check
        %p439 = pneg %p438
      $region62: #{tpu_custom_call.1} parent=5 // pred_check_branch
        %441 = sbr.rel (%p439) target = $region64
      $region63: #{tpu_custom_call.1} parent=5 // pred_region
        // Predicated region
        $region65: #{tpu_custom_call.1} parent=63 // pred_check
          %p442 = pneg %p61
        $region66: #{tpu_custom_call.1} parent=63 // pred_check_branch
          %444 = sbr.rel (%p442) target = $region68
        $region67: #{tpu_custom_call.1} parent=63 // pred_region
          %s445 = sand.u32 %s51, 1
          %s446 = scalar_lea.sflag [#allocation8], %s445
          %s447 = sand.u32 %s51, 1
          %s448 = smul.addr %s447, 8
          %s449 = scalar_lea.vmem [#allocation7], %s448
          %s451 = ssub.s32 128, 128
          %452 = vsyncadd %s446, %s451
          %s453 = smul.addr %s34, 4
          %s454 = sadd.s32 %s35, %s453
          %s455 = smul.addr %s454, 128
          %s456 = scalar_lea.hbm %s0, %s455
          %s458 = sshll.u32 %s449, 4
          %s459 = int_to_ptr.vmem [resolvable:$true] %s458
          %461 = dma.hbm_to_vmem [thread:$0]  %s456, 128, %s459, %s446
        $region68: #{tpu_custom_call.1} parent=63 // pred_fallthru
          _
      $region64: #{tpu_custom_call.1} parent=5 // pred_fallthru
        _
      %p462 = scmp.le.s32.totalorder 1, %s27
      %p463 = scmp.lt.s32.totalorder %s27, 9
      %p464 = pnand %p462, %p463
      %p465 = pneg %p464
      // Predicated region
      $region69: #{tpu_custom_call.1} parent=5 // pred_check
        _
      $region70: #{tpu_custom_call.1} parent=5 // pred_check_branch
        %467 = sbr.rel (%p464) target = $region72
      $region71: #{tpu_custom_call.1} parent=5 // pred_region
        %s468 = ssub.s32 %s27, 1
        %s469 = sand.u32 %s54, 1
        %s470 = scalar_lea.sflag [#allocation8], %s469
        %s471 = sand.u32 %s54, 1
        %s472 = smul.addr %s471, 8
        %s473 = scalar_lea.vmem [#allocation7], %s472
        // Predicated region
        $region73: #{tpu_custom_call.1} parent=71 // pred_check
          %p474 = pneg %p67
        $region74: #{tpu_custom_call.1} parent=71 // pred_check_branch
          %476 = sbr.rel (%p474) target = $region76
        $region75: #{tpu_custom_call.1} parent=71 // pred_region
          %477 = dma.done %s470, 128
        $region76: #{tpu_custom_call.1} parent=71 // pred_fallthru
          _
        // Predicated region
        $region77: #{tpu_custom_call.1} parent=71 // pred_check
          %p478 = pneg %p88
        $region78: #{tpu_custom_call.1} parent=71 // pred_check_branch
          %480 = sbr.rel (%p478) target = $region80
        $region79: #{tpu_custom_call.1} parent=71 // pred_region
          %481 = dma.done [#allocation11], 512
        $region80: #{tpu_custom_call.1} parent=71 // pred_fallthru
          _
        // Predicated region
        $region81: #{tpu_custom_call.1} parent=71 // pred_check
          %p482 = pneg %p130
        $region82: #{tpu_custom_call.1} parent=71 // pred_check_branch
          %484 = sbr.rel (%p482) target = $region84
        $region83: #{tpu_custom_call.1} parent=71 // pred_region
          %485 = dma.done [#allocation11], 512
        $region84: #{tpu_custom_call.1} parent=71 // pred_fallthru
          _
        // Predicated region
        $region85: #{tpu_custom_call.1} parent=71 // pred_check
          %p486 = pneg %p256
        $region86: #{tpu_custom_call.1} parent=71 // pred_check_branch
          %488 = sbr.rel (%p486) target = $region88
        $region87: #{tpu_custom_call.1} parent=71 // pred_region
          %489 = dma.done [#allocation14], 512
        $region88: #{tpu_custom_call.1} parent=71 // pred_fallthru
          _
        // Predicated region
        $region89: #{tpu_custom_call.1} parent=71 // pred_check
          %p490 = pneg %p298
        $region90: #{tpu_custom_call.1} parent=71 // pred_check_branch
          %492 = sbr.rel (%p490) target = $region92
        $region91: #{tpu_custom_call.1} parent=71 // pred_region
          %493 = dma.done [#allocation14], 512
        $region92: #{tpu_custom_call.1} parent=71 // pred_fallthru
          _
        %s494 = sand.u32 %s54, 1
        %s495 = scalar_lea.sflag [#allocation8], %s494
        %s496 = sand.u32 %s54, 1
        %s497 = smul.addr %s496, 8
        %s498 = scalar_lea.vmem [#allocation7], %s497
        %p499 = pneg %p67
        %p500 = pneg %p64
        %p501 = pneg %p88
        %p502 = pneg %p85
        %p503 = pneg %p109
        %p504 = pneg %p106
        %p505 = pneg %p130
        %p506 = pneg %p127
        %p507 = pneg %p151
        %p508 = pneg %p148
        %p509 = pneg %p172
        %p510 = pneg %p169
        %p511 = pneg %p193
        %p512 = pneg %p190
        %p513 = pneg %p214
        %p514 = pneg %p211
        %p515 = pneg %p235
        %p516 = pneg %p232
        %p517 = pneg %p256
        %p518 = pneg %p253
        %p519 = pneg %p277
        %p520 = pneg %p274
        %p521 = pneg %p298
        %p522 = pneg %p295
        %p523 = pneg %p319
        %p524 = pneg %p316
        %p525 = pneg %p347
        %p526 = pneg %p344
        %s527 = sand.u32 %s334, 1
        %s528 = scalar_lea.sflag [#allocation9], %s527
        %s529 = sand.u32 %s334, 1
        %s530 = smul.addr %s529, 8
        %s531 = scalar_lea.vmem [#allocation16], %s530
        %v532 = vld [vmem:[%s473] sm:$0xff]
        %v533 = vld [vmem:[%s5] sm:$0x1]
        %v534 = vld [vmem:[%s6] sm:$0x1]
        %vm535 = vcmask 261120
        %v536 = vsel %vm535, %v532, 0.0
        %537 = vadd.xlane.f32.xlu0 %v536
        %v538 = vpop.xlane.xlu0 %537
        %v539 = vrcp.pop 32.0
        %v540 = vmul.f32 %v538, %v539
        %v541 = vsub.f32 %v532, %v540
        %v542 = vmul.f32 %v541, %v541
        %v543 = vsel %vm535, %v542, 0.0
        %544 = vadd.xlane.f32.xlu0 %v543
        %v545 = vpop.xlane.xlu0 %544
        %v546 = vmul.f32 %v545, 0.032258064
        %v548 = vlaneseq
        %v549 = vshrl.u32 %v548, 7
        %v550 = vsub.s32 0, %v549
        %v551 = vrot.slane %v533, %v550
        %v553 = vmul.f32 %v551, %v541
        %v554 = vrsqrt.pop %v546
        %v555 = vmul.f32 %v546, %v554
        %vm556 = vcmp.eq.f32.partialorder %v546, inf
        %v557 = vsel %vm556, %v546, %v555
        %vm558 = vcmp.eq.f32.partialorder %v546, 0.0
        %v559 = vand.u32 %v546, 2147483648
        %v560 = vsel %vm558, %v559, %v557
        %v561 = vadd.f32 %v560, 1e-06
        %v562 = vrcp.pop %v561
        %v563 = vmul.f32 %v553, %v562
        %v565 = vlaneseq
        %v566 = vshrl.u32 %v565, 7
        %v567 = vsub.s32 0, %v566
        %v568 = vrot.slane %v534, %v567
        %v570 = vadd.f32 %v563, %v568
        %v571 = vld [vmem:[#allocation10] sm:$0xff]
        %v572 = vld [vmem:[#allocation10 + $0x8] sm:$0xff]
        %v573 = vld [vmem:[#allocation10 + $0x10] sm:$0xff]
        %v574 = vld [vmem:[#allocation10 + $0x18] sm:$0xff]
        %v575 = vld [vmem:[%s2] sm:$0x1]
        %v577 = vlaneseq
        %v578 = vshrl.u32 %v577, 7
        %v579 = vsub.s32 0, %v578
        %v580 = vrot.slane %v575, %v579
        %v583 = vsel %vm535, %v570, 0
        %585 = vmatprep.subr.mxu0 0.0
        %586 = vmatpush1.msra.mxu0 0.0
        %587 = vmatprep.subr.mxu0 0.0
        %588 = vmatpush1.msra.mxu0 0.0
        %589 = vmatprep.subr.mxu0 0.0
        %590 = vmatpush1.msra.mxu0 0.0
        %591 = vmatprep.subr.mxu0 0.0
        %592 = vmatpush1.msra.mxu0 0.0
        %593 = vmatprep.subr.mxu0 0.0
        %594 = vmatpush1.msra.mxu0 0.0
        %595 = vmatprep.subr.mxu0 0.0
        %596 = vmatpush1.msra.mxu0 0.0
        %597 = vmatprep.subr.mxu0 0.0
        %598 = vmatpush1.msra.mxu0 0.0
        %599 = vmatprep.subr.mxu0 0.0
        %600 = vmatpush1.msra.mxu0 0.0
        %601 = vmatprep.subr.mxu0 0.0
        %602 = vmatpush1.msra.mxu0 0.0
        %603 = vmatprep.subr.mxu0 0.0
        %604 = vmatpush1.msra.mxu0 0.0
        %605 = vmatprep.subr.mxu0 0.0
        %606 = vmatpush1.msra.mxu0 0.0
        %607 = vmatprep.subr.mxu0 0.0
        %608 = vmatpush1.msra.mxu0 0.0
        %609 = vmatprep.subr.mxu0 0.0
        %610 = vmatpush1.msra.mxu0 %v574
        %611 = vmatprep.subr.mxu0 0.0
        %612 = vmatpush1.msra.mxu0 %v573
        %613 = vmatprep.subr.mxu0 0.0
        %614 = vmatpush1.msra.mxu0 %v572
        %615 = vmatprep.subr.mxu0 0.0
        %616 = vmatpush1.msra.mxu0 %v571
        %617 = vmatprep.subr.mxu0 0.0
        %618 = vmatpush2.msra.mxu0 0.0
        %619 = vmatprep.subr.mxu0 0.0
        %620 = vmatpush2.msra.mxu0 0.0
        %621 = vmatprep.subr.mxu0 0.0
        %622 = vmatpush2.msra.mxu0 0.0
        %623 = vmatprep.subr.mxu0 0.0
        %624 = vmatpush2.msra.mxu0 0.0
        %625 = vmatprep.subr.mxu0 0.0
        %626 = vmatpush2.msra.mxu0 0.0
        %627 = vmatprep.subr.mxu0 0.0
        %628 = vmatpush2.msra.mxu0 0.0
        %629 = vmatprep.subr.mxu0 0.0
        %630 = vmatpush2.msra.mxu0 0.0
        %631 = vmatprep.subr.mxu0 0.0
        %632 = vmatpush2.msra.mxu0 0.0
        %633 = vmatprep.subr.mxu0 0.0
        %634 = vmatpush2.msra.mxu0 0.0
        %635 = vmatprep.subr.mxu0 0.0
        %636 = vmatpush2.msra.mxu0 0.0
        %637 = vmatprep.subr.mxu0 0.0
        %638 = vmatpush2.msra.mxu0 0.0
        %639 = vmatprep.subr.mxu0 0.0
        %640 = vmatpush2.msra.mxu0 0.0
        %641 = vmatprep.subr.mxu0 0.0
        %642 = vmatpush2.msra.mxu0 0.0
        %643 = vmatprep.subr.mxu0 0.0
        %644 = vmatpush2.msra.mxu0 0.0
        %645 = vmatprep.subr.mxu0 0.0
        %646 = vmatpush2.msra.mxu0 0.0
        %647 = vmatprep.subr.mxu0 0.0
        %648 = vmatpush2.msra.mxu0 0.0
        %649 = vmatprep.mubr.f32.mxu0 0.0
        %650 = vmatmul.mubr.f32.gmra.mxu0 %v583
        %v651 = vpop.f32.mrf.mxu0
        %v652 = vadd.f32 %v580, %v651
        %v653 = vpop.f32.mrf.mxu0
        %654 = vdwg.mxu0
        %v655 = vmul.f32 %v652, 0.17677669
        %s656 = smul.u32 %s37, 8
        %658 = vrot.lane.b32.xlu0 %v652, 96
        %v659 = vpop.permute.xlu0 %658
        %s661 = scalar_lea.vmem [#allocation2], %s656
        %662 = vst.msk [vmem:[%s661] sm:$0xff] %vm535, %v659
        %663 = vrot.lane.b32.xlu0 %v652, 64
        %v664 = vpop.permute.xlu0 %663
        %s666 = scalar_lea.vmem [#allocation3], %s656
        %667 = vst.msk [vmem:[%s666] sm:$0xff] %vm535, %v664
        %vm668 = vcmask 7168
        %669 = vst.msk [vmem:[#allocation4] sm:$0xff] %vm668, -inf
        %670 = vst.msk [vmem:[#allocation5] sm:$0xff] %vm668, 0.0
        %671 = vst.msk [vmem:[#allocation6] sm:$0xff] %vm535, 0.0
        // While loop
        $region93: #{tpu_custom_call.1} parent=71 // loop_pre_header
          _
        $region94: #{tpu_custom_call.1} parent=71 // loop_header
          %s673 = sphi 0, %s675
          %p674 = scmp.ge.s32.totalorder %s673, %s37
        $region95: #{tpu_custom_call.1} parent=71 // loop_header_branch
          %677 = sbr.rel (%p674) target = $region99
        $region96: #{tpu_custom_call.1} parent=71 // loop_body
          %s678 = smul.u32 %s673, 8
          %s679 = scalar_lea.vmem [#allocation2], %s678
          %v680 = vld [vmem:[%s679] sm:$0xff]
          %s681 = scalar_lea.vmem [#allocation3], %s678
          %v682 = vld [vmem:[%s681] sm:$0xff]
          %v684 = vsel %vm535, %v655, 0
          %v687 = vsel %vm535, %v680, 0
          %689 = vmatprep.subr.mxu0 0.0
          %690 = vmatpush1.xpose.msra.mxu0 0.0
          %691 = vmatprep.subr.mxu0 0.0
          %692 = vmatpush1.xpose.msra.mxu0 0.0
          %693 = vmatprep.subr.mxu0 0.0
          %694 = vmatpush1.xpose.msra.mxu0 0.0
          %695 = vmatprep.subr.mxu0 0.0
          %696 = vmatpush1.xpose.msra.mxu0 0.0
          %697 = vmatprep.subr.mxu0 0.0
          %698 = vmatpush1.xpose.msra.mxu0 0.0
          %699 = vmatprep.subr.mxu0 0.0
          %700 = vmatpush1.xpose.msra.mxu0 0.0
          %701 = vmatprep.subr.mxu0 0.0
          %702 = vmatpush1.xpose.msra.mxu0 0.0
          %703 = vmatprep.subr.mxu0 0.0
          %704 = vmatpush1.xpose.msra.mxu0 0.0
          %705 = vmatprep.subr.mxu0 0.0
          %706 = vmatpush1.xpose.msra.mxu0 0.0
          %707 = vmatprep.subr.mxu0 0.0
          %708 = vmatpush1.xpose.msra.mxu0 0.0
          %709 = vmatprep.subr.mxu0 0.0
          %710 = vmatpush1.xpose.msra.mxu0 0.0
          %711 = vmatprep.subr.mxu0 0.0
          %712 = vmatpush1.xpose.msra.mxu0 0.0
          %713 = vmatprep.subr.mxu0 0.0
          %714 = vmatpush1.xpose.msra.mxu0 0.0
          %715 = vmatprep.subr.mxu0 0.0
          %716 = vmatpush1.xpose.msra.mxu0 0.0
          %717 = vmatprep.subr.mxu0 0.0
          %718 = vmatpush1.xpose.msra.mxu0 0.0
          %719 = vmatprep.subr.mxu0 0.0
          %720 = vmatpush1.xpose.msra.mxu0 %v687
          %721 = vmatprep.subr.mxu0 0.0
          %722 = vmatpush2.xpose.msra.mxu0 0.0
          %723 = vmatprep.subr.mxu0 0.0
          %724 = vmatpush2.xpose.msra.mxu0 0.0
          %725 = vmatprep.subr.mxu0 0.0
          %726 = vmatpush2.xpose.msra.mxu0 0.0
          %727 = vmatprep.subr.mxu0 0.0
          %728 = vmatpush2.xpose.msra.mxu0 0.0
          %729 = vmatprep.subr.mxu0 0.0
          %730 = vmatpush2.xpose.msra.mxu0 0.0
          %731 = vmatprep.subr.mxu0 0.0
          %732 = vmatpush2.xpose.msra.mxu0 0.0
          %733 = vmatprep.subr.mxu0 0.0
          %734 = vmatpush2.xpose.msra.mxu0 0.0
          %735 = vmatprep.subr.mxu0 0.0
          %736 = vmatpush2.xpose.msra.mxu0 0.0
          %737 = vmatprep.subr.mxu0 0.0
          %738 = vmatpush2.xpose.msra.mxu0 0.0
          %739 = vmatprep.subr.mxu0 0.0
          %740 = vmatpush2.xpose.msra.mxu0 0.0
          %741 = vmatprep.subr.mxu0 0.0
          %742 = vmatpush2.xpose.msra.mxu0 0.0
          %743 = vmatprep.subr.mxu0 0.0
          %744 = vmatpush2.xpose.msra.mxu0 0.0
          %745 = vmatprep.subr.mxu0 0.0
          %746 = vmatpush2.xpose.msra.mxu0 0.0
          %747 = vmatprep.subr.mxu0 0.0
          %748 = vmatpush2.xpose.msra.mxu0 0.0
          %749 = vmatprep.subr.mxu0 0.0
          %750 = vmatpush2.xpose.msra.mxu0 0.0
          %751 = vmatprep.subr.mxu0 0.0
          %752 = vmatpush2.xpose.msra.mxu0 0.0
          %753 = vmatprep.mubr.f32.mxu0 0.0
          %754 = vmatmul.mubr.f32.gmra.mxu0 %v684
          %v755 = vpop.f32.mrf.mxu0
          %v756 = vadd.f32 0.0, %v755
          %v757 = vpop.f32.mrf.mxu0
          %758 = vdwg.mxu0
          %v759 = vld [vmem:[#allocation4] sm:$0xff]
          %vm760 = vcmask 64512
          %v761 = vsel %vm760, %v756, -inf
          %762 = vmax.xlane.f32.xlu0 %v761
          %v763 = vpop.xlane.xlu0 %762
          %v764 = vmax.f32 %v759, %v763
          %v765 = vsub.f32 %v759, %v764
          %v766 = vmul.f32 %v765, 1.442695
          %v767 = vpow.pop %v766
          %769 = vset.pattern.permute.xlu0 0
          %770 = vperm.xlu0 %769, %v764
          %v771 = vpop.permute.xlu0 %770
          %v773 = vsub.f32 %v756, %v771
          %v774 = vmul.f32 %v773, 1.442695
          %v775 = vpow.pop %v774
          %v776 = vld [vmem:[#allocation5] sm:$0xff]
          %v777 = vmul.f32 %v767, %v776
          %v778 = vsel %vm760, %v775, 0.0
          %779 = vadd.xlane.f32.xlu0 %v778
          %v780 = vpop.xlane.xlu0 %779
          %v781 = vadd.f32 %v777, %v780
          %782 = vst.msk [vmem:[#allocation5] sm:$0xff] %vm668, %v781
          %v783 = vld [vmem:[#allocation6] sm:$0xff]
          %785 = vset.pattern.permute.xlu0 0
          %786 = vperm.xlu0 %785, %v767
          %v787 = vpop.permute.xlu0 %786
          %v789 = vmul.f32 %v787, %v783
          %v791 = vsel %vm760, %v775, 0
          %793 = vmatprep.subr.mxu0 0.0
          %794 = vmatpush1.msra.mxu0 0.0
          %795 = vmatprep.subr.mxu0 0.0
          %796 = vmatpush1.msra.mxu0 0.0
          %797 = vmatprep.subr.mxu0 0.0
          %798 = vmatpush1.msra.mxu0 0.0
          %799 = vmatprep.subr.mxu0 0.0
          %800 = vmatpush1.msra.mxu0 0.0
          %801 = vmatprep.subr.mxu0 0.0
          %802 = vmatpush1.msra.mxu0 0.0
          %803 = vmatprep.subr.mxu0 0.0
          %804 = vmatpush1.msra.mxu0 0.0
          %805 = vmatprep.subr.mxu0 0.0
          %806 = vmatpush1.msra.mxu0 0.0
          %807 = vmatprep.subr.mxu0 0.0
          %808 = vmatpush1.msra.mxu0 0.0
          %809 = vmatprep.subr.mxu0 0.0
          %810 = vmatpush1.msra.mxu0 0.0
          %811 = vmatprep.subr.mxu0 0.0
          %812 = vmatpush1.msra.mxu0 0.0
          %813 = vmatprep.subr.mxu0 0.0
          %814 = vmatpush1.msra.mxu0 0.0
          %815 = vmatprep.subr.mxu0 0.0
          %816 = vmatpush1.msra.mxu0 0.0
          %817 = vmatprep.subr.mxu0 0.0
          %818 = vmatpush1.msra.mxu0 0.0
          %819 = vmatprep.subr.mxu0 0.0
          %820 = vmatpush1.msra.mxu0 0.0
          %821 = vmatprep.subr.mxu0 0.0
          %822 = vmatpush1.msra.mxu0 0.0
          %823 = vmatprep.subr.mxu0 0.0
          %824 = vmatpush1.msra.mxu0 %v682
          %825 = vmatprep.subr.mxu0 0.0
          %826 = vmatpush2.msra.mxu0 0.0
          %827 = vmatprep.subr.mxu0 0.0
          %828 = vmatpush2.msra.mxu0 0.0
          %829 = vmatprep.subr.mxu0 0.0
          %830 = vmatpush2.msra.mxu0 0.0
          %831 = vmatprep.subr.mxu0 0.0
          %832 = vmatpush2.msra.mxu0 0.0
          %833 = vmatprep.subr.mxu0 0.0
          %834 = vmatpush2.msra.mxu0 0.0
          %835 = vmatprep.subr.mxu0 0.0
          %836 = vmatpush2.msra.mxu0 0.0
          %837 = vmatprep.subr.mxu0 0.0
          %838 = vmatpush2.msra.mxu0 0.0
          %839 = vmatprep.subr.mxu0 0.0
          %840 = vmatpush2.msra.mxu0 0.0
          %841 = vmatprep.subr.mxu0 0.0
          %842 = vmatpush2.msra.mxu0 0.0
          %843 = vmatprep.subr.mxu0 0.0
          %844 = vmatpush2.msra.mxu0 0.0
          %845 = vmatprep.subr.mxu0 0.0
          %846 = vmatpush2.msra.mxu0 0.0
          %847 = vmatprep.subr.mxu0 0.0
          %848 = vmatpush2.msra.mxu0 0.0
          %849 = vmatprep.subr.mxu0 0.0
          %850 = vmatpush2.msra.mxu0 0.0
          %851 = vmatprep.subr.mxu0 0.0
          %852 = vmatpush2.msra.mxu0 0.0
          %853 = vmatprep.subr.mxu0 0.0
          %854 = vmatpush2.msra.mxu0 0.0
          %855 = vmatprep.subr.mxu0 0.0
          %856 = vmatpush2.msra.mxu0 0.0
          %857 = vmatprep.mubr.f32.mxu0 0.0
          %858 = vmatmul.mubr.f32.gmra.mxu0 %v791
          %v859 = vpop.f32.mrf.mxu0
          %v860 = vadd.f32 0.0, %v859
          %v861 = vpop.f32.mrf.mxu0
          %862 = vdwg.mxu0
          %v863 = vadd.f32 %v789, %v860
          %864 = vst.msk [vmem:[#allocation6] sm:$0xff] %vm535, %v863
          %865 = vst.msk [vmem:[#allocation4] sm:$0xff] %vm668, %v764
        $region97: #{tpu_custom_call.1} parent=71 // loop_footer
          %s675 = sadd.s32 %s673, 1
        $region98: #{tpu_custom_call.1} parent=71 // loop_footer_branch
          %672 = sbr.rel target = $region94
        $region99: #{tpu_custom_call.1} parent=71 // loop_exit
          _
        %v866 = vlaneseq
        %v867 = vshrl.u32 %v866, 7
        %v868 = vlaneseq
        %v869 = vand.u32 %v868, 127
        %vm870 = vcmp.gt.s32.totalorder %v869, %v867
        %v872 = vsel %vm535, %v655, 0
        %v874 = vsel %vm535, %v659, 0
        %876 = vmatprep.subr.mxu0 0.0
        %877 = vmatpush1.xpose.msra.mxu0 0.0
        %878 = vmatprep.subr.mxu0 0.0
        %879 = vmatpush1.xpose.msra.mxu0 0.0
        %880 = vmatprep.subr.mxu0 0.0
        %881 = vmatpush1.xpose.msra.mxu0 0.0
        %882 = vmatprep.subr.mxu0 0.0
        %883 = vmatpush1.xpose.msra.mxu0 0.0
        %884 = vmatprep.subr.mxu0 0.0
        %885 = vmatpush1.xpose.msra.mxu0 0.0
        %886 = vmatprep.subr.mxu0 0.0
        %887 = vmatpush1.xpose.msra.mxu0 0.0
        %888 = vmatprep.subr.mxu0 0.0
        %889 = vmatpush1.xpose.msra.mxu0 0.0
        %890 = vmatprep.subr.mxu0 0.0
        %891 = vmatpush1.xpose.msra.mxu0 0.0
        %892 = vmatprep.subr.mxu0 0.0
        %893 = vmatpush1.xpose.msra.mxu0 0.0
        %894 = vmatprep.subr.mxu0 0.0
        %895 = vmatpush1.xpose.msra.mxu0 0.0
        %896 = vmatprep.subr.mxu0 0.0
        %897 = vmatpush1.xpose.msra.mxu0 0.0
        %898 = vmatprep.subr.mxu0 0.0
        %899 = vmatpush1.xpose.msra.mxu0 0.0
        %900 = vmatprep.subr.mxu0 0.0
        %901 = vmatpush1.xpose.msra.mxu0 0.0
        %902 = vmatprep.subr.mxu0 0.0
        %903 = vmatpush1.xpose.msra.mxu0 0.0
        %904 = vmatprep.subr.mxu0 0.0
        %905 = vmatpush1.xpose.msra.mxu0 0.0
        %906 = vmatprep.subr.mxu0 0.0
        %907 = vmatpush1.xpose.msra.mxu0 %v874
        %908 = vmatprep.subr.mxu0 0.0
        %909 = vmatpush2.xpose.msra.mxu0 0.0
        %910 = vmatprep.subr.mxu0 0.0
        %911 = vmatpush2.xpose.msra.mxu0 0.0
        %912 = vmatprep.subr.mxu0 0.0
        %913 = vmatpush2.xpose.msra.mxu0 0.0
        %914 = vmatprep.subr.mxu0 0.0
        %915 = vmatpush2.xpose.msra.mxu0 0.0
        %916 = vmatprep.subr.mxu0 0.0
        %917 = vmatpush2.xpose.msra.mxu0 0.0
        %918 = vmatprep.subr.mxu0 0.0
        %919 = vmatpush2.xpose.msra.mxu0 0.0
        %920 = vmatprep.subr.mxu0 0.0
        %921 = vmatpush2.xpose.msra.mxu0 0.0
        %922 = vmatprep.subr.mxu0 0.0
        %923 = vmatpush2.xpose.msra.mxu0 0.0
        %924 = vmatprep.subr.mxu0 0.0
        %925 = vmatpush2.xpose.msra.mxu0 0.0
        %926 = vmatprep.subr.mxu0 0.0
        %927 = vmatpush2.xpose.msra.mxu0 0.0
        %928 = vmatprep.subr.mxu0 0.0
        %929 = vmatpush2.xpose.msra.mxu0 0.0
        %930 = vmatprep.subr.mxu0 0.0
        %931 = vmatpush2.xpose.msra.mxu0 0.0
        %932 = vmatprep.subr.mxu0 0.0
        %933 = vmatpush2.xpose.msra.mxu0 0.0
        %934 = vmatprep.subr.mxu0 0.0
        %935 = vmatpush2.xpose.msra.mxu0 0.0
        %936 = vmatprep.subr.mxu0 0.0
        %937 = vmatpush2.xpose.msra.mxu0 0.0
        %938 = vmatprep.subr.mxu0 0.0
        %939 = vmatpush2.xpose.msra.mxu0 0.0
        %940 = vmatprep.mubr.f32.mxu0 0.0
        %941 = vmatmul.mubr.f32.gmra.mxu0 %v872
        %v942 = vpop.f32.mrf.mxu0
        %v943 = vadd.f32 0.0, %v942
        %v944 = vpop.f32.mrf.mxu0
        %945 = vdwg.mxu0
        %v946 = vsel %vm870, -inf, %v943
        %v947 = vld [vmem:[#allocation4] sm:$0xff]
        %vm948 = vcmask 64512
        %v949 = vsel %vm948, %v946, -inf
        %950 = vmax.xlane.f32.xlu0 %v949
        %v951 = vpop.xlane.xlu0 %950
        %v952 = vmax.f32 %v947, %v951
        %v953 = vsub.f32 %v947, %v952
        %v954 = vmul.f32 %v953, 1.442695
        %v955 = vpow.pop %v954
        %957 = vset.pattern.permute.xlu0 0
        %958 = vperm.xlu0 %957, %v952
        %v959 = vpop.permute.xlu0 %958
        %v961 = vsub.f32 %v946, %v959
        %v962 = vmul.f32 %v961, 1.442695
        %v963 = vpow.pop %v962
        %v964 = vld [vmem:[#allocation5] sm:$0xff]
        %v965 = vmul.f32 %v955, %v964
        %v966 = vsel %vm948, %v963, 0.0
        %967 = vadd.xlane.f32.xlu0 %v966
        %v968 = vpop.xlane.xlu0 %967
        %v969 = vadd.f32 %v965, %v968
        %970 = vst.msk [vmem:[#allocation5] sm:$0xff] %vm668, %v969
        %v971 = vld [vmem:[#allocation6] sm:$0xff]
        %973 = vset.pattern.permute.xlu0 0
        %974 = vperm.xlu0 %973, %v955
        %v975 = vpop.permute.xlu0 %974
        %v977 = vmul.f32 %v975, %v971
        %v979 = vsel %vm948, %v963, 0
        %981 = vmatprep.subr.mxu0 0.0
        %982 = vmatpush1.msra.mxu0 0.0
        %983 = vmatprep.subr.mxu0 0.0
        %984 = vmatpush1.msra.mxu0 0.0
        %985 = vmatprep.subr.mxu0 0.0
        %986 = vmatpush1.msra.mxu0 0.0
        %987 = vmatprep.subr.mxu0 0.0
        %988 = vmatpush1.msra.mxu0 0.0
        %989 = vmatprep.subr.mxu0 0.0
        %990 = vmatpush1.msra.mxu0 0.0
        %991 = vmatprep.subr.mxu0 0.0
        %992 = vmatpush1.msra.mxu0 0.0
        %993 = vmatprep.subr.mxu0 0.0
        %994 = vmatpush1.msra.mxu0 0.0
        %995 = vmatprep.subr.mxu0 0.0
        %996 = vmatpush1.msra.mxu0 0.0
        %997 = vmatprep.subr.mxu0 0.0
        %998 = vmatpush1.msra.mxu0 0.0
        %999 = vmatprep.subr.mxu0 0.0
        %1000 = vmatpush1.msra.mxu0 0.0
        %1001 = vmatprep.subr.mxu0 0.0
        %1002 = vmatpush1.msra.mxu0 0.0
        %1003 = vmatprep.subr.mxu0 0.0
        %1004 = vmatpush1.msra.mxu0 0.0
        %1005 = vmatprep.subr.mxu0 0.0
        %1006 = vmatpush1.msra.mxu0 0.0
        %1007 = vmatprep.subr.mxu0 0.0
        %1008 = vmatpush1.msra.mxu0 0.0
        %1009 = vmatprep.subr.mxu0 0.0
        %1010 = vmatpush1.msra.mxu0 0.0
        %1011 = vmatprep.subr.mxu0 0.0
        %1012 = vmatpush1.msra.mxu0 %v664
        %1013 = vmatprep.subr.mxu0 0.0
        %1014 = vmatpush2.msra.mxu0 0.0
        %1015 = vmatprep.subr.mxu0 0.0
        %1016 = vmatpush2.msra.mxu0 0.0
        %1017 = vmatprep.subr.mxu0 0.0
        %1018 = vmatpush2.msra.mxu0 0.0
        %1019 = vmatprep.subr.mxu0 0.0
        %1020 = vmatpush2.msra.mxu0 0.0
        %1021 = vmatprep.subr.mxu0 0.0
        %1022 = vmatpush2.msra.mxu0 0.0
        %1023 = vmatprep.subr.mxu0 0.0
        %1024 = vmatpush2.msra.mxu0 0.0
        %1025 = vmatprep.subr.mxu0 0.0
        %1026 = vmatpush2.msra.mxu0 0.0
        %1027 = vmatprep.subr.mxu0 0.0
        %1028 = vmatpush2.msra.mxu0 0.0
        %1029 = vmatprep.subr.mxu0 0.0
        %1030 = vmatpush2.msra.mxu0 0.0
        %1031 = vmatprep.subr.mxu0 0.0
        %1032 = vmatpush2.msra.mxu0 0.0
        %1033 = vmatprep.subr.mxu0 0.0
        %1034 = vmatpush2.msra.mxu0 0.0
        %1035 = vmatprep.subr.mxu0 0.0
        %1036 = vmatpush2.msra.mxu0 0.0
        %1037 = vmatprep.subr.mxu0 0.0
        %1038 = vmatpush2.msra.mxu0 0.0
        %1039 = vmatprep.subr.mxu0 0.0
        %1040 = vmatpush2.msra.mxu0 0.0
        %1041 = vmatprep.subr.mxu0 0.0
        %1042 = vmatpush2.msra.mxu0 0.0
        %1043 = vmatprep.subr.mxu0 0.0
        %1044 = vmatpush2.msra.mxu0 0.0
        %1045 = vmatprep.mubr.f32.mxu0 0.0
        %1046 = vmatmul.mubr.f32.gmra.mxu0 %v979
        %v1047 = vpop.f32.mrf.mxu0
        %v1048 = vadd.f32 0.0, %v1047
        %v1049 = vpop.f32.mrf.mxu0
        %1050 = vdwg.mxu0
        %v1051 = vadd.f32 %v977, %v1048
        %1052 = vst.msk [vmem:[#allocation6] sm:$0xff] %vm535, %v1051
        %1053 = vst.msk [vmem:[#allocation4] sm:$0xff] %vm668, %v952
        %v1054 = vld [vmem:[#allocation6] sm:$0xff]
        %v1055 = vld [vmem:[#allocation5] sm:$0xff]
        %1057 = vset.pattern.permute.xlu0 0
        %1058 = vperm.xlu0 %1057, %v1055
        %v1059 = vpop.permute.xlu0 %1058
        %v1061 = vrcp.pop %v1059
        %v1062 = vmul.f32 %v1054, %v1061
        %v1063 = vld [vmem:[#allocation12] sm:$0xff]
        %v1064 = vld [vmem:[#allocation12 + $0x8] sm:$0xff]
        %v1065 = vld [vmem:[#allocation12 + $0x10] sm:$0xff]
        %v1066 = vld [vmem:[#allocation12 + $0x18] sm:$0xff]
        %v1067 = vld [vmem:[%s4] sm:$0x1]
        %v1069 = vlaneseq
        %v1070 = vshrl.u32 %v1069, 7
        %v1071 = vsub.s32 0, %v1070
        %v1072 = vrot.slane %v1067, %v1071
        %v1075 = vsel %vm535, %v1062, 0
        %1077 = vmatprep.subr.mxu0 0.0
        %1078 = vmatpush1.msra.mxu0 0.0
        %1079 = vmatprep.subr.mxu0 0.0
        %1080 = vmatpush1.msra.mxu0 0.0
        %1081 = vmatprep.subr.mxu0 0.0
        %1082 = vmatpush1.msra.mxu0 0.0
        %1083 = vmatprep.subr.mxu0 0.0
        %1084 = vmatpush1.msra.mxu0 0.0
        %1085 = vmatprep.subr.mxu0 0.0
        %1086 = vmatpush1.msra.mxu0 0.0
        %1087 = vmatprep.subr.mxu0 0.0
        %1088 = vmatpush1.msra.mxu0 0.0
        %1089 = vmatprep.subr.mxu0 0.0
        %1090 = vmatpush1.msra.mxu0 0.0
        %1091 = vmatprep.subr.mxu0 0.0
        %1092 = vmatpush1.msra.mxu0 0.0
        %1093 = vmatprep.subr.mxu0 0.0
        %1094 = vmatpush1.msra.mxu0 0.0
        %1095 = vmatprep.subr.mxu0 0.0
        %1096 = vmatpush1.msra.mxu0 0.0
        %1097 = vmatprep.subr.mxu0 0.0
        %1098 = vmatpush1.msra.mxu0 0.0
        %1099 = vmatprep.subr.mxu0 0.0
        %1100 = vmatpush1.msra.mxu0 0.0
        %1101 = vmatprep.subr.mxu0 0.0
        %1102 = vmatpush1.msra.mxu0 %v1066
        %1103 = vmatprep.subr.mxu0 0.0
        %1104 = vmatpush1.msra.mxu0 %v1065
        %1105 = vmatprep.subr.mxu0 0.0
        %1106 = vmatpush1.msra.mxu0 %v1064
        %1107 = vmatprep.subr.mxu0 0.0
        %1108 = vmatpush1.msra.mxu0 %v1063
        %1109 = vmatprep.subr.mxu0 0.0
        %1110 = vmatpush2.msra.mxu0 0.0
        %1111 = vmatprep.subr.mxu0 0.0
        %1112 = vmatpush2.msra.mxu0 0.0
        %1113 = vmatprep.subr.mxu0 0.0
        %1114 = vmatpush2.msra.mxu0 0.0
        %1115 = vmatprep.subr.mxu0 0.0
        %1116 = vmatpush2.msra.mxu0 0.0
        %1117 = vmatprep.subr.mxu0 0.0
        %1118 = vmatpush2.msra.mxu0 0.0
        %1119 = vmatprep.subr.mxu0 0.0
        %1120 = vmatpush2.msra.mxu0 0.0
        %1121 = vmatprep.subr.mxu0 0.0
        %1122 = vmatpush2.msra.mxu0 0.0
        %1123 = vmatprep.subr.mxu0 0.0
        %1124 = vmatpush2.msra.mxu0 0.0
        %1125 = vmatprep.subr.mxu0 0.0
        %1126 = vmatpush2.msra.mxu0 0.0
        %1127 = vmatprep.subr.mxu0 0.0
        %1128 = vmatpush2.msra.mxu0 0.0
        %1129 = vmatprep.subr.mxu0 0.0
        %1130 = vmatpush2.msra.mxu0 0.0
        %1131 = vmatprep.subr.mxu0 0.0
        %1132 = vmatpush2.msra.mxu0 0.0
        %1133 = vmatprep.subr.mxu0 0.0
        %1134 = vmatpush2.msra.mxu0 0.0
        %1135 = vmatprep.subr.mxu0 0.0
        %1136 = vmatpush2.msra.mxu0 0.0
        %1137 = vmatprep.subr.mxu0 0.0
        %1138 = vmatpush2.msra.mxu0 0.0
        %1139 = vmatprep.subr.mxu0 0.0
        %1140 = vmatpush2.msra.mxu0 0.0
        %1141 = vmatprep.mubr.f32.mxu0 0.0
        %1142 = vmatmul.mubr.f32.gmra.mxu0 %v1075
        %v1143 = vpop.f32.mrf.mxu0
        %v1144 = vadd.f32 %v1072, %v1143
        %v1145 = vpop.f32.mrf.mxu0
        %1146 = vdwg.mxu0
        %v1147 = vadd.f32 %v1144, %v532
        %v1148 = vld [vmem:[%s7] sm:$0x1]
        %v1149 = vld [vmem:[%s8] sm:$0x1]
        %v1150 = vsel %vm535, %v1147, 0.0
        %1151 = vadd.xlane.f32.xlu0 %v1150
        %v1152 = vpop.xlane.xlu0 %1151
        %v1153 = vmul.f32 %v1152, %v539
        %v1154 = vsub.f32 %v1147, %v1153
        %v1155 = vmul.f32 %v1154, %v1154
        %v1156 = vsel %vm535, %v1155, 0.0
        %1157 = vadd.xlane.f32.xlu0 %v1156
        %v1158 = vpop.xlane.xlu0 %1157
        %v1159 = vmul.f32 %v1158, 0.032258064
        %v1161 = vlaneseq
        %v1162 = vshrl.u32 %v1161, 7
        %v1163 = vsub.s32 0, %v1162
        %v1164 = vrot.slane %v1148, %v1163
        %v1166 = vmul.f32 %v1164, %v1154
        %v1167 = vrsqrt.pop %v1159
        %v1168 = vmul.f32 %v1159, %v1167
        %vm1169 = vcmp.eq.f32.partialorder %v1159, inf
        %v1170 = vsel %vm1169, %v1159, %v1168
        %vm1171 = vcmp.eq.f32.partialorder %v1159, 0.0
        %v1172 = vand.u32 %v1159, 2147483648
        %v1173 = vsel %vm1171, %v1172, %v1170
        %v1174 = vadd.f32 %v1173, 1e-06
        %v1175 = vrcp.pop %v1174
        %v1176 = vmul.f32 %v1166, %v1175
        %v1178 = vlaneseq
        %v1179 = vshrl.u32 %v1178, 7
        %v1180 = vsub.s32 0, %v1179
        %v1181 = vrot.slane %v1149, %v1180
        %v1183 = vadd.f32 %v1176, %v1181
        %v1184 = vld [vmem:[#allocation13] sm:$0xff]
        %v1185 = vld [vmem:[#allocation13 + $0x8] sm:$0xff]
        %v1186 = vld [vmem:[#allocation13 + $0x10] sm:$0xff]
        %v1187 = vld [vmem:[#allocation13 + $0x18] sm:$0xff]
        %v1188 = vld [vmem:[%s10] sm:$0x1]
        %v1190 = vlaneseq
        %v1191 = vshrl.u32 %v1190, 7
        %v1192 = vsub.s32 0, %v1191
        %v1193 = vrot.slane %v1188, %v1192
        %v1196 = vsel %vm535, %v1183, 0
        %1198 = vmatprep.subr.mxu0 0.0
        %1199 = vmatpush1.msra.mxu0 0.0
        %1200 = vmatprep.subr.mxu0 0.0
        %1201 = vmatpush1.msra.mxu0 0.0
        %1202 = vmatprep.subr.mxu0 0.0
        %1203 = vmatpush1.msra.mxu0 0.0
        %1204 = vmatprep.subr.mxu0 0.0
        %1205 = vmatpush1.msra.mxu0 0.0
        %1206 = vmatprep.subr.mxu0 0.0
        %1207 = vmatpush1.msra.mxu0 0.0
        %1208 = vmatprep.subr.mxu0 0.0
        %1209 = vmatpush1.msra.mxu0 0.0
        %1210 = vmatprep.subr.mxu0 0.0
        %1211 = vmatpush1.msra.mxu0 0.0
        %1212 = vmatprep.subr.mxu0 0.0
        %1213 = vmatpush1.msra.mxu0 0.0
        %1214 = vmatprep.subr.mxu0 0.0
        %1215 = vmatpush1.msra.mxu0 0.0
        %1216 = vmatprep.subr.mxu0 0.0
        %1217 = vmatpush1.msra.mxu0 0.0
        %1218 = vmatprep.subr.mxu0 0.0
        %1219 = vmatpush1.msra.mxu0 0.0
        %1220 = vmatprep.subr.mxu0 0.0
        %1221 = vmatpush1.msra.mxu0 0.0
        %1222 = vmatprep.subr.mxu0 0.0
        %1223 = vmatpush1.msra.mxu0 %v1187
        %1224 = vmatprep.subr.mxu0 0.0
        %1225 = vmatpush1.msra.mxu0 %v1186
        %1226 = vmatprep.subr.mxu0 0.0
        %1227 = vmatpush1.msra.mxu0 %v1185
        %1228 = vmatprep.subr.mxu0 0.0
        %1229 = vmatpush1.msra.mxu0 %v1184
        %1230 = vmatprep.subr.mxu0 0.0
        %1231 = vmatpush2.msra.mxu0 0.0
        %1232 = vmatprep.subr.mxu0 0.0
        %1233 = vmatpush2.msra.mxu0 0.0
        %1234 = vmatprep.subr.mxu0 0.0
        %1235 = vmatpush2.msra.mxu0 0.0
        %1236 = vmatprep.subr.mxu0 0.0
        %1237 = vmatpush2.msra.mxu0 0.0
        %1238 = vmatprep.subr.mxu0 0.0
        %1239 = vmatpush2.msra.mxu0 0.0
        %1240 = vmatprep.subr.mxu0 0.0
        %1241 = vmatpush2.msra.mxu0 0.0
        %1242 = vmatprep.subr.mxu0 0.0
        %1243 = vmatpush2.msra.mxu0 0.0
        %1244 = vmatprep.subr.mxu0 0.0
        %1245 = vmatpush2.msra.mxu0 0.0
        %1246 = vmatprep.subr.mxu0 0.0
        %1247 = vmatpush2.msra.mxu0 0.0
        %1248 = vmatprep.subr.mxu0 0.0
        %1249 = vmatpush2.msra.mxu0 0.0
        %1250 = vmatprep.subr.mxu0 0.0
        %1251 = vmatpush2.msra.mxu0 0.0
        %1252 = vmatprep.subr.mxu0 0.0
        %1253 = vmatpush2.msra.mxu0 0.0
        %1254 = vmatprep.subr.mxu0 0.0
        %1255 = vmatpush2.msra.mxu0 0.0
        %1256 = vmatprep.subr.mxu0 0.0
        %1257 = vmatpush2.msra.mxu0 0.0
        %1258 = vmatprep.subr.mxu0 0.0
        %1259 = vmatpush2.msra.mxu0 0.0
        %1260 = vmatprep.subr.mxu0 0.0
        %1261 = vmatpush2.msra.mxu0 0.0
        %1262 = vmatprep.mubr.f32.mxu0 0.0
        %1263 = vmatmul.mubr.f32.gmra.mxu0 %v1196
        %v1264 = vpop.f32.mrf.mxu0
        %v1265 = vadd.f32 %v1193, %v1264
        %v1266 = vpop.f32.mrf.mxu0
        %1267 = vdwg.mxu0
        %v1268 = vmax.f32 %v1265, 0.0
        %v1269 = vld [vmem:[#allocation15] sm:$0xff]
        %v1270 = vld [vmem:[#allocation15 + $0x8] sm:$0xff]
        %v1271 = vld [vmem:[#allocation15 + $0x10] sm:$0xff]
        %v1272 = vld [vmem:[#allocation15 + $0x18] sm:$0xff]
        %v1273 = vld [vmem:[%s12] sm:$0x1]
        %v1275 = vlaneseq
        %v1276 = vshrl.u32 %v1275, 7
        %v1277 = vsub.s32 0, %v1276
        %v1278 = vrot.slane %v1273, %v1277
        %v1281 = vsel %vm535, %v1268, 0
        %1283 = vmatprep.subr.mxu0 0.0
        %1284 = vmatpush1.msra.mxu0 0.0
        %1285 = vmatprep.subr.mxu0 0.0
        %1286 = vmatpush1.msra.mxu0 0.0
        %1287 = vmatprep.subr.mxu0 0.0
        %1288 = vmatpush1.msra.mxu0 0.0
        %1289 = vmatprep.subr.mxu0 0.0
        %1290 = vmatpush1.msra.mxu0 0.0
        %1291 = vmatprep.subr.mxu0 0.0
        %1292 = vmatpush1.msra.mxu0 0.0
        %1293 = vmatprep.subr.mxu0 0.0
        %1294 = vmatpush1.msra.mxu0 0.0
        %1295 = vmatprep.subr.mxu0 0.0
        %1296 = vmatpush1.msra.mxu0 0.0
        %1297 = vmatprep.subr.mxu0 0.0
        %1298 = vmatpush1.msra.mxu0 0.0
        %1299 = vmatprep.subr.mxu0 0.0
        %1300 = vmatpush1.msra.mxu0 0.0
        %1301 = vmatprep.subr.mxu0 0.0
        %1302 = vmatpush1.msra.mxu0 0.0
        %1303 = vmatprep.subr.mxu0 0.0
        %1304 = vmatpush1.msra.mxu0 0.0
        %1305 = vmatprep.subr.mxu0 0.0
        %1306 = vmatpush1.msra.mxu0 0.0
        %1307 = vmatprep.subr.mxu0 0.0
        %1308 = vmatpush1.msra.mxu0 %v1272
        %1309 = vmatprep.subr.mxu0 0.0
        %1310 = vmatpush1.msra.mxu0 %v1271
        %1311 = vmatprep.subr.mxu0 0.0
        %1312 = vmatpush1.msra.mxu0 %v1270
        %1313 = vmatprep.subr.mxu0 0.0
        %1314 = vmatpush1.msra.mxu0 %v1269
        %1315 = vmatprep.subr.mxu0 0.0
        %1316 = vmatpush2.msra.mxu0 0.0
        %1317 = vmatprep.subr.mxu0 0.0
        %1318 = vmatpush2.msra.mxu0 0.0
        %1319 = vmatprep.subr.mxu0 0.0
        %1320 = vmatpush2.msra.mxu0 0.0
        %1321 = vmatprep.subr.mxu0 0.0
        %1322 = vmatpush2.msra.mxu0 0.0
        %1323 = vmatprep.subr.mxu0 0.0
        %1324 = vmatpush2.msra.mxu0 0.0
        %1325 = vmatprep.subr.mxu0 0.0
        %1326 = vmatpush2.msra.mxu0 0.0
        %1327 = vmatprep.subr.mxu0 0.0
        %1328 = vmatpush2.msra.mxu0 0.0
        %1329 = vmatprep.subr.mxu0 0.0
        %1330 = vmatpush2.msra.mxu0 0.0
        %1331 = vmatprep.subr.mxu0 0.0
        %1332 = vmatpush2.msra.mxu0 0.0
        %1333 = vmatprep.subr.mxu0 0.0
        %1334 = vmatpush2.msra.mxu0 0.0
        %1335 = vmatprep.subr.mxu0 0.0
        %1336 = vmatpush2.msra.mxu0 0.0
        %1337 = vmatprep.subr.mxu0 0.0
        %1338 = vmatpush2.msra.mxu0 0.0
        %1339 = vmatprep.subr.mxu0 0.0
        %1340 = vmatpush2.msra.mxu0 0.0
        %1341 = vmatprep.subr.mxu0 0.0
        %1342 = vmatpush2.msra.mxu0 0.0
        %1343 = vmatprep.subr.mxu0 0.0
        %1344 = vmatpush2.msra.mxu0 0.0
        %1345 = vmatprep.subr.mxu0 0.0
        %1346 = vmatpush2.msra.mxu0 0.0
        %1347 = vmatprep.mubr.f32.mxu0 0.0
        %1348 = vmatmul.mubr.f32.gmra.mxu0 %v1281
        %v1349 = vpop.f32.mrf.mxu0
        %v1350 = vadd.f32 %v1278, %v1349
        %v1351 = vpop.f32.mrf.mxu0
        %1352 = vdwg.mxu0
        %v1353 = vadd.f32 %v1147, %v1350
        %1354 = vst.msk [vmem:[%s531] sm:$0xff] %vm535, %v1353
        %s1355 = sand.u32 %s334, 1
        %s1356 = scalar_lea.sflag [#allocation9], %s1355
        %s1357 = sand.u32 %s334, 1
        %s1358 = smul.addr %s1357, 8
        %s1359 = scalar_lea.vmem [#allocation16], %s1358
        // Predicated region
        $region100: #{tpu_custom_call.1} parent=71 // pred_check
          %p1360 = pneg %p344
        $region101: #{tpu_custom_call.1} parent=71 // pred_check_branch
          %1362 = sbr.rel (%p1360) target = $region103
        $region102: #{tpu_custom_call.1} parent=71 // pred_region
          %s1364 = ssub.s32 128, 128
          %1365 = vsyncadd %s1356, %s1364
          %s1366 = smul.addr %s36, 4
          %s1367 = sadd.s32 %s37, %s1366
          %s1368 = smul.addr %s1367, 128
          %s1369 = scalar_lea.hbm %s13, %s1368
          %s1371 = sshll.u32 %s1359, 4
          %s1372 = int_to_ptr.vmem [resolvable:$true] %s1371
          %1374 = dma.vmem_to_hbm [thread:$0]  %s1372, 128, %s1369, %s1356
        $region103: #{tpu_custom_call.1} parent=71 // pred_fallthru
          _
      $region72: #{tpu_custom_call.1} parent=5 // pred_fallthru
        _
      %p1375 = scmp.le.s32.totalorder 2, %s27
      // Predicated region
      $region104: #{tpu_custom_call.1} parent=5 // pred_check
        %p1376 = pneg %p1375
      $region105: #{tpu_custom_call.1} parent=5 // pred_check_branch
        %1378 = sbr.rel (%p1376) target = $region107
      $region106: #{tpu_custom_call.1} parent=5 // pred_region
        %s1379 = ssub.s32 %s27, 2
        // Predicated region
        $region108: #{tpu_custom_call.1} parent=106 // pred_check
          %p1380 = pneg %p350
        $region109: #{tpu_custom_call.1} parent=106 // pred_check_branch
          %1382 = sbr.rel (%p1380) target = $region111
        $region110: #{tpu_custom_call.1} parent=106 // pred_region
          %s1383 = sand.u32 %s335, 1
          %s1384 = scalar_lea.sflag [#allocation9], %s1383
          %s1385 = sand.u32 %s335, 1
          %s1386 = smul.addr %s1385, 8
          %s1387 = scalar_lea.vmem [#allocation16], %s1386
          %1388 = dma.done %s1384, 128
        $region111: #{tpu_custom_call.1} parent=106 // pred_fallthru
          _
      $region107: #{tpu_custom_call.1} parent=5 // pred_fallthru
        _
    $region6: #{tpu_custom_call.1} parent=1 // loop_footer
      %s31 = sadd.s32 1, %s27
    $region7: #{tpu_custom_call.1} parent=1 // loop_footer_branch
      %26 = sbr.rel target = $region3
    $region8: #{tpu_custom_call.1} parent=1 // loop_exit
      _
    %1389 = vsyncpa [#allocation8], 1
    %s1390 = scalar_lea.sflag [#allocation8], 1
    %1391 = vsyncpa %s1390, 1
    %1392 = vsyncpa [#allocation11], 1
    %1393 = vsyncpa [#allocation14], 1
    %1394 = vsyncpa [#allocation9], 1
    %s1395 = scalar_lea.sflag [#allocation9], 1
    %1396 = vsyncpa %s1395, 1

</llo_original>
